<compile_context>
chip_gen: v6e
topology: v6e:2x2x1
jax: 0.10.0
libtpu: 0.0.40
codegen_flags: <defaults>
</compile_context>

<pallas_src>
import functools

import jax
import jax.numpy as jnp
from jax import lax
from jax.experimental import pallas as pl
from jax.experimental.pallas import tpu as pltpu


_LANES = 128
_CHUNK_ROWS = 64        # rows per vreg-resident sub-block (8 (8,128) vreg groups)
_PAD_LOGIT = -50.0      # padding logit: sigmoid(x)~0 and log1p(exp(-|x|))~0


def _loss_sums_kernel(pred_ref, target_ref, bce_ref, inter_ref, psum_ref, tsum_ref):
    # pred_ref:   (P, TR, 128)  native-dtype tile holding the same rows of all P maps
    # target_ref: (TR, 128)     bf16 target tile (streamed from HBM exactly once)
    # bce/inter/psum_ref: (P, 8, 128) f32 resident partial accumulators
    # tsum_ref:           (8, 128)    f32 resident partial accumulator for sum(target)
    k = pl.program_id(1)

    @pl.when(k == 0)
    def _init():
        bce_ref[...] = jnp.zeros_like(bce_ref)
        inter_ref[...] = jnp.zeros_like(inter_ref)
        psum_ref[...] = jnp.zeros_like(psum_ref)
        tsum_ref[...] = jnp.zeros_like(tsum_ref)

    num_preds, tile_rows, _ = pred_ref.shape
    n_chunks = tile_rows // _CHUNK_ROWS
    g = _CHUNK_ROWS // 8
    zero = jnp.zeros((8, _LANES), jnp.float32)

    def _load_y(c):
        r0 = pl.multiple_of(c * _CHUNK_ROWS, _CHUNK_ROWS)
        return target_ref[pl.ds(r0, _CHUNK_ROWS), :].astype(jnp.float32)

    # sum(target): reduced exactly once per tile (shared by every prediction map)
    def t_body(c, acc):
        y = _load_y(c)
        return acc + y.reshape(g, 8, _LANES).sum(axis=0)

    tsum_ref[...] += lax.fori_loop(0, n_chunks, t_body, zero, unroll=True)

    # Per prediction map: 64-row chunks keep every f32 temporary vreg-resident
    # (<= 8 vregs each) instead of spilling a full (TR,128) f32 array to VMEM.
    def p_body(p, carry):
        def c_body(c, accs):
            bce_acc, int_acc, ps_acc = accs
            r0 = pl.multiple_of(c * _CHUNK_ROWS, _CHUNK_ROWS)
            x = pred_ref[p, pl.ds(r0, _CHUNK_ROWS), :].astype(jnp.float32)
            y = _load_y(c)
            e = jnp.exp(-jnp.abs(x))                                # EUP, shared
            # stable BCE-with-logits term: max(x,0) - x*y + log1p(exp(-|x|))
            bce = jnp.maximum(x, 0.0) - x * y + jnp.log1p(e)
            # sigmoid via tanh: 1 EUP op, no compare/select/divide, exact-ish
            sig = 0.5 * jnp.tanh(0.5 * x) + 0.5
            bce_acc = bce_acc + bce.reshape(g, 8, _LANES).sum(axis=0)
            int_acc = int_acc + (sig * y).reshape(g, 8, _LANES).sum(axis=0)
            ps_acc = ps_acc + sig.reshape(g, 8, _LANES).sum(axis=0)
            return bce_acc, int_acc, ps_acc

        bce_acc, int_acc, ps_acc = lax.fori_loop(
            0, n_chunks, c_body, (zero, zero, zero), unroll=True)
        bce_ref[p] += bce_acc
        inter_ref[p] += int_acc
        psum_ref[p] += ps_acc
        return carry

    lax.fori_loop(0, num_preds, p_body, 0, unroll=True)


def _round_up(x, m):
    return ((x + m - 1) // m) * m


@functools.partial(
    jax.jit, static_argnames=("w_map", "w_final", "smooth", "max_tile_rows"))
def loss_component(preds, target, target_edge=None, w_map=1.0, w_final=2.0,
                   smooth=1.0, max_tile_rows=2048):
    """preds: (P, B, C, H, W) stack of prediction logits (any float dtype);
    target: (B, C, H, W) binary mask. target_edge is accepted but unused
    (as in the PyTorch forward)."""
    del target_edge  # unused by the reference forward pass

    P = preds.shape[0]
    n_true = int(target.size)

    # Tile-row choice: a multiple of the chunk size, capped by max_tile_rows.
    max_tile_rows = max(_CHUNK_ROWS, (max_tile_rows // _CHUNK_ROWS) * _CHUNK_ROWS)
    rows_needed = pl.cdiv(n_true, _LANES)
    tile_rows = min(max_tile_rows, _round_up(rows_needed, _CHUNK_ROWS))
    num_tiles = pl.cdiv(rows_needed, tile_rows)
    # 2-way leading split so v7x's two TensorCores can each take half the tiles;
    # pad the tile count up so an odd count never silently drops the split.
    if num_tiles >= 2 and num_tiles % 2 != 0:
        num_tiles += 1
    nsplit = 2 if num_tiles >= 2 else 1
    k_per_split = num_tiles // nsplit

    rows_pad = num_tiles * tile_rows
    n_pad = rows_pad * _LANES

    # Flatten + pad. Padded logits are very negative and padded targets are 0, so
    # padded elements contribute ~0 to every accumulated sum; BCE divides by true N.
    preds_flat = preds.reshape(P, n_true)
    target_flat = target.reshape(n_true)
    if n_pad != n_true:
        preds_flat = jnp.pad(preds_flat, ((0, 0), (0, n_pad - n_true)),
                             constant_values=_PAD_LOGIT)
        target_flat = jnp.pad(target_flat, (0, n_pad - n_true), constant_values=0.0)

    # Stream preds in their native dtype; stream the (0/1 mask) target as bf16
    # (exact for binary masks, halves the only f32 input stream).
    preds2 = preds_flat.reshape(P, rows_pad, _LANES)
    target2 = target_flat.reshape(rows_pad, _LANES).astype(jnp.bfloat16)

    out_shape = (
        jax.ShapeDtypeStruct((nsplit, P, 8, _LANES), jnp.float32),  # bce partials
        jax.ShapeDtypeStruct((nsplit, P, 8, _LANES), jnp.float32),  # sum(sig*t)
        jax.ShapeDtypeStruct((nsplit, P, 8, _LANES), jnp.float32),  # sum(sig)
        jax.ShapeDtypeStruct((nsplit, 8, _LANES), jnp.float32),     # sum(t)
    )
    acc_spec = pl.BlockSpec((None, P, 8, _LANES), lambda s, k: (s, 0, 0, 0))
    out_specs = (acc_spec, acc_spec, acc_spec,
                 pl.BlockSpec((None, 8, _LANES), lambda s, k: (s, 0, 0)))
    in_specs = [
        # all P maps' tile for this row range -> target streamed once per row range
        # TODO(synk): if xprof shows exposed DMA on v5e, add
        #             pipeline_mode=pl.Buffered(3) to this spec.
        pl.BlockSpec((P, tile_rows, _LANES),
                     lambda s, k: (0, s * k_per_split + k, 0)),
        pl.BlockSpec((tile_rows, _LANES),
                     lambda s, k: (s * k_per_split + k, 0)),
    ]

    # Explicit VMEM budget (valid against v7x's 64 MiB physical / 32 MiB scoped).
    pred_bytes = preds2.dtype.itemsize
    vmem_bytes = (2 * P * tile_rows * _LANES * pred_bytes   # pred double buffer
                  + 2 * tile_rows * _LANES * 2              # target double buffer
                  + (3 * P + 1) * 8 * _LANES * 4            # resident accumulators
                  + (4 << 20))                              # headroom
    vmem_limit = min(max(vmem_bytes, 16 << 20), 48 << 20)

    bce_p, inter_p, psum_p, tsum_p = pl.pallas_call(
        _loss_sums_kernel,
        grid=(nsplit, k_per_split),
        in_specs=in_specs,
        out_specs=out_specs,
        out_shape=out_shape,
        compiler_params=pltpu.CompilerParams(
            # TODO(synk): on v7x use pltpu.CORE_PARALLEL (or pl.core_map with
            # create_tensorcore_mesh) for the leading axis to guarantee the 2-way
            # split lands on both TensorCores.
            dimension_semantics=("parallel", "arbitrary"),
            vmem_limit_bytes=vmem_limit,
        ),
    )(preds2, target2)

    # Cheap cross-lane / cross-split collapse in the XLA epilogue.
    bce_sum = jnp.sum(bce_p, axis=(0, 2, 3))   # (P,)
    inter = jnp.sum(inter_p, axis=(0, 2, 3))   # (P,)
    psum = jnp.sum(psum_p, axis=(0, 2, 3))     # (P,)
    tsum = jnp.sum(tsum_p)                     # scalar

    bce_mean = bce_sum / n_true                                      # BCEWithLogitsLoss
    dice = 1.0 - (2.0 * inter + smooth) / (psum + tsum + smooth)     # DiceLoss
    per_pred = bce_mean + dice                                       # (P,)

    # W_map for all but the last prediction map, W_final for the last one.
    weights = jnp.where(jnp.arange(P) < P - 1, w_map, w_final).astype(jnp.float32)
    return jnp.sum(weights * per_pred)


def _reference(preds, target, w_map=1.0, w_final=2.0, smooth=1.0):
    """Pure-JAX reference mirroring the PyTorch module (for a sanity check)."""
    total = 0.0
    y = target.astype(jnp.float32)
    P = preds.shape[0]
    for i in range(P):
        x = preds[i].astype(jnp.float32)
        bce = jnp.mean(jnp.maximum(x, 0.0) - x * y + jnp.log1p(jnp.exp(-jnp.abs(x))))
        p = jax.nn.sigmoid(x)
        dice = 1.0 - (2.0 * jnp.sum(p * y) + smooth) / (jnp.sum(p) + jnp.sum(y) + smooth)
        w = w_map if i < P - 1 else w_final
        total = total + w * (bce + dice)
    return total


if __name__ == "__main__":
    key = jax.random.PRNGKey(0)
    kp, kt, ke, kp2, kt2 = jax.random.split(key, 5)

    # Case 1: P=3 prediction maps (first two weighted W_map, last W_final),
    # each (B=2, C=1, 128, 128); bf16 logits, 0/1 float target mask.
    P, B, C, H, W = 3, 2, 1, 128, 128
    preds = jax.random.normal(kp, (P, B, C, H, W), jnp.float32).astype(jnp.bfloat16)
    target = (jax.random.uniform(kt, (B, C, H, W)) > 0.5).astype(jnp.float32)
    target_edge = (jax.random.uniform(ke, (B, C, H, W)) > 0.5).astype(jnp.float32)

    ref = _reference(preds, target, w_map=1.0, w_final=2.0)

    # production-style path: one big tile per split
    out1 = jax.block_until_ready(loss_component(preds, target, target_edge))
    assert jnp.allclose(out1, ref, rtol=1e-2, atol=1e-2), (out1, ref)

    # multi-tile + 2-way-split path (4 tiles -> nsplit=2, 2 accumulation steps each)
    out2 = jax.block_until_ready(
        loss_component(preds, target, target_edge, max_tile_rows=64))
    assert jnp.allclose(out2, ref, rtol=1e-2, atol=1e-2), (out2, ref)

    # Case 2: awkward element count (not a multiple of 8*128) exercises padding,
    # f32 preds, non-default weights.
    preds_b = jax.random.normal(kp2, (2, 2, 1, 60, 60), jnp.float32)
    target_b = (jax.random.uniform(kt2, (2, 1, 60, 60)) > 0.5).astype(jnp.float32)
    out3 = jax.block_until_ready(
        loss_component(preds_b, target_b, None, w_map=0.5, w_final=3.0))
    ref_b = _reference(preds_b, target_b, w_map=0.5, w_final=3.0)
    assert jnp.allclose(out3, ref_b, rtol=1e-2, atol=1e-2), (out3, ref_b)

    print("KERNEL_OK")
</pallas_src>

<mosaic_0001>
module attributes {stable_mosaic.version = 11 : i64} {
  func.func @_loss_sums_kernel(%arg0: i32, %arg1: i32, %arg2: memref<3x256x128xbf16, #tpu.memory_space<vmem>>, %arg3: memref<256x128xbf16, #tpu.memory_space<vmem>>, %arg4: memref<1x3x8x128xf32, #tpu.memory_space<vmem>>, %arg5: memref<1x3x8x128xf32, #tpu.memory_space<vmem>>, %arg6: memref<1x3x8x128xf32, #tpu.memory_space<vmem>>, %arg7: memref<1x8x128xf32, #tpu.memory_space<vmem>>) attributes {dimension_semantics = [#tpu.dimension_semantics<parallel>, #tpu.dimension_semantics<arbitrary>], iteration_bounds = array<i64: 1, 1>, scalar_prefetch = 0 : i64, scratch_operands = 0 : i64, tpu.core_type = #tpu.core_type<tc>, window_params = [{transform_indices = @transform_0, window_bounds = array<i64: 3, 256, 128>}, {transform_indices = @transform_1, window_bounds = array<i64: 256, 128>}, {transform_indices = @transform_2, window_bounds = array<i64: 1, 3, 8, 128>}, {transform_indices = @transform_3, window_bounds = array<i64: 1, 3, 8, 128>}, {transform_indices = @transform_4, window_bounds = array<i64: 1, 3, 8, 128>}, {transform_indices = @transform_5, window_bounds = array<i64: 1, 8, 128>}]} {
    %c0_i32 = arith.constant 0 : i32
    %0 = arith.cmpi eq, %arg1, %c0_i32 : i32
    %1 = arith.extui %0 : i1 to i32
    %c0_i32_0 = arith.constant 0 : i32
    %2 = arith.cmpi ne, %1, %c0_i32_0 : i32
    scf.if %2 {
      %cst_235 = arith.constant 0.000000e+00 : f32
      %582 = vector.broadcast %cst_235 : f32 to vector<3x8x128xf32>
      %c0_236 = arith.constant 0 : index
      %c0_237 = arith.constant 0 : index
      %c0_238 = arith.constant 0 : index
      %c0_239 = arith.constant 0 : index
      %583 = vector.load %arg4[%c0_236, %c0_237, %c0_238, %c0_239] : memref<1x3x8x128xf32, #tpu.memory_space<vmem>>, vector<1x3x8x128xf32>
      %584 = vector.shape_cast %583 : vector<1x3x8x128xf32> to vector<3x8x128xf32>
      %585 = vector.shape_cast %582 : vector<3x8x128xf32> to vector<1x3x8x128xf32>
      tpu.vector_store %arg4[%c0_236, %c0_237, %c0_238, %c0_239], %585 {strides = array<i32>} : memref<1x3x8x128xf32, #tpu.memory_space<vmem>>, vector<1x3x8x128xf32>,
      %cst_240 = arith.constant 0.000000e+00 : f32
      %586 = vector.broadcast %cst_240 : f32 to vector<3x8x128xf32>
      %c0_241 = arith.constant 0 : index
      %c0_242 = arith.constant 0 : index
      %c0_243 = arith.constant 0 : index
      %c0_244 = arith.constant 0 : index
      %587 = vector.load %arg5[%c0_241, %c0_242, %c0_243, %c0_244] : memref<1x3x8x128xf32, #tpu.memory_space<vmem>>, vector<1x3x8x128xf32>
      %588 = vector.shape_cast %587 : vector<1x3x8x128xf32> to vector<3x8x128xf32>
      %589 = vector.shape_cast %586 : vector<3x8x128xf32> to vector<1x3x8x128xf32>
      tpu.vector_store %arg5[%c0_241, %c0_242, %c0_243, %c0_244], %589 {strides = array<i32>} : memref<1x3x8x128xf32, #tpu.memory_space<vmem>>, vector<1x3x8x128xf32>,
      %cst_245 = arith.constant 0.000000e+00 : f32
      %590 = vector.broadcast %cst_245 : f32 to vector<3x8x128xf32>
      %c0_246 = arith.constant 0 : index
      %c0_247 = arith.constant 0 : index
      %c0_248 = arith.constant 0 : index
      %c0_249 = arith.constant 0 : index
      %591 = vector.load %arg6[%c0_246, %c0_247, %c0_248, %c0_249] : memref<1x3x8x128xf32, #tpu.memory_space<vmem>>, vector<1x3x8x128xf32>
      %592 = vector.shape_cast %591 : vector<1x3x8x128xf32> to vector<3x8x128xf32>
      %593 = vector.shape_cast %590 : vector<3x8x128xf32> to vector<1x3x8x128xf32>
      tpu.vector_store %arg6[%c0_246, %c0_247, %c0_248, %c0_249], %593 {strides = array<i32>} : memref<1x3x8x128xf32, #tpu.memory_space<vmem>>, vector<1x3x8x128xf32>,
      %cst_250 = arith.constant 0.000000e+00 : f32
      %594 = vector.broadcast %cst_250 : f32 to vector<8x128xf32>
      %c0_251 = arith.constant 0 : index
      %c0_252 = arith.constant 0 : index
      %c0_253 = arith.constant 0 : index
      %595 = vector.load %arg7[%c0_251, %c0_252, %c0_253] : memref<1x8x128xf32, #tpu.memory_space<vmem>>, vector<1x8x128xf32>
      %596 = vector.shape_cast %595 : vector<1x8x128xf32> to vector<8x128xf32>
      %597 = vector.shape_cast %594 : vector<8x128xf32> to vector<1x8x128xf32>
      tpu.vector_store %arg7[%c0_251, %c0_252, %c0_253], %597 {strides = array<i32>} : memref<1x8x128xf32, #tpu.memory_space<vmem>>, vector<1x8x128xf32>,
    } else {
    }
    %cst = arith.constant 0.000000e+00 : f32
    %3 = vector.broadcast %cst : f32 to vector<8x128xf32>
    %c0 = arith.constant 0 : index
    %c0_1 = arith.constant 0 : index
    %c0_2 = arith.constant 0 : index
    %4 = vector.load %arg7[%c0, %c0_1, %c0_2] : memref<1x8x128xf32, #tpu.memory_space<vmem>>, vector<1x8x128xf32>
    %5 = vector.shape_cast %4 : vector<1x8x128xf32> to vector<8x128xf32>
    %c0_i32_3 = arith.constant 0 : i32
    %c64_i32 = arith.constant 64 : i32
    %6 = arith.muli %c0_i32_3, %c64_i32 : i32
    %7 = tpu.assume_multiple %6, 64 : i32
    %8 = arith.index_cast %7 : i32 to index
    %c0_4 = arith.constant 0 : index
    %9 = vector.load %arg3[%8, %c0_4] : memref<256x128xbf16, #tpu.memory_space<vmem>>, vector<64x128xbf16>
    %10 = arith.extf %9 : vector<64x128xbf16> to vector<64x128xf32>
    %11 = vector.shape_cast %10 : vector<64x128xf32> to vector<8x8x128xf32>
    %cst_5 = arith.constant dense<0.000000e+00> : vector<8x128xf32>
    %12 = vector.multi_reduction <add>, %11, %cst_5 [0] : vector<8x8x128xf32> to vector<8x128xf32>
    %13 = arith.addf %3, %12 : vector<8x128xf32>
    %c1_i32 = arith.constant 1 : i32
    %c64_i32_6 = arith.constant 64 : i32
    %14 = arith.muli %c1_i32, %c64_i32_6 : i32
    %15 = tpu.assume_multiple %14, 64 : i32
    %16 = arith.index_cast %15 : i32 to index
    %c0_7 = arith.constant 0 : index
    %17 = vector.load %arg3[%16, %c0_7] : memref<256x128xbf16, #tpu.memory_space<vmem>>, vector<64x128xbf16>
    %18 = arith.extf %17 : vector<64x128xbf16> to vector<64x128xf32>
    %19 = vector.shape_cast %18 : vector<64x128xf32> to vector<8x8x128xf32>
    %cst_8 = arith.constant dense<0.000000e+00> : vector<8x128xf32>
    %20 = vector.multi_reduction <add>, %19, %cst_8 [0] : vector<8x8x128xf32> to vector<8x128xf32>
    %21 = arith.addf %13, %20 : vector<8x128xf32>
    %c2_i32 = arith.constant 2 : i32
    %c64_i32_9 = arith.constant 64 : i32
    %22 = arith.muli %c2_i32, %c64_i32_9 : i32
    %23 = tpu.assume_multiple %22, 64 : i32
    %24 = arith.index_cast %23 : i32 to index
    %c0_10 = arith.constant 0 : index
    %25 = vector.load %arg3[%24, %c0_10] : memref<256x128xbf16, #tpu.memory_space<vmem>>, vector<64x128xbf16>
    %26 = arith.extf %25 : vector<64x128xbf16> to vector<64x128xf32>
    %27 = vector.shape_cast %26 : vector<64x128xf32> to vector<8x8x128xf32>
    %cst_11 = arith.constant dense<0.000000e+00> : vector<8x128xf32>
    %28 = vector.multi_reduction <add>, %27, %cst_11 [0] : vector<8x8x128xf32> to vector<8x128xf32>
    %29 = arith.addf %21, %28 : vector<8x128xf32>
    %c3_i32 = arith.constant 3 : i32
    %c64_i32_12 = arith.constant 64 : i32
    %30 = arith.muli %c3_i32, %c64_i32_12 : i32
    %31 = tpu.assume_multiple %30, 64 : i32
    %32 = arith.index_cast %31 : i32 to index
    %c0_13 = arith.constant 0 : index
    %33 = vector.load %arg3[%32, %c0_13] : memref<256x128xbf16, #tpu.memory_space<vmem>>, vector<64x128xbf16>
    %34 = arith.extf %33 : vector<64x128xbf16> to vector<64x128xf32>
    %35 = vector.shape_cast %34 : vector<64x128xf32> to vector<8x8x128xf32>
    %cst_14 = arith.constant dense<0.000000e+00> : vector<8x128xf32>
    %36 = vector.multi_reduction <add>, %35, %cst_14 [0] : vector<8x8x128xf32> to vector<8x128xf32>
    %37 = arith.addf %29, %36 : vector<8x128xf32>
    %c4_i32 = arith.constant 4 : i32
    %38 = arith.addf %5, %37 : vector<8x128xf32>
    %c0_15 = arith.constant 0 : index
    %c0_16 = arith.constant 0 : index
    %c0_17 = arith.constant 0 : index
    %39 = vector.load %arg7[%c0_15, %c0_16, %c0_17] : memref<1x8x128xf32, #tpu.memory_space<vmem>>, vector<1x8x128xf32>
    %40 = vector.shape_cast %39 : vector<1x8x128xf32> to vector<8x128xf32>
    %41 = vector.shape_cast %38 : vector<8x128xf32> to vector<1x8x128xf32>
    tpu.vector_store %arg7[%c0_15, %c0_16, %c0_17], %41 {strides = array<i32>} : memref<1x8x128xf32, #tpu.memory_space<vmem>>, vector<1x8x128xf32>,
    %c0_i32_18 = arith.constant 0 : i32
    %c0_i32_19 = arith.constant 0 : i32
    %c64_i32_20 = arith.constant 64 : i32
    %42 = arith.muli %c0_i32_19, %c64_i32_20 : i32
    %43 = tpu.assume_multiple %42, 64 : i32
    %44 = arith.index_cast %c0_i32_18 : i32 to index
    %45 = arith.index_cast %43 : i32 to index
    %c0_21 = arith.constant 0 : index
    %46 = vector.load %arg2[%44, %45, %c0_21] : memref<3x256x128xbf16, #tpu.memory_space<vmem>>, vector<1x64x128xbf16>
    %47 = vector.shape_cast %46 : vector<1x64x128xbf16> to vector<64x128xbf16>
    %48 = arith.extf %47 : vector<64x128xbf16> to vector<64x128xf32>
    %c64_i32_22 = arith.constant 64 : i32
    %49 = arith.muli %c0_i32_19, %c64_i32_22 : i32
    %50 = tpu.assume_multiple %49, 64 : i32
    %51 = arith.index_cast %50 : i32 to index
    %c0_23 = arith.constant 0 : index
    %52 = vector.load %arg3[%51, %c0_23] : memref<256x128xbf16, #tpu.memory_space<vmem>>, vector<64x128xbf16>
    %53 = arith.extf %52 : vector<64x128xbf16> to vector<64x128xf32>
    %54 = math.absf %48 : vector<64x128xf32>
    %cst_24 = arith.constant 0.000000e+00 : f32
    %55 = vector.broadcast %cst_24 : f32 to vector<64x128xf32>
    %56 = arith.subf %55, %54 : vector<64x128xf32>
    %57 = math.exp %56 : vector<64x128xf32>
    %cst_25 = arith.constant 0.000000e+00 : f32
    %58 = vector.broadcast %cst_25 : f32 to vector<64x128xf32>
    %59 = arith.maximumf %48, %58 : vector<64x128xf32>
    %60 = arith.mulf %48, %53 : vector<64x128xf32>
    %61 = arith.subf %59, %60 : vector<64x128xf32>
    %62 = math.log1p %57 : vector<64x128xf32>
    %63 = arith.addf %61, %62 : vector<64x128xf32>
    %cst_26 = arith.constant 5.000000e-01 : f32
    %64 = vector.broadcast %cst_26 : f32 to vector<64x128xf32>
    %65 = arith.mulf %64, %48 : vector<64x128xf32>
    %66 = math.tanh %65 : vector<64x128xf32>
    %cst_27 = arith.constant 5.000000e-01 : f32
    %67 = vector.broadcast %cst_27 : f32 to vector<64x128xf32>
    %68 = arith.mulf %67, %66 : vector<64x128xf32>
    %cst_28 = arith.constant 5.000000e-01 : f32
    %69 = vector.broadcast %cst_28 : f32 to vector<64x128xf32>
    %70 = arith.addf %68, %69 : vector<64x128xf32>
    %71 = vector.shape_cast %63 : vector<64x128xf32> to vector<8x8x128xf32>
    %cst_29 = arith.constant dense<0.000000e+00> : vector<8x128xf32>
    %72 = vector.multi_reduction <add>, %71, %cst_29 [0] : vector<8x8x128xf32> to vector<8x128xf32>
    %73 = arith.addf %3, %72 : vector<8x128xf32>
    %74 = arith.mulf %70, %53 : vector<64x128xf32>
    %75 = vector.shape_cast %74 : vector<64x128xf32> to vector<8x8x128xf32>
    %cst_30 = arith.constant dense<0.000000e+00> : vector<8x128xf32>
    %76 = vector.multi_reduction <add>, %75, %cst_30 [0] : vector<8x8x128xf32> to vector<8x128xf32>
    %77 = arith.addf %3, %76 : vector<8x128xf32>
    %78 = vector.shape_cast %70 : vector<64x128xf32> to vector<8x8x128xf32>
    %cst_31 = arith.constant dense<0.000000e+00> : vector<8x128xf32>
    %79 = vector.multi_reduction <add>, %78, %cst_31 [0] : vector<8x8x128xf32> to vector<8x128xf32>
    %80 = arith.addf %3, %79 : vector<8x128xf32>
    %c1_i32_32 = arith.constant 1 : i32
    %c64_i32_33 = arith.constant 64 : i32
    %81 = arith.muli %c1_i32_32, %c64_i32_33 : i32
    %82 = tpu.assume_multiple %81, 64 : i32
    %83 = arith.index_cast %c0_i32_18 : i32 to index
    %84 = arith.index_cast %82 : i32 to index
    %c0_34 = arith.constant 0 : index
    %85 = vector.load %arg2[%83, %84, %c0_34] : memref<3x256x128xbf16, #tpu.memory_space<vmem>>, vector<1x64x128xbf16>
    %86 = vector.shape_cast %85 : vector<1x64x128xbf16> to vector<64x128xbf16>
    %87 = arith.extf %86 : vector<64x128xbf16> to vector<64x128xf32>
    %c64_i32_35 = arith.constant 64 : i32
    %88 = arith.muli %c1_i32_32, %c64_i32_35 : i32
    %89 = tpu.assume_multiple %88, 64 : i32
    %90 = arith.index_cast %89 : i32 to index
    %c0_36 = arith.constant 0 : index
    %91 = vector.load %arg3[%90, %c0_36] : memref<256x128xbf16, #tpu.memory_space<vmem>>, vector<64x128xbf16>
    %92 = arith.extf %91 : vector<64x128xbf16> to vector<64x128xf32>
    %93 = math.absf %87 : vector<64x128xf32>
    %cst_37 = arith.constant 0.000000e+00 : f32
    %94 = vector.broadcast %cst_37 : f32 to vector<64x128xf32>
    %95 = arith.subf %94, %93 : vector<64x128xf32>
    %96 = math.exp %95 : vector<64x128xf32>
    %cst_38 = arith.constant 0.000000e+00 : f32
    %97 = vector.broadcast %cst_38 : f32 to vector<64x128xf32>
    %98 = arith.maximumf %87, %97 : vector<64x128xf32>
    %99 = arith.mulf %87, %92 : vector<64x128xf32>
    %100 = arith.subf %98, %99 : vector<64x128xf32>
    %101 = math.log1p %96 : vector<64x128xf32>
    %102 = arith.addf %100, %101 : vector<64x128xf32>
    %cst_39 = arith.constant 5.000000e-01 : f32
    %103 = vector.broadcast %cst_39 : f32 to vector<64x128xf32>
    %104 = arith.mulf %103, %87 : vector<64x128xf32>
    %105 = math.tanh %104 : vector<64x128xf32>
    %cst_40 = arith.constant 5.000000e-01 : f32
    %106 = vector.broadcast %cst_40 : f32 to vector<64x128xf32>
    %107 = arith.mulf %106, %105 : vector<64x128xf32>
    %cst_41 = arith.constant 5.000000e-01 : f32
    %108 = vector.broadcast %cst_41 : f32 to vector<64x128xf32>
    %109 = arith.addf %107, %108 : vector<64x128xf32>
    %110 = vector.shape_cast %102 : vector<64x128xf32> to vector<8x8x128xf32>
    %cst_42 = arith.constant dense<0.000000e+00> : vector<8x128xf32>
    %111 = vector.multi_reduction <add>, %110, %cst_42 [0] : vector<8x8x128xf32> to vector<8x128xf32>
    %112 = arith.addf %73, %111 : vector<8x128xf32>
    %113 = arith.mulf %109, %92 : vector<64x128xf32>
    %114 = vector.shape_cast %113 : vector<64x128xf32> to vector<8x8x128xf32>
    %cst_43 = arith.constant dense<0.000000e+00> : vector<8x128xf32>
    %115 = vector.multi_reduction <add>, %114, %cst_43 [0] : vector<8x8x128xf32> to vector<8x128xf32>
    %116 = arith.addf %77, %115 : vector<8x128xf32>
    %117 = vector.shape_cast %109 : vector<64x128xf32> to vector<8x8x128xf32>
    %cst_44 = arith.constant dense<0.000000e+00> : vector<8x128xf32>
    %118 = vector.multi_reduction <add>, %117, %cst_44 [0] : vector<8x8x128xf32> to vector<8x128xf32>
    %119 = arith.addf %80, %118 : vector<8x128xf32>
    %c2_i32_45 = arith.constant 2 : i32
    %c64_i32_46 = arith.constant 64 : i32
    %120 = arith.muli %c2_i32_45, %c64_i32_46 : i32
    %121 = tpu.assume_multiple %120, 64 : i32
    %122 = arith.index_cast %c0_i32_18 : i32 to index
    %123 = arith.index_cast %121 : i32 to index
    %c0_47 = arith.constant 0 : index
    %124 = vector.load %arg2[%122, %123, %c0_47] : memref<3x256x128xbf16, #tpu.memory_space<vmem>>, vector<1x64x128xbf16>
    %125 = vector.shape_cast %124 : vector<1x64x128xbf16> to vector<64x128xbf16>
    %126 = arith.extf %125 : vector<64x128xbf16> to vector<64x128xf32>
    %c64_i32_48 = arith.constant 64 : i32
    %127 = arith.muli %c2_i32_45, %c64_i32_48 : i32
    %128 = tpu.assume_multiple %127, 64 : i32
    %129 = arith.index_cast %128 : i32 to index
    %c0_49 = arith.constant 0 : index
    %130 = vector.load %arg3[%129, %c0_49] : memref<256x128xbf16, #tpu.memory_space<vmem>>, vector<64x128xbf16>
    %131 = arith.extf %130 : vector<64x128xbf16> to vector<64x128xf32>
    %132 = math.absf %126 : vector<64x128xf32>
    %cst_50 = arith.constant 0.000000e+00 : f32
    %133 = vector.broadcast %cst_50 : f32 to vector<64x128xf32>
    %134 = arith.subf %133, %132 : vector<64x128xf32>
    %135 = math.exp %134 : vector<64x128xf32>
    %cst_51 = arith.constant 0.000000e+00 : f32
    %136 = vector.broadcast %cst_51 : f32 to vector<64x128xf32>
    %137 = arith.maximumf %126, %136 : vector<64x128xf32>
    %138 = arith.mulf %126, %131 : vector<64x128xf32>
    %139 = arith.subf %137, %138 : vector<64x128xf32>
    %140 = math.log1p %135 : vector<64x128xf32>
    %141 = arith.addf %139, %140 : vector<64x128xf32>
    %cst_52 = arith.constant 5.000000e-01 : f32
    %142 = vector.broadcast %cst_52 : f32 to vector<64x128xf32>
    %143 = arith.mulf %142, %126 : vector<64x128xf32>
    %144 = math.tanh %143 : vector<64x128xf32>
    %cst_53 = arith.constant 5.000000e-01 : f32
    %145 = vector.broadcast %cst_53 : f32 to vector<64x128xf32>
    %146 = arith.mulf %145, %144 : vector<64x128xf32>
    %cst_54 = arith.constant 5.000000e-01 : f32
    %147 = vector.broadcast %cst_54 : f32 to vector<64x128xf32>
    %148 = arith.addf %146, %147 : vector<64x128xf32>
    %149 = vector.shape_cast %141 : vector<64x128xf32> to vector<8x8x128xf32>
    %cst_55 = arith.constant dense<0.000000e+00> : vector<8x128xf32>
    %150 = vector.multi_reduction <add>, %149, %cst_55 [0] : vector<8x8x128xf32> to vector<8x128xf32>
    %151 = arith.addf %112, %150 : vector<8x128xf32>
    %152 = arith.mulf %148, %131 : vector<64x128xf32>
    %153 = vector.shape_cast %152 : vector<64x128xf32> to vector<8x8x128xf32>
    %cst_56 = arith.constant dense<0.000000e+00> : vector<8x128xf32>
    %154 = vector.multi_reduction <add>, %153, %cst_56 [0] : vector<8x8x128xf32> to vector<8x128xf32>
    %155 = arith.addf %116, %154 : vector<8x128xf32>
    %156 = vector.shape_cast %148 : vector<64x128xf32> to vector<8x8x128xf32>
    %cst_57 = arith.constant dense<0.000000e+00> : vector<8x128xf32>
    %157 = vector.multi_reduction <add>, %156, %cst_57 [0] : vector<8x8x128xf32> to vector<8x128xf32>
    %158 = arith.addf %119, %157 : vector<8x128xf32>
    %c3_i32_58 = arith.constant 3 : i32
    %c64_i32_59 = arith.constant 64 : i32
    %159 = arith.muli %c3_i32_58, %c64_i32_59 : i32
    %160 = tpu.assume_multiple %159, 64 : i32
    %161 = arith.index_cast %c0_i32_18 : i32 to index
    %162 = arith.index_cast %160 : i32 to index
    %c0_60 = arith.constant 0 : index
    %163 = vector.load %arg2[%161, %162, %c0_60] : memref<3x256x128xbf16, #tpu.memory_space<vmem>>, vector<1x64x128xbf16>
    %164 = vector.shape_cast %163 : vector<1x64x128xbf16> to vector<64x128xbf16>
    %165 = arith.extf %164 : vector<64x128xbf16> to vector<64x128xf32>
    %c64_i32_61 = arith.constant 64 : i32
    %166 = arith.muli %c3_i32_58, %c64_i32_61 : i32
    %167 = tpu.assume_multiple %166, 64 : i32
    %168 = arith.index_cast %167 : i32 to index
    %c0_62 = arith.constant 0 : index
    %169 = vector.load %arg3[%168, %c0_62] : memref<256x128xbf16, #tpu.memory_space<vmem>>, vector<64x128xbf16>
    %170 = arith.extf %169 : vector<64x128xbf16> to vector<64x128xf32>
    %171 = math.absf %165 : vector<64x128xf32>
    %cst_63 = arith.constant 0.000000e+00 : f32
    %172 = vector.broadcast %cst_63 : f32 to vector<64x128xf32>
    %173 = arith.subf %172, %171 : vector<64x128xf32>
    %174 = math.exp %173 : vector<64x128xf32>
    %cst_64 = arith.constant 0.000000e+00 : f32
    %175 = vector.broadcast %cst_64 : f32 to vector<64x128xf32>
    %176 = arith.maximumf %165, %175 : vector<64x128xf32>
    %177 = arith.mulf %165, %170 : vector<64x128xf32>
    %178 = arith.subf %176, %177 : vector<64x128xf32>
    %179 = math.log1p %174 : vector<64x128xf32>
    %180 = arith.addf %178, %179 : vector<64x128xf32>
    %cst_65 = arith.constant 5.000000e-01 : f32
    %181 = vector.broadcast %cst_65 : f32 to vector<64x128xf32>
    %182 = arith.mulf %181, %165 : vector<64x128xf32>
    %183 = math.tanh %182 : vector<64x128xf32>
    %cst_66 = arith.constant 5.000000e-01 : f32
    %184 = vector.broadcast %cst_66 : f32 to vector<64x128xf32>
    %185 = arith.mulf %184, %183 : vector<64x128xf32>
    %cst_67 = arith.constant 5.000000e-01 : f32
    %186 = vector.broadcast %cst_67 : f32 to vector<64x128xf32>
    %187 = arith.addf %185, %186 : vector<64x128xf32>
    %188 = vector.shape_cast %180 : vector<64x128xf32> to vector<8x8x128xf32>
    %cst_68 = arith.constant dense<0.000000e+00> : vector<8x128xf32>
    %189 = vector.multi_reduction <add>, %188, %cst_68 [0] : vector<8x8x128xf32> to vector<8x128xf32>
    %190 = arith.addf %151, %189 : vector<8x128xf32>
    %191 = arith.mulf %187, %170 : vector<64x128xf32>
    %192 = vector.shape_cast %191 : vector<64x128xf32> to vector<8x8x128xf32>
    %cst_69 = arith.constant dense<0.000000e+00> : vector<8x128xf32>
    %193 = vector.multi_reduction <add>, %192, %cst_69 [0] : vector<8x8x128xf32> to vector<8x128xf32>
    %194 = arith.addf %155, %193 : vector<8x128xf32>
    %195 = vector.shape_cast %187 : vector<64x128xf32> to vector<8x8x128xf32>
    %cst_70 = arith.constant dense<0.000000e+00> : vector<8x128xf32>
    %196 = vector.multi_reduction <add>, %195, %cst_70 [0] : vector<8x8x128xf32> to vector<8x128xf32>
    %197 = arith.addf %158, %196 : vector<8x128xf32>
    %c4_i32_71 = arith.constant 4 : i32
    %c0_72 = arith.constant 0 : index
    %198 = arith.index_cast %c0_i32_18 : i32 to index
    %c0_73 = arith.constant 0 : index
    %c0_74 = arith.constant 0 : index
    %199 = vector.load %arg4[%c0_72, %198, %c0_73, %c0_74] : memref<1x3x8x128xf32, #tpu.memory_space<vmem>>, vector<1x1x8x128xf32>
    %200 = vector.shape_cast %199 : vector<1x1x8x128xf32> to vector<8x128xf32>
    %201 = arith.addf %200, %190 : vector<8x128xf32>
    %c0_75 = arith.constant 0 : index
    %202 = arith.index_cast %c0_i32_18 : i32 to index
    %c0_76 = arith.constant 0 : index
    %c0_77 = arith.constant 0 : index
    %203 = vector.load %arg4[%c0_75, %202, %c0_76, %c0_77] : memref<1x3x8x128xf32, #tpu.memory_space<vmem>>, vector<1x1x8x128xf32>
    %204 = vector.shape_cast %203 : vector<1x1x8x128xf32> to vector<8x128xf32>
    %205 = vector.shape_cast %201 : vector<8x128xf32> to vector<1x1x8x128xf32>
    tpu.vector_store %arg4[%c0_75, %202, %c0_76, %c0_77], %205 {strides = array<i32>} : memref<1x3x8x128xf32, #tpu.memory_space<vmem>>, vector<1x1x8x128xf32>,
    %c0_78 = arith.constant 0 : index
    %206 = arith.index_cast %c0_i32_18 : i32 to index
    %c0_79 = arith.constant 0 : index
    %c0_80 = arith.constant 0 : index
    %207 = vector.load %arg5[%c0_78, %206, %c0_79, %c0_80] : memref<1x3x8x128xf32, #tpu.memory_space<vmem>>, vector<1x1x8x128xf32>
    %208 = vector.shape_cast %207 : vector<1x1x8x128xf32> to vector<8x128xf32>
    %209 = arith.addf %208, %194 : vector<8x128xf32>
    %c0_81 = arith.constant 0 : index
    %210 = arith.index_cast %c0_i32_18 : i32 to index
    %c0_82 = arith.constant 0 : index
    %c0_83 = arith.constant 0 : index
    %211 = vector.load %arg5[%c0_81, %210, %c0_82, %c0_83] : memref<1x3x8x128xf32, #tpu.memory_space<vmem>>, vector<1x1x8x128xf32>
    %212 = vector.shape_cast %211 : vector<1x1x8x128xf32> to vector<8x128xf32>
    %213 = vector.shape_cast %209 : vector<8x128xf32> to vector<1x1x8x128xf32>
    tpu.vector_store %arg5[%c0_81, %210, %c0_82, %c0_83], %213 {strides = array<i32>} : memref<1x3x8x128xf32, #tpu.memory_space<vmem>>, vector<1x1x8x128xf32>,
    %c0_84 = arith.constant 0 : index
    %214 = arith.index_cast %c0_i32_18 : i32 to index
    %c0_85 = arith.constant 0 : index
    %c0_86 = arith.constant 0 : index
    %215 = vector.load %arg6[%c0_84, %214, %c0_85, %c0_86] : memref<1x3x8x128xf32, #tpu.memory_space<vmem>>, vector<1x1x8x128xf32>
    %216 = vector.shape_cast %215 : vector<1x1x8x128xf32> to vector<8x128xf32>
    %217 = arith.addf %216, %197 : vector<8x128xf32>
    %c0_87 = arith.constant 0 : index
    %218 = arith.index_cast %c0_i32_18 : i32 to index
    %c0_88 = arith.constant 0 : index
    %c0_89 = arith.constant 0 : index
    %219 = vector.load %arg6[%c0_87, %218, %c0_88, %c0_89] : memref<1x3x8x128xf32, #tpu.memory_space<vmem>>, vector<1x1x8x128xf32>
    %220 = vector.shape_cast %219 : vector<1x1x8x128xf32> to vector<8x128xf32>
    %221 = vector.shape_cast %217 : vector<8x128xf32> to vector<1x1x8x128xf32>
    tpu.vector_store %arg6[%c0_87, %218, %c0_88, %c0_89], %221 {strides = array<i32>} : memref<1x3x8x128xf32, #tpu.memory_space<vmem>>, vector<1x1x8x128xf32>,
    %c1_i32_90 = arith.constant 1 : i32
    %c0_i32_91 = arith.constant 0 : i32
    %c64_i32_92 = arith.constant 64 : i32
    %222 = arith.muli %c0_i32_91, %c64_i32_92 : i32
    %223 = tpu.assume_multiple %222, 64 : i32
    %224 = arith.index_cast %c1_i32_90 : i32 to index
    %225 = arith.index_cast %223 : i32 to index
    %c0_93 = arith.constant 0 : index
    %226 = vector.load %arg2[%224, %225, %c0_93] : memref<3x256x128xbf16, #tpu.memory_space<vmem>>, vector<1x64x128xbf16>
    %227 = vector.shape_cast %226 : vector<1x64x128xbf16> to vector<64x128xbf16>
    %228 = arith.extf %227 : vector<64x128xbf16> to vector<64x128xf32>
    %c64_i32_94 = arith.constant 64 : i32
    %229 = arith.muli %c0_i32_91, %c64_i32_94 : i32
    %230 = tpu.assume_multiple %229, 64 : i32
    %231 = arith.index_cast %230 : i32 to index
    %c0_95 = arith.constant 0 : index
    %232 = vector.load %arg3[%231, %c0_95] : memref<256x128xbf16, #tpu.memory_space<vmem>>, vector<64x128xbf16>
    %233 = arith.extf %232 : vector<64x128xbf16> to vector<64x128xf32>
    %234 = math.absf %228 : vector<64x128xf32>
    %cst_96 = arith.constant 0.000000e+00 : f32
    %235 = vector.broadcast %cst_96 : f32 to vector<64x128xf32>
    %236 = arith.subf %235, %234 : vector<64x128xf32>
    %237 = math.exp %236 : vector<64x128xf32>
    %cst_97 = arith.constant 0.000000e+00 : f32
    %238 = vector.broadcast %cst_97 : f32 to vector<64x128xf32>
    %239 = arith.maximumf %228, %238 : vector<64x128xf32>
    %240 = arith.mulf %228, %233 : vector<64x128xf32>
    %241 = arith.subf %239, %240 : vector<64x128xf32>
    %242 = math.log1p %237 : vector<64x128xf32>
    %243 = arith.addf %241, %242 : vector<64x128xf32>
    %cst_98 = arith.constant 5.000000e-01 : f32
    %244 = vector.broadcast %cst_98 : f32 to vector<64x128xf32>
    %245 = arith.mulf %244, %228 : vector<64x128xf32>
    %246 = math.tanh %245 : vector<64x128xf32>
    %cst_99 = arith.constant 5.000000e-01 : f32
    %247 = vector.broadcast %cst_99 : f32 to vector<64x128xf32>
    %248 = arith.mulf %247, %246 : vector<64x128xf32>
    %cst_100 = arith.constant 5.000000e-01 : f32
    %249 = vector.broadcast %cst_100 : f32 to vector<64x128xf32>
    %250 = arith.addf %248, %249 : vector<64x128xf32>
    %251 = vector.shape_cast %243 : vector<64x128xf32> to vector<8x8x128xf32>
    %cst_101 = arith.constant dense<0.000000e+00> : vector<8x128xf32>
    %252 = vector.multi_reduction <add>, %251, %cst_101 [0] : vector<8x8x128xf32> to vector<8x128xf32>
    %253 = arith.addf %3, %252 : vector<8x128xf32>
    %254 = arith.mulf %250, %233 : vector<64x128xf32>
    %255 = vector.shape_cast %254 : vector<64x128xf32> to vector<8x8x128xf32>
    %cst_102 = arith.constant dense<0.000000e+00> : vector<8x128xf32>
    %256 = vector.multi_reduction <add>, %255, %cst_102 [0] : vector<8x8x128xf32> to vector<8x128xf32>
    %257 = arith.addf %3, %256 : vector<8x128xf32>
    %258 = vector.shape_cast %250 : vector<64x128xf32> to vector<8x8x128xf32>
    %cst_103 = arith.constant dense<0.000000e+00> : vector<8x128xf32>
    %259 = vector.multi_reduction <add>, %258, %cst_103 [0] : vector<8x8x128xf32> to vector<8x128xf32>
    %260 = arith.addf %3, %259 : vector<8x128xf32>
    %c1_i32_104 = arith.constant 1 : i32
    %c64_i32_105 = arith.constant 64 : i32
    %261 = arith.muli %c1_i32_104, %c64_i32_105 : i32
    %262 = tpu.assume_multiple %261, 64 : i32
    %263 = arith.index_cast %c1_i32_90 : i32 to index
    %264 = arith.index_cast %262 : i32 to index
    %c0_106 = arith.constant 0 : index
    %265 = vector.load %arg2[%263, %264, %c0_106] : memref<3x256x128xbf16, #tpu.memory_space<vmem>>, vector<1x64x128xbf16>
    %266 = vector.shape_cast %265 : vector<1x64x128xbf16> to vector<64x128xbf16>
    %267 = arith.extf %266 : vector<64x128xbf16> to vector<64x128xf32>
    %c64_i32_107 = arith.constant 64 : i32
    %268 = arith.muli %c1_i32_104, %c64_i32_107 : i32
    %269 = tpu.assume_multiple %268, 64 : i32
    %270 = arith.index_cast %269 : i32 to index
    %c0_108 = arith.constant 0 : index
    %271 = vector.load %arg3[%270, %c0_108] : memref<256x128xbf16, #tpu.memory_space<vmem>>, vector<64x128xbf16>
    %272 = arith.extf %271 : vector<64x128xbf16> to vector<64x128xf32>
    %273 = math.absf %267 : vector<64x128xf32>
    %cst_109 = arith.constant 0.000000e+00 : f32
    %274 = vector.broadcast %cst_109 : f32 to vector<64x128xf32>
    %275 = arith.subf %274, %273 : vector<64x128xf32>
    %276 = math.exp %275 : vector<64x128xf32>
    %cst_110 = arith.constant 0.000000e+00 : f32
    %277 = vector.broadcast %cst_110 : f32 to vector<64x128xf32>
    %278 = arith.maximumf %267, %277 : vector<64x128xf32>
    %279 = arith.mulf %267, %272 : vector<64x128xf32>
    %280 = arith.subf %278, %279 : vector<64x128xf32>
    %281 = math.log1p %276 : vector<64x128xf32>
    %282 = arith.addf %280, %281 : vector<64x128xf32>
    %cst_111 = arith.constant 5.000000e-01 : f32
    %283 = vector.broadcast %cst_111 : f32 to vector<64x128xf32>
    %284 = arith.mulf %283, %267 : vector<64x128xf32>
    %285 = math.tanh %284 : vector<64x128xf32>
    %cst_112 = arith.constant 5.000000e-01 : f32
    %286 = vector.broadcast %cst_112 : f32 to vector<64x128xf32>
    %287 = arith.mulf %286, %285 : vector<64x128xf32>
    %cst_113 = arith.constant 5.000000e-01 : f32
    %288 = vector.broadcast %cst_113 : f32 to vector<64x128xf32>
    %289 = arith.addf %287, %288 : vector<64x128xf32>
    %290 = vector.shape_cast %282 : vector<64x128xf32> to vector<8x8x128xf32>
    %cst_114 = arith.constant dense<0.000000e+00> : vector<8x128xf32>
    %291 = vector.multi_reduction <add>, %290, %cst_114 [0] : vector<8x8x128xf32> to vector<8x128xf32>
    %292 = arith.addf %253, %291 : vector<8x128xf32>
    %293 = arith.mulf %289, %272 : vector<64x128xf32>
    %294 = vector.shape_cast %293 : vector<64x128xf32> to vector<8x8x128xf32>
    %cst_115 = arith.constant dense<0.000000e+00> : vector<8x128xf32>
    %295 = vector.multi_reduction <add>, %294, %cst_115 [0] : vector<8x8x128xf32> to vector<8x128xf32>
    %296 = arith.addf %257, %295 : vector<8x128xf32>
    %297 = vector.shape_cast %289 : vector<64x128xf32> to vector<8x8x128xf32>
    %cst_116 = arith.constant dense<0.000000e+00> : vector<8x128xf32>
    %298 = vector.multi_reduction <add>, %297, %cst_116 [0] : vector<8x8x128xf32> to vector<8x128xf32>
    %299 = arith.addf %260, %298 : vector<8x128xf32>
    %c2_i32_117 = arith.constant 2 : i32
    %c64_i32_118 = arith.constant 64 : i32
    %300 = arith.muli %c2_i32_117, %c64_i32_118 : i32
    %301 = tpu.assume_multiple %300, 64 : i32
    %302 = arith.index_cast %c1_i32_90 : i32 to index
    %303 = arith.index_cast %301 : i32 to index
    %c0_119 = arith.constant 0 : index
    %304 = vector.load %arg2[%302, %303, %c0_119] : memref<3x256x128xbf16, #tpu.memory_space<vmem>>, vector<1x64x128xbf16>
    %305 = vector.shape_cast %304 : vector<1x64x128xbf16> to vector<64x128xbf16>
    %306 = arith.extf %305 : vector<64x128xbf16> to vector<64x128xf32>
    %c64_i32_120 = arith.constant 64 : i32
    %307 = arith.muli %c2_i32_117, %c64_i32_120 : i32
    %308 = tpu.assume_multiple %307, 64 : i32
    %309 = arith.index_cast %308 : i32 to index
    %c0_121 = arith.constant 0 : index
    %310 = vector.load %arg3[%309, %c0_121] : memref<256x128xbf16, #tpu.memory_space<vmem>>, vector<64x128xbf16>
    %311 = arith.extf %310 : vector<64x128xbf16> to vector<64x128xf32>
    %312 = math.absf %306 : vector<64x128xf32>
    %cst_122 = arith.constant 0.000000e+00 : f32
    %313 = vector.broadcast %cst_122 : f32 to vector<64x128xf32>
    %314 = arith.subf %313, %312 : vector<64x128xf32>
    %315 = math.exp %314 : vector<64x128xf32>
    %cst_123 = arith.constant 0.000000e+00 : f32
    %316 = vector.broadcast %cst_123 : f32 to vector<64x128xf32>
    %317 = arith.maximumf %306, %316 : vector<64x128xf32>
    %318 = arith.mulf %306, %311 : vector<64x128xf32>
    %319 = arith.subf %317, %318 : vector<64x128xf32>
    %320 = math.log1p %315 : vector<64x128xf32>
    %321 = arith.addf %319, %320 : vector<64x128xf32>
    %cst_124 = arith.constant 5.000000e-01 : f32
    %322 = vector.broadcast %cst_124 : f32 to vector<64x128xf32>
    %323 = arith.mulf %322, %306 : vector<64x128xf32>
    %324 = math.tanh %323 : vector<64x128xf32>
    %cst_125 = arith.constant 5.000000e-01 : f32
    %325 = vector.broadcast %cst_125 : f32 to vector<64x128xf32>
    %326 = arith.mulf %325, %324 : vector<64x128xf32>
    %cst_126 = arith.constant 5.000000e-01 : f32
    %327 = vector.broadcast %cst_126 : f32 to vector<64x128xf32>
    %328 = arith.addf %326, %327 : vector<64x128xf32>
    %329 = vector.shape_cast %321 : vector<64x128xf32> to vector<8x8x128xf32>
    %cst_127 = arith.constant dense<0.000000e+00> : vector<8x128xf32>
    %330 = vector.multi_reduction <add>, %329, %cst_127 [0] : vector<8x8x128xf32> to vector<8x128xf32>
    %331 = arith.addf %292, %330 : vector<8x128xf32>
    %332 = arith.mulf %328, %311 : vector<64x128xf32>
    %333 = vector.shape_cast %332 : vector<64x128xf32> to vector<8x8x128xf32>
    %cst_128 = arith.constant dense<0.000000e+00> : vector<8x128xf32>
    %334 = vector.multi_reduction <add>, %333, %cst_128 [0] : vector<8x8x128xf32> to vector<8x128xf32>
    %335 = arith.addf %296, %334 : vector<8x128xf32>
    %336 = vector.shape_cast %328 : vector<64x128xf32> to vector<8x8x128xf32>
    %cst_129 = arith.constant dense<0.000000e+00> : vector<8x128xf32>
    %337 = vector.multi_reduction <add>, %336, %cst_129 [0] : vector<8x8x128xf32> to vector<8x128xf32>
    %338 = arith.addf %299, %337 : vector<8x128xf32>
    %c3_i32_130 = arith.constant 3 : i32
    %c64_i32_131 = arith.constant 64 : i32
    %339 = arith.muli %c3_i32_130, %c64_i32_131 : i32
    %340 = tpu.assume_multiple %339, 64 : i32
    %341 = arith.index_cast %c1_i32_90 : i32 to index
    %342 = arith.index_cast %340 : i32 to index
    %c0_132 = arith.constant 0 : index
    %343 = vector.load %arg2[%341, %342, %c0_132] : memref<3x256x128xbf16, #tpu.memory_space<vmem>>, vector<1x64x128xbf16>
    %344 = vector.shape_cast %343 : vector<1x64x128xbf16> to vector<64x128xbf16>
    %345 = arith.extf %344 : vector<64x128xbf16> to vector<64x128xf32>
    %c64_i32_133 = arith.constant 64 : i32
    %346 = arith.muli %c3_i32_130, %c64_i32_133 : i32
    %347 = tpu.assume_multiple %346, 64 : i32
    %348 = arith.index_cast %347 : i32 to index
    %c0_134 = arith.constant 0 : index
    %349 = vector.load %arg3[%348, %c0_134] : memref<256x128xbf16, #tpu.memory_space<vmem>>, vector<64x128xbf16>
    %350 = arith.extf %349 : vector<64x128xbf16> to vector<64x128xf32>
    %351 = math.absf %345 : vector<64x128xf32>
    %cst_135 = arith.constant 0.000000e+00 : f32
    %352 = vector.broadcast %cst_135 : f32 to vector<64x128xf32>
    %353 = arith.subf %352, %351 : vector<64x128xf32>
    %354 = math.exp %353 : vector<64x128xf32>
    %cst_136 = arith.constant 0.000000e+00 : f32
    %355 = vector.broadcast %cst_136 : f32 to vector<64x128xf32>
    %356 = arith.maximumf %345, %355 : vector<64x128xf32>
    %357 = arith.mulf %345, %350 : vector<64x128xf32>
    %358 = arith.subf %356, %357 : vector<64x128xf32>
    %359 = math.log1p %354 : vector<64x128xf32>
    %360 = arith.addf %358, %359 : vector<64x128xf32>
    %cst_137 = arith.constant 5.000000e-01 : f32
    %361 = vector.broadcast %cst_137 : f32 to vector<64x128xf32>
    %362 = arith.mulf %361, %345 : vector<64x128xf32>
    %363 = math.tanh %362 : vector<64x128xf32>
    %cst_138 = arith.constant 5.000000e-01 : f32
    %364 = vector.broadcast %cst_138 : f32 to vector<64x128xf32>
    %365 = arith.mulf %364, %363 : vector<64x128xf32>
    %cst_139 = arith.constant 5.000000e-01 : f32
    %366 = vector.broadcast %cst_139 : f32 to vector<64x128xf32>
    %367 = arith.addf %365, %366 : vector<64x128xf32>
    %368 = vector.shape_cast %360 : vector<64x128xf32> to vector<8x8x128xf32>
    %cst_140 = arith.constant dense<0.000000e+00> : vector<8x128xf32>
    %369 = vector.multi_reduction <add>, %368, %cst_140 [0] : vector<8x8x128xf32> to vector<8x128xf32>
    %370 = arith.addf %331, %369 : vector<8x128xf32>
    %371 = arith.mulf %367, %350 : vector<64x128xf32>
    %372 = vector.shape_cast %371 : vector<64x128xf32> to vector<8x8x128xf32>
    %cst_141 = arith.constant dense<0.000000e+00> : vector<8x128xf32>
    %373 = vector.multi_reduction <add>, %372, %cst_141 [0] : vector<8x8x128xf32> to vector<8x128xf32>
    %374 = arith.addf %335, %373 : vector<8x128xf32>
    %375 = vector.shape_cast %367 : vector<64x128xf32> to vector<8x8x128xf32>
    %cst_142 = arith.constant dense<0.000000e+00> : vector<8x128xf32>
    %376 = vector.multi_reduction <add>, %375, %cst_142 [0] : vector<8x8x128xf32> to vector<8x128xf32>
    %377 = arith.addf %338, %376 : vector<8x128xf32>
    %c4_i32_143 = arith.constant 4 : i32
    %c0_144 = arith.constant 0 : index
    %378 = arith.index_cast %c1_i32_90 : i32 to index
    %c0_145 = arith.constant 0 : index
    %c0_146 = arith.constant 0 : index
    %379 = vector.load %arg4[%c0_144, %378, %c0_145, %c0_146] : memref<1x3x8x128xf32, #tpu.memory_space<vmem>>, vector<1x1x8x128xf32>
    %380 = vector.shape_cast %379 : vector<1x1x8x128xf32> to vector<8x128xf32>
    %381 = arith.addf %380, %370 : vector<8x128xf32>
    %c0_147 = arith.constant 0 : index
    %382 = arith.index_cast %c1_i32_90 : i32 to index
    %c0_148 = arith.constant 0 : index
    %c0_149 = arith.constant 0 : index
    %383 = vector.load %arg4[%c0_147, %382, %c0_148, %c0_149] : memref<1x3x8x128xf32, #tpu.memory_space<vmem>>, vector<1x1x8x128xf32>
    %384 = vector.shape_cast %383 : vector<1x1x8x128xf32> to vector<8x128xf32>
    %385 = vector.shape_cast %381 : vector<8x128xf32> to vector<1x1x8x128xf32>
    tpu.vector_store %arg4[%c0_147, %382, %c0_148, %c0_149], %385 {strides = array<i32>} : memref<1x3x8x128xf32, #tpu.memory_space<vmem>>, vector<1x1x8x128xf32>,
    %c0_150 = arith.constant 0 : index
    %386 = arith.index_cast %c1_i32_90 : i32 to index
    %c0_151 = arith.constant 0 : index
    %c0_152 = arith.constant 0 : index
    %387 = vector.load %arg5[%c0_150, %386, %c0_151, %c0_152] : memref<1x3x8x128xf32, #tpu.memory_space<vmem>>, vector<1x1x8x128xf32>
    %388 = vector.shape_cast %387 : vector<1x1x8x128xf32> to vector<8x128xf32>
    %389 = arith.addf %388, %374 : vector<8x128xf32>
    %c0_153 = arith.constant 0 : index
    %390 = arith.index_cast %c1_i32_90 : i32 to index
    %c0_154 = arith.constant 0 : index
    %c0_155 = arith.constant 0 : index
    %391 = vector.load %arg5[%c0_153, %390, %c0_154, %c0_155] : memref<1x3x8x128xf32, #tpu.memory_space<vmem>>, vector<1x1x8x128xf32>
    %392 = vector.shape_cast %391 : vector<1x1x8x128xf32> to vector<8x128xf32>
    %393 = vector.shape_cast %389 : vector<8x128xf32> to vector<1x1x8x128xf32>
    tpu.vector_store %arg5[%c0_153, %390, %c0_154, %c0_155], %393 {strides = array<i32>} : memref<1x3x8x128xf32, #tpu.memory_space<vmem>>, vector<1x1x8x128xf32>,
    %c0_156 = arith.constant 0 : index
    %394 = arith.index_cast %c1_i32_90 : i32 to index
    %c0_157 = arith.constant 0 : index
    %c0_158 = arith.constant 0 : index
    %395 = vector.load %arg6[%c0_156, %394, %c0_157, %c0_158] : memref<1x3x8x128xf32, #tpu.memory_space<vmem>>, vector<1x1x8x128xf32>
    %396 = vector.shape_cast %395 : vector<1x1x8x128xf32> to vector<8x128xf32>
    %397 = arith.addf %396, %377 : vector<8x128xf32>
    %c0_159 = arith.constant 0 : index
    %398 = arith.index_cast %c1_i32_90 : i32 to index
    %c0_160 = arith.constant 0 : index
    %c0_161 = arith.constant 0 : index
    %399 = vector.load %arg6[%c0_159, %398, %c0_160, %c0_161] : memref<1x3x8x128xf32, #tpu.memory_space<vmem>>, vector<1x1x8x128xf32>
    %400 = vector.shape_cast %399 : vector<1x1x8x128xf32> to vector<8x128xf32>
    %401 = vector.shape_cast %397 : vector<8x128xf32> to vector<1x1x8x128xf32>
    tpu.vector_store %arg6[%c0_159, %398, %c0_160, %c0_161], %401 {strides = array<i32>} : memref<1x3x8x128xf32, #tpu.memory_space<vmem>>, vector<1x1x8x128xf32>,
    %c2_i32_162 = arith.constant 2 : i32
    %c0_i32_163 = arith.constant 0 : i32
    %c64_i32_164 = arith.constant 64 : i32
    %402 = arith.muli %c0_i32_163, %c64_i32_164 : i32
    %403 = tpu.assume_multiple %402, 64 : i32
    %404 = arith.index_cast %c2_i32_162 : i32 to index
    %405 = arith.index_cast %403 : i32 to index
    %c0_165 = arith.constant 0 : index
    %406 = vector.load %arg2[%404, %405, %c0_165] : memref<3x256x128xbf16, #tpu.memory_space<vmem>>, vector<1x64x128xbf16>
    %407 = vector.shape_cast %406 : vector<1x64x128xbf16> to vector<64x128xbf16>
    %408 = arith.extf %407 : vector<64x128xbf16> to vector<64x128xf32>
    %c64_i32_166 = arith.constant 64 : i32
    %409 = arith.muli %c0_i32_163, %c64_i32_166 : i32
    %410 = tpu.assume_multiple %409, 64 : i32
    %411 = arith.index_cast %410 : i32 to index
    %c0_167 = arith.constant 0 : index
    %412 = vector.load %arg3[%411, %c0_167] : memref<256x128xbf16, #tpu.memory_space<vmem>>, vector<64x128xbf16>
    %413 = arith.extf %412 : vector<64x128xbf16> to vector<64x128xf32>
    %414 = math.absf %408 : vector<64x128xf32>
    %cst_168 = arith.constant 0.000000e+00 : f32
    %415 = vector.broadcast %cst_168 : f32 to vector<64x128xf32>
    %416 = arith.subf %415, %414 : vector<64x128xf32>
    %417 = math.exp %416 : vector<64x128xf32>
    %cst_169 = arith.constant 0.000000e+00 : f32
    %418 = vector.broadcast %cst_169 : f32 to vector<64x128xf32>
    %419 = arith.maximumf %408, %418 : vector<64x128xf32>
    %420 = arith.mulf %408, %413 : vector<64x128xf32>
    %421 = arith.subf %419, %420 : vector<64x128xf32>
    %422 = math.log1p %417 : vector<64x128xf32>
    %423 = arith.addf %421, %422 : vector<64x128xf32>
    %cst_170 = arith.constant 5.000000e-01 : f32
    %424 = vector.broadcast %cst_170 : f32 to vector<64x128xf32>
    %425 = arith.mulf %424, %408 : vector<64x128xf32>
    %426 = math.tanh %425 : vector<64x128xf32>
    %cst_171 = arith.constant 5.000000e-01 : f32
    %427 = vector.broadcast %cst_171 : f32 to vector<64x128xf32>
    %428 = arith.mulf %427, %426 : vector<64x128xf32>
    %cst_172 = arith.constant 5.000000e-01 : f32
    %429 = vector.broadcast %cst_172 : f32 to vector<64x128xf32>
    %430 = arith.addf %428, %429 : vector<64x128xf32>
    %431 = vector.shape_cast %423 : vector<64x128xf32> to vector<8x8x128xf32>
    %cst_173 = arith.constant dense<0.000000e+00> : vector<8x128xf32>
    %432 = vector.multi_reduction <add>, %431, %cst_173 [0] : vector<8x8x128xf32> to vector<8x128xf32>
    %433 = arith.addf %3, %432 : vector<8x128xf32>
    %434 = arith.mulf %430, %413 : vector<64x128xf32>
    %435 = vector.shape_cast %434 : vector<64x128xf32> to vector<8x8x128xf32>
    %cst_174 = arith.constant dense<0.000000e+00> : vector<8x128xf32>
    %436 = vector.multi_reduction <add>, %435, %cst_174 [0] : vector<8x8x128xf32> to vector<8x128xf32>
    %437 = arith.addf %3, %436 : vector<8x128xf32>
    %438 = vector.shape_cast %430 : vector<64x128xf32> to vector<8x8x128xf32>
    %cst_175 = arith.constant dense<0.000000e+00> : vector<8x128xf32>
    %439 = vector.multi_reduction <add>, %438, %cst_175 [0] : vector<8x8x128xf32> to vector<8x128xf32>
    %440 = arith.addf %3, %439 : vector<8x128xf32>
    %c1_i32_176 = arith.constant 1 : i32
    %c64_i32_177 = arith.constant 64 : i32
    %441 = arith.muli %c1_i32_176, %c64_i32_177 : i32
    %442 = tpu.assume_multiple %441, 64 : i32
    %443 = arith.index_cast %c2_i32_162 : i32 to index
    %444 = arith.index_cast %442 : i32 to index
    %c0_178 = arith.constant 0 : index
    %445 = vector.load %arg2[%443, %444, %c0_178] : memref<3x256x128xbf16, #tpu.memory_space<vmem>>, vector<1x64x128xbf16>
    %446 = vector.shape_cast %445 : vector<1x64x128xbf16> to vector<64x128xbf16>
    %447 = arith.extf %446 : vector<64x128xbf16> to vector<64x128xf32>
    %c64_i32_179 = arith.constant 64 : i32
    %448 = arith.muli %c1_i32_176, %c64_i32_179 : i32
    %449 = tpu.assume_multiple %448, 64 : i32
    %450 = arith.index_cast %449 : i32 to index
    %c0_180 = arith.constant 0 : index
    %451 = vector.load %arg3[%450, %c0_180] : memref<256x128xbf16, #tpu.memory_space<vmem>>, vector<64x128xbf16>
    %452 = arith.extf %451 : vector<64x128xbf16> to vector<64x128xf32>
    %453 = math.absf %447 : vector<64x128xf32>
    %cst_181 = arith.constant 0.000000e+00 : f32
    %454 = vector.broadcast %cst_181 : f32 to vector<64x128xf32>
    %455 = arith.subf %454, %453 : vector<64x128xf32>
    %456 = math.exp %455 : vector<64x128xf32>
    %cst_182 = arith.constant 0.000000e+00 : f32
    %457 = vector.broadcast %cst_182 : f32 to vector<64x128xf32>
    %458 = arith.maximumf %447, %457 : vector<64x128xf32>
    %459 = arith.mulf %447, %452 : vector<64x128xf32>
    %460 = arith.subf %458, %459 : vector<64x128xf32>
    %461 = math.log1p %456 : vector<64x128xf32>
    %462 = arith.addf %460, %461 : vector<64x128xf32>
    %cst_183 = arith.constant 5.000000e-01 : f32
    %463 = vector.broadcast %cst_183 : f32 to vector<64x128xf32>
    %464 = arith.mulf %463, %447 : vector<64x128xf32>
    %465 = math.tanh %464 : vector<64x128xf32>
    %cst_184 = arith.constant 5.000000e-01 : f32
    %466 = vector.broadcast %cst_184 : f32 to vector<64x128xf32>
    %467 = arith.mulf %466, %465 : vector<64x128xf32>
    %cst_185 = arith.constant 5.000000e-01 : f32
    %468 = vector.broadcast %cst_185 : f32 to vector<64x128xf32>
    %469 = arith.addf %467, %468 : vector<64x128xf32>
    %470 = vector.shape_cast %462 : vector<64x128xf32> to vector<8x8x128xf32>
    %cst_186 = arith.constant dense<0.000000e+00> : vector<8x128xf32>
    %471 = vector.multi_reduction <add>, %470, %cst_186 [0] : vector<8x8x128xf32> to vector<8x128xf32>
    %472 = arith.addf %433, %471 : vector<8x128xf32>
    %473 = arith.mulf %469, %452 : vector<64x128xf32>
    %474 = vector.shape_cast %473 : vector<64x128xf32> to vector<8x8x128xf32>
    %cst_187 = arith.constant dense<0.000000e+00> : vector<8x128xf32>
    %475 = vector.multi_reduction <add>, %474, %cst_187 [0] : vector<8x8x128xf32> to vector<8x128xf32>
    %476 = arith.addf %437, %475 : vector<8x128xf32>
    %477 = vector.shape_cast %469 : vector<64x128xf32> to vector<8x8x128xf32>
    %cst_188 = arith.constant dense<0.000000e+00> : vector<8x128xf32>
    %478 = vector.multi_reduction <add>, %477, %cst_188 [0] : vector<8x8x128xf32> to vector<8x128xf32>
    %479 = arith.addf %440, %478 : vector<8x128xf32>
    %c2_i32_189 = arith.constant 2 : i32
    %c64_i32_190 = arith.constant 64 : i32
    %480 = arith.muli %c2_i32_189, %c64_i32_190 : i32
    %481 = tpu.assume_multiple %480, 64 : i32
    %482 = arith.index_cast %c2_i32_162 : i32 to index
    %483 = arith.index_cast %481 : i32 to index
    %c0_191 = arith.constant 0 : index
    %484 = vector.load %arg2[%482, %483, %c0_191] : memref<3x256x128xbf16, #tpu.memory_space<vmem>>, vector<1x64x128xbf16>
    %485 = vector.shape_cast %484 : vector<1x64x128xbf16> to vector<64x128xbf16>
    %486 = arith.extf %485 : vector<64x128xbf16> to vector<64x128xf32>
    %c64_i32_192 = arith.constant 64 : i32
    %487 = arith.muli %c2_i32_189, %c64_i32_192 : i32
    %488 = tpu.assume_multiple %487, 64 : i32
    %489 = arith.index_cast %488 : i32 to index
    %c0_193 = arith.constant 0 : index
    %490 = vector.load %arg3[%489, %c0_193] : memref<256x128xbf16, #tpu.memory_space<vmem>>, vector<64x128xbf16>
    %491 = arith.extf %490 : vector<64x128xbf16> to vector<64x128xf32>
    %492 = math.absf %486 : vector<64x128xf32>
    %cst_194 = arith.constant 0.000000e+00 : f32
    %493 = vector.broadcast %cst_194 : f32 to vector<64x128xf32>
    %494 = arith.subf %493, %492 : vector<64x128xf32>
    %495 = math.exp %494 : vector<64x128xf32>
    %cst_195 = arith.constant 0.000000e+00 : f32
    %496 = vector.broadcast %cst_195 : f32 to vector<64x128xf32>
    %497 = arith.maximumf %486, %496 : vector<64x128xf32>
    %498 = arith.mulf %486, %491 : vector<64x128xf32>
    %499 = arith.subf %497, %498 : vector<64x128xf32>
    %500 = math.log1p %495 : vector<64x128xf32>
    %501 = arith.addf %499, %500 : vector<64x128xf32>
    %cst_196 = arith.constant 5.000000e-01 : f32
    %502 = vector.broadcast %cst_196 : f32 to vector<64x128xf32>
    %503 = arith.mulf %502, %486 : vector<64x128xf32>
    %504 = math.tanh %503 : vector<64x128xf32>
    %cst_197 = arith.constant 5.000000e-01 : f32
    %505 = vector.broadcast %cst_197 : f32 to vector<64x128xf32>
    %506 = arith.mulf %505, %504 : vector<64x128xf32>
    %cst_198 = arith.constant 5.000000e-01 : f32
    %507 = vector.broadcast %cst_198 : f32 to vector<64x128xf32>
    %508 = arith.addf %506, %507 : vector<64x128xf32>
    %509 = vector.shape_cast %501 : vector<64x128xf32> to vector<8x8x128xf32>
    %cst_199 = arith.constant dense<0.000000e+00> : vector<8x128xf32>
    %510 = vector.multi_reduction <add>, %509, %cst_199 [0] : vector<8x8x128xf32> to vector<8x128xf32>
    %511 = arith.addf %472, %510 : vector<8x128xf32>
    %512 = arith.mulf %508, %491 : vector<64x128xf32>
    %513 = vector.shape_cast %512 : vector<64x128xf32> to vector<8x8x128xf32>
    %cst_200 = arith.constant dense<0.000000e+00> : vector<8x128xf32>
    %514 = vector.multi_reduction <add>, %513, %cst_200 [0] : vector<8x8x128xf32> to vector<8x128xf32>
    %515 = arith.addf %476, %514 : vector<8x128xf32>
    %516 = vector.shape_cast %508 : vector<64x128xf32> to vector<8x8x128xf32>
    %cst_201 = arith.constant dense<0.000000e+00> : vector<8x128xf32>
    %517 = vector.multi_reduction <add>, %516, %cst_201 [0] : vector<8x8x128xf32> to vector<8x128xf32>
    %518 = arith.addf %479, %517 : vector<8x128xf32>
    %c3_i32_202 = arith.constant 3 : i32
    %c64_i32_203 = arith.constant 64 : i32
    %519 = arith.muli %c3_i32_202, %c64_i32_203 : i32
    %520 = tpu.assume_multiple %519, 64 : i32
    %521 = arith.index_cast %c2_i32_162 : i32 to index
    %522 = arith.index_cast %520 : i32 to index
    %c0_204 = arith.constant 0 : index
    %523 = vector.load %arg2[%521, %522, %c0_204] : memref<3x256x128xbf16, #tpu.memory_space<vmem>>, vector<1x64x128xbf16>
    %524 = vector.shape_cast %523 : vector<1x64x128xbf16> to vector<64x128xbf16>
    %525 = arith.extf %524 : vector<64x128xbf16> to vector<64x128xf32>
    %c64_i32_205 = arith.constant 64 : i32
    %526 = arith.muli %c3_i32_202, %c64_i32_205 : i32
    %527 = tpu.assume_multiple %526, 64 : i32
    %528 = arith.index_cast %527 : i32 to index
    %c0_206 = arith.constant 0 : index
    %529 = vector.load %arg3[%528, %c0_206] : memref<256x128xbf16, #tpu.memory_space<vmem>>, vector<64x128xbf16>
    %530 = arith.extf %529 : vector<64x128xbf16> to vector<64x128xf32>
    %531 = math.absf %525 : vector<64x128xf32>
    %cst_207 = arith.constant 0.000000e+00 : f32
    %532 = vector.broadcast %cst_207 : f32 to vector<64x128xf32>
    %533 = arith.subf %532, %531 : vector<64x128xf32>
    %534 = math.exp %533 : vector<64x128xf32>
    %cst_208 = arith.constant 0.000000e+00 : f32
    %535 = vector.broadcast %cst_208 : f32 to vector<64x128xf32>
    %536 = arith.maximumf %525, %535 : vector<64x128xf32>
    %537 = arith.mulf %525, %530 : vector<64x128xf32>
    %538 = arith.subf %536, %537 : vector<64x128xf32>
    %539 = math.log1p %534 : vector<64x128xf32>
    %540 = arith.addf %538, %539 : vector<64x128xf32>
    %cst_209 = arith.constant 5.000000e-01 : f32
    %541 = vector.broadcast %cst_209 : f32 to vector<64x128xf32>
    %542 = arith.mulf %541, %525 : vector<64x128xf32>
    %543 = math.tanh %542 : vector<64x128xf32>
    %cst_210 = arith.constant 5.000000e-01 : f32
    %544 = vector.broadcast %cst_210 : f32 to vector<64x128xf32>
    %545 = arith.mulf %544, %543 : vector<64x128xf32>
    %cst_211 = arith.constant 5.000000e-01 : f32
    %546 = vector.broadcast %cst_211 : f32 to vector<64x128xf32>
    %547 = arith.addf %545, %546 : vector<64x128xf32>
    %548 = vector.shape_cast %540 : vector<64x128xf32> to vector<8x8x128xf32>
    %cst_212 = arith.constant dense<0.000000e+00> : vector<8x128xf32>
    %549 = vector.multi_reduction <add>, %548, %cst_212 [0] : vector<8x8x128xf32> to vector<8x128xf32>
    %550 = arith.addf %511, %549 : vector<8x128xf32>
    %551 = arith.mulf %547, %530 : vector<64x128xf32>
    %552 = vector.shape_cast %551 : vector<64x128xf32> to vector<8x8x128xf32>
    %cst_213 = arith.constant dense<0.000000e+00> : vector<8x128xf32>
    %553 = vector.multi_reduction <add>, %552, %cst_213 [0] : vector<8x8x128xf32> to vector<8x128xf32>
    %554 = arith.addf %515, %553 : vector<8x128xf32>
    %555 = vector.shape_cast %547 : vector<64x128xf32> to vector<8x8x128xf32>
    %cst_214 = arith.constant dense<0.000000e+00> : vector<8x128xf32>
    %556 = vector.multi_reduction <add>, %555, %cst_214 [0] : vector<8x8x128xf32> to vector<8x128xf32>
    %557 = arith.addf %518, %556 : vector<8x128xf32>
    %c4_i32_215 = arith.constant 4 : i32
    %c0_216 = arith.constant 0 : index
    %558 = arith.index_cast %c2_i32_162 : i32 to index
    %c0_217 = arith.constant 0 : index
    %c0_218 = arith.constant 0 : index
    %559 = vector.load %arg4[%c0_216, %558, %c0_217, %c0_218] : memref<1x3x8x128xf32, #tpu.memory_space<vmem>>, vector<1x1x8x128xf32>
    %560 = vector.shape_cast %559 : vector<1x1x8x128xf32> to vector<8x128xf32>
    %561 = arith.addf %560, %550 : vector<8x128xf32>
    %c0_219 = arith.constant 0 : index
    %562 = arith.index_cast %c2_i32_162 : i32 to index
    %c0_220 = arith.constant 0 : index
    %c0_221 = arith.constant 0 : index
    %563 = vector.load %arg4[%c0_219, %562, %c0_220, %c0_221] : memref<1x3x8x128xf32, #tpu.memory_space<vmem>>, vector<1x1x8x128xf32>
    %564 = vector.shape_cast %563 : vector<1x1x8x128xf32> to vector<8x128xf32>
    %565 = vector.shape_cast %561 : vector<8x128xf32> to vector<1x1x8x128xf32>
    tpu.vector_store %arg4[%c0_219, %562, %c0_220, %c0_221], %565 {strides = array<i32>} : memref<1x3x8x128xf32, #tpu.memory_space<vmem>>, vector<1x1x8x128xf32>,
    %c0_222 = arith.constant 0 : index
    %566 = arith.index_cast %c2_i32_162 : i32 to index
    %c0_223 = arith.constant 0 : index
    %c0_224 = arith.constant 0 : index
    %567 = vector.load %arg5[%c0_222, %566, %c0_223, %c0_224] : memref<1x3x8x128xf32, #tpu.memory_space<vmem>>, vector<1x1x8x128xf32>
    %568 = vector.shape_cast %567 : vector<1x1x8x128xf32> to vector<8x128xf32>
    %569 = arith.addf %568, %554 : vector<8x128xf32>
    %c0_225 = arith.constant 0 : index
    %570 = arith.index_cast %c2_i32_162 : i32 to index
    %c0_226 = arith.constant 0 : index
    %c0_227 = arith.constant 0 : index
    %571 = vector.load %arg5[%c0_225, %570, %c0_226, %c0_227] : memref<1x3x8x128xf32, #tpu.memory_space<vmem>>, vector<1x1x8x128xf32>
    %572 = vector.shape_cast %571 : vector<1x1x8x128xf32> to vector<8x128xf32>
    %573 = vector.shape_cast %569 : vector<8x128xf32> to vector<1x1x8x128xf32>
    tpu.vector_store %arg5[%c0_225, %570, %c0_226, %c0_227], %573 {strides = array<i32>} : memref<1x3x8x128xf32, #tpu.memory_space<vmem>>, vector<1x1x8x128xf32>,
    %c0_228 = arith.constant 0 : index
    %574 = arith.index_cast %c2_i32_162 : i32 to index
    %c0_229 = arith.constant 0 : index
    %c0_230 = arith.constant 0 : index
    %575 = vector.load %arg6[%c0_228, %574, %c0_229, %c0_230] : memref<1x3x8x128xf32, #tpu.memory_space<vmem>>, vector<1x1x8x128xf32>
    %576 = vector.shape_cast %575 : vector<1x1x8x128xf32> to vector<8x128xf32>
    %577 = arith.addf %576, %557 : vector<8x128xf32>
    %c0_231 = arith.constant 0 : index
    %578 = arith.index_cast %c2_i32_162 : i32 to index
    %c0_232 = arith.constant 0 : index
    %c0_233 = arith.constant 0 : index
    %579 = vector.load %arg6[%c0_231, %578, %c0_232, %c0_233] : memref<1x3x8x128xf32, #tpu.memory_space<vmem>>, vector<1x1x8x128xf32>
    %580 = vector.shape_cast %579 : vector<1x1x8x128xf32> to vector<8x128xf32>
    %581 = vector.shape_cast %577 : vector<8x128xf32> to vector<1x1x8x128xf32>
    tpu.vector_store %arg6[%c0_231, %578, %c0_232, %c0_233], %581 {strides = array<i32>} : memref<1x3x8x128xf32, #tpu.memory_space<vmem>>, vector<1x1x8x128xf32>,
    %c3_i32_234 = arith.constant 3 : i32
    return
  }
  func.func @transform_0(%arg0: i32, %arg1: i32) -> (i32, i32, i32) {
    %c1_i32 = arith.constant 1 : i32
    %0 = arith.muli %arg0, %c1_i32 : i32
    %1 = arith.addi %0, %arg1 : i32
    %c0_i32 = arith.constant 0 : i32
    %c0_i32_0 = arith.constant 0 : i32
    %c0_i32_1 = arith.constant 0 : i32
    return %c0_i32, %1, %c0_i32_0 : i32, i32, i32
  }
  func.func @transform_1(%arg0: i32, %arg1: i32) -> (i32, i32) {
    %c1_i32 = arith.constant 1 : i32
    %0 = arith.muli %arg0, %c1_i32 : i32
    %1 = arith.addi %0, %arg1 : i32
    %c0_i32 = arith.constant 0 : i32
    %c0_i32_0 = arith.constant 0 : i32
    return %1, %c0_i32 : i32, i32
  }
  func.func @transform_2(%arg0: i32, %arg1: i32) -> (i32, i32, i32, i32) {
    %c0_i32 = arith.constant 0 : i32
    %c0_i32_0 = arith.constant 0 : i32
    %c0_i32_1 = arith.constant 0 : i32
    %c0_i32_2 = arith.constant 0 : i32
    return %arg0, %c0_i32, %c0_i32_0, %c0_i32_1 : i32, i32, i32, i32
  }
  func.func @transform_3(%arg0: i32, %arg1: i32) -> (i32, i32, i32, i32) {
    %c0_i32 = arith.constant 0 : i32
    %c0_i32_0 = arith.constant 0 : i32
    %c0_i32_1 = arith.constant 0 : i32
    %c0_i32_2 = arith.constant 0 : i32
    return %arg0, %c0_i32, %c0_i32_0, %c0_i32_1 : i32, i32, i32, i32
  }
  func.func @transform_4(%arg0: i32, %arg1: i32) -> (i32, i32, i32, i32) {
    %c0_i32 = arith.constant 0 : i32
    %c0_i32_0 = arith.constant 0 : i32
    %c0_i32_1 = arith.constant 0 : i32
    %c0_i32_2 = arith.constant 0 : i32
    return %arg0, %c0_i32, %c0_i32_0, %c0_i32_1 : i32, i32, i32, i32
  }
  func.func @transform_5(%arg0: i32, %arg1: i32) -> (i32, i32, i32) {
    %c0_i32 = arith.constant 0 : i32
    %c0_i32_0 = arith.constant 0 : i32
    %c0_i32_1 = arith.constant 0 : i32
    return %arg0, %c0_i32, %c0_i32_0 : i32, i32, i32
  }
}

</mosaic_0001>

<llo_original>
// kernel: loss_component.1
$region0: #{loss_component.1}
  #allocation0 [shape = 'u32[]', space=smem, size = 0x4, offset = 0x4, fixed_abs, tag = 'smem constant byte address 0x4 - core index']
  #allocation1 [shape = 'u32[144,128]{1,0:T(1,128)}', space=vmem, size = 0x12000, scoped, tag = 'internal scratch']
  %s0 = inlined_call_operand.vmem [shape: bf16[3,256,128], index: 0, kind: input, shape index: {}]
  %s1 = inlined_call_operand.vmem [shape: bf16[256,128], index: 1, kind: input, shape index: {}]
  %s2 = inlined_call_operand.vmem [shape: f32[1,3,8,128], index: 2, kind: output, shape index: {0}]
  %s3 = inlined_call_operand.vmem [shape: f32[1,3,8,128], index: 3, kind: output, shape index: {1}]
  %s4 = inlined_call_operand.vmem [shape: f32[1,3,8,128], index: 4, kind: output, shape index: {2}]
  %s5 = inlined_call_operand.vmem [shape: f32[1,8,128], index: 5, kind: output, shape index: {3}]
  %6 = xla_tuple %s2, %s3, %s4, %s5
  %s7 = sld [smem:[#allocation0]]
  $region46: #{loss_component.1} parent=0
    _
  %s9 = ssub.s32 1, %s7
  %s10 = scalar_select 0, %s9, %s7
  // Predicated region
  $region2: #{loss_component.1} parent=0 // pred_check
    _
  $region3: #{loss_component.1} parent=0 // pred_check_branch
    %12 = sbr.rel (0) target = $region5
  $region4: #{loss_component.1} parent=0 // pred_region
    %s13 = sadd.s32 0, 0
    %s14 = smul.u32 32, %s13
    %p15 = scmp.lt.s32.totalorder %s14, 31
    %s16 = scalar_select %p15, %s14, 31
    %s17 = smul.addr %s16, 4
    %s18 = scalar_lea.vmem %s0, %s17
    %s19 = sadd.s32 0, 0
    %s20 = smul.u32 32, %s19
  $region5: #{loss_component.1} parent=0 // pred_fallthru
    _
  // Predicated region
  $region6: #{loss_component.1} parent=0 // pred_check
    _
  $region7: #{loss_component.1} parent=0 // pred_check_branch
    %22 = sbr.rel (0) target = $region9
  $region8: #{loss_component.1} parent=0 // pred_region
    %s23 = sadd.s32 0, 0
    %s24 = smul.u32 32, %s23
    %p25 = scmp.lt.s32.totalorder %s24, 31
    %s26 = scalar_select %p25, %s24, 31
    %s27 = smul.addr %s26, 4
    %s28 = scalar_lea.vmem %s1, %s27
    %s29 = sadd.s32 0, 0
    %s30 = smul.u32 32, %s29
  $region9: #{loss_component.1} parent=0 // pred_fallthru
    _
  %s31 = sadd.s32 0, 0
  %s32 = smul.u32 32, %s31
  %p33 = scmp.lt.s32.totalorder %s32, 31
  %s34 = scalar_select %p33, %s32, 31
  %s35 = smul.addr %s34, 4
  %s36 = scalar_lea.vmem %s0, %s35
  %s37 = sadd.s32 0, 0
  %s38 = smul.u32 32, %s37
  %p39 = scmp.lt.s32.totalorder %s38, 31
  %s40 = scalar_select %p39, %s38, 31
  %s41 = smul.addr %s40, 4
  %s42 = scalar_lea.vmem %s1, %s41
  %s43 = sadd.s32 0, 0
  %s44 = smul.u32 32, %s43
  %p45 = scmp.lt.s32.totalorder %s44, 31
  %s46 = scalar_select %p45, %s44, 31
  %s47 = smul.addr %s46, 4
  %s48 = scalar_lea.vmem %s0, %s47
  %s49 = sadd.s32 0, 0
  %s50 = smul.u32 32, %s49
  %s51 = sadd.s32 0, 0
  %s52 = smul.u32 32, %s51
  %p53 = scmp.lt.s32.totalorder %s52, 31
  %s54 = scalar_select %p53, %s52, 31
  %s55 = smul.addr %s54, 4
  %s56 = scalar_lea.vmem %s1, %s55
  %s57 = sadd.s32 0, 0
  %s58 = smul.u32 32, %s57
  %p59 = scmp.eq.s32.totalorder 0, 0
  // Predicated region
  $region10: #{loss_component.1} parent=0 // pred_check
    %p60 = pneg %p59
  $region11: #{loss_component.1} parent=0 // pred_check_branch
    %62 = sbr.rel (%p60) target = $region13
  $region12: #{loss_component.1} parent=0 // pred_region
    %63 = vst [vmem:[%s2] sm:$0xff] 0.0
    %64 = vst [vmem:[%s2 + $0x8] sm:$0xff] 0.0
    %65 = vst [vmem:[%s2 + $0x10] sm:$0xff] 0.0
    %66 = vst [vmem:[%s3] sm:$0xff] 0.0
    %67 = vst [vmem:[%s3 + $0x8] sm:$0xff] 0.0
    %68 = vst [vmem:[%s3 + $0x10] sm:$0xff] 0.0
    %69 = vst [vmem:[%s4] sm:$0xff] 0.0
    %70 = vst [vmem:[%s4 + $0x8] sm:$0xff] 0.0
    %71 = vst [vmem:[%s4 + $0x10] sm:$0xff] 0.0
    %72 = vst [vmem:[%s5] sm:$0xff] 0.0
  $region13: #{loss_component.1} parent=0 // pred_fallthru
    _
  %v73 = vld [vmem:[%s5] sm:$0xff]
  %v74 = vld [vmem:[%s56] sm:$0xf]
  %v75 = vld [vmem:[%s56 + $0x4] sm:$0xf]
  %v76 = vld [vmem:[%s56 + $0x8] sm:$0xf]
  %v77 = vld [vmem:[%s56 + $0xc] sm:$0xf]
  %v78 = vld [vmem:[%s56 + $0x10] sm:$0xf]
  %v79 = vld [vmem:[%s56 + $0x14] sm:$0xf]
  %v80 = vld [vmem:[%s56 + $0x18] sm:$0xf]
  %v81 = vld [vmem:[%s56 + $0x1c] sm:$0xf]
  %v82 = vunpack.c.l.bf16 %v74
  %v83 = vunpack.c.l.bf16 %v75
  %v84 = vunpack.c.l.bf16 %v76
  %v85 = vunpack.c.l.bf16 %v77
  %v86 = vunpack.c.l.bf16 %v78
  %v87 = vunpack.c.l.bf16 %v79
  %v88 = vunpack.c.l.bf16 %v80
  %v89 = vunpack.c.l.bf16 %v81
  %v90 = vadd.f32 %v82, %v83
  %v91 = vadd.f32 %v90, %v84
  %v92 = vadd.f32 %v91, %v85
  %v93 = vadd.f32 %v92, %v86
  %v94 = vadd.f32 %v93, %v87
  %v95 = vadd.f32 %v94, %v88
  %v96 = vadd.f32 %v95, %v89
  %v97 = vadd.f32 %v96, 0.0
  %s98 = scalar_lea.vmem %s56, 32
  %v99 = vld [vmem:[%s98] sm:$0xf]
  %v100 = vld [vmem:[%s98 + $0x4] sm:$0xf]
  %v101 = vld [vmem:[%s98 + $0x8] sm:$0xf]
  %v102 = vld [vmem:[%s98 + $0xc] sm:$0xf]
  %v103 = vld [vmem:[%s98 + $0x10] sm:$0xf]
  %v104 = vld [vmem:[%s98 + $0x14] sm:$0xf]
  %v105 = vld [vmem:[%s98 + $0x18] sm:$0xf]
  %v106 = vld [vmem:[%s98 + $0x1c] sm:$0xf]
  %v107 = vunpack.c.l.bf16 %v99
  %v108 = vunpack.c.l.bf16 %v100
  %v109 = vunpack.c.l.bf16 %v101
  %v110 = vunpack.c.l.bf16 %v102
  %v111 = vunpack.c.l.bf16 %v103
  %v112 = vunpack.c.l.bf16 %v104
  %v113 = vunpack.c.l.bf16 %v105
  %v114 = vunpack.c.l.bf16 %v106
  %v115 = vadd.f32 %v107, %v108
  %v116 = vadd.f32 %v115, %v109
  %v117 = vadd.f32 %v116, %v110
  %v118 = vadd.f32 %v117, %v111
  %v119 = vadd.f32 %v118, %v112
  %v120 = vadd.f32 %v119, %v113
  %v121 = vadd.f32 %v120, %v114
  %v122 = vadd.f32 %v97, %v121
  %s123 = scalar_lea.vmem %s56, 64
  %v124 = vld [vmem:[%s123] sm:$0xf]
  %v125 = vld [vmem:[%s123 + $0x4] sm:$0xf]
  %v126 = vld [vmem:[%s123 + $0x8] sm:$0xf]
  %v127 = vld [vmem:[%s123 + $0xc] sm:$0xf]
  %v128 = vld [vmem:[%s123 + $0x10] sm:$0xf]
  %v129 = vld [vmem:[%s123 + $0x14] sm:$0xf]
  %v130 = vld [vmem:[%s123 + $0x18] sm:$0xf]
  %v131 = vld [vmem:[%s123 + $0x1c] sm:$0xf]
  %v132 = vunpack.c.l.bf16 %v124
  %v133 = vunpack.c.l.bf16 %v125
  %v134 = vunpack.c.l.bf16 %v126
  %v135 = vunpack.c.l.bf16 %v127
  %v136 = vunpack.c.l.bf16 %v128
  %v137 = vunpack.c.l.bf16 %v129
  %v138 = vunpack.c.l.bf16 %v130
  %v139 = vunpack.c.l.bf16 %v131
  %v140 = vadd.f32 %v132, %v133
  %v141 = vadd.f32 %v140, %v134
  %v142 = vadd.f32 %v141, %v135
  %v143 = vadd.f32 %v142, %v136
  %v144 = vadd.f32 %v143, %v137
  %v145 = vadd.f32 %v144, %v138
  %v146 = vadd.f32 %v145, %v139
  %v147 = vadd.f32 %v122, %v146
  %s148 = scalar_lea.vmem %s56, 96
  %v149 = vld [vmem:[%s148] sm:$0xf]
  %v150 = vld [vmem:[%s148 + $0x4] sm:$0xf]
  %v151 = vld [vmem:[%s148 + $0x8] sm:$0xf]
  %v152 = vld [vmem:[%s148 + $0xc] sm:$0xf]
  %v153 = vld [vmem:[%s148 + $0x10] sm:$0xf]
  %v154 = vld [vmem:[%s148 + $0x14] sm:$0xf]
  %v155 = vld [vmem:[%s148 + $0x18] sm:$0xf]
  %v156 = vld [vmem:[%s148 + $0x1c] sm:$0xf]
  %v157 = vunpack.c.l.bf16 %v149
  %v158 = vunpack.c.l.bf16 %v150
  %v159 = vunpack.c.l.bf16 %v151
  %v160 = vunpack.c.l.bf16 %v152
  %v161 = vunpack.c.l.bf16 %v153
  %v162 = vunpack.c.l.bf16 %v154
  %v163 = vunpack.c.l.bf16 %v155
  %v164 = vunpack.c.l.bf16 %v156
  %v165 = vadd.f32 %v157, %v158
  %v166 = vadd.f32 %v165, %v159
  %v167 = vadd.f32 %v166, %v160
  %v168 = vadd.f32 %v167, %v161
  %v169 = vadd.f32 %v168, %v162
  %v170 = vadd.f32 %v169, %v163
  %v171 = vadd.f32 %v170, %v164
  %v172 = vadd.f32 %v147, %v171
  %v173 = vadd.f32 %v73, %v172
  %174 = vst [vmem:[%s5] sm:$0xff] %v173
  %v175 = vld [vmem:[%s48] sm:$0xf]
  %v176 = vld [vmem:[%s48 + $0x4] sm:$0xf]
  %v177 = vld [vmem:[%s48 + $0x8] sm:$0xf]
  %v178 = vld [vmem:[%s48 + $0xc] sm:$0xf]
  %v179 = vld [vmem:[%s48 + $0x10] sm:$0xf]
  %v180 = vld [vmem:[%s48 + $0x14] sm:$0xf]
  %v181 = vld [vmem:[%s48 + $0x18] sm:$0xf]
  %v182 = vld [vmem:[%s48 + $0x1c] sm:$0xf]
  %v183 = vunpack.c.l.bf16 %v175
  %v184 = vunpack.c.l.bf16 %v176
  %v185 = vunpack.c.l.bf16 %v177
  %v186 = vunpack.c.l.bf16 %v178
  %v187 = vunpack.c.l.bf16 %v179
  %v188 = vunpack.c.l.bf16 %v180
  %v189 = vunpack.c.l.bf16 %v181
  %v190 = vunpack.c.l.bf16 %v182
  %v191 = vld [vmem:[%s56] sm:$0xf]
  %v192 = vld [vmem:[%s56 + $0x4] sm:$0xf]
  %v193 = vld [vmem:[%s56 + $0x8] sm:$0xf]
  %v194 = vld [vmem:[%s56 + $0xc] sm:$0xf]
  %v195 = vld [vmem:[%s56 + $0x10] sm:$0xf]
  %v196 = vld [vmem:[%s56 + $0x14] sm:$0xf]
  %v197 = vld [vmem:[%s56 + $0x18] sm:$0xf]
  %v198 = vld [vmem:[%s56 + $0x1c] sm:$0xf]
  %v199 = vunpack.c.l.bf16 %v191
  %v200 = vunpack.c.l.bf16 %v192
  %v201 = vunpack.c.l.bf16 %v193
  %v202 = vunpack.c.l.bf16 %v194
  %v203 = vunpack.c.l.bf16 %v195
  %v204 = vunpack.c.l.bf16 %v196
  %v205 = vunpack.c.l.bf16 %v197
  %v206 = vunpack.c.l.bf16 %v198
  %v207 = vand.u32 2147483647, %v183
  %v208 = vand.u32 2147483647, %v184
  %v209 = vand.u32 2147483647, %v185
  %v210 = vand.u32 2147483647, %v186
  %v211 = vand.u32 2147483647, %v187
  %v212 = vand.u32 2147483647, %v188
  %v213 = vand.u32 2147483647, %v189
  %v214 = vand.u32 2147483647, %v190
  %v215 = vsub.f32 0.0, %v207
  %v216 = vsub.f32 0.0, %v208
  %v217 = vsub.f32 0.0, %v209
  %v218 = vsub.f32 0.0, %v210
  %v219 = vsub.f32 0.0, %v211
  %v220 = vsub.f32 0.0, %v212
  %v221 = vsub.f32 0.0, %v213
  %v222 = vsub.f32 0.0, %v214
  %v223 = vmul.f32 %v215, 1.442695
  %v224 = vpow.pop %v223
  %v225 = vmul.f32 %v216, 1.442695
  %v226 = vpow.pop %v225
  %v227 = vmul.f32 %v217, 1.442695
  %v228 = vpow.pop %v227
  %v229 = vmul.f32 %v218, 1.442695
  %v230 = vpow.pop %v229
  %v231 = vmul.f32 %v219, 1.442695
  %v232 = vpow.pop %v231
  %v233 = vmul.f32 %v220, 1.442695
  %v234 = vpow.pop %v233
  %v235 = vmul.f32 %v221, 1.442695
  %v236 = vpow.pop %v235
  %v237 = vmul.f32 %v222, 1.442695
  %v238 = vpow.pop %v237
  %v239 = vmax.f32 %v183, 0.0
  %v240 = vmax.f32 %v184, 0.0
  %v241 = vmax.f32 %v185, 0.0
  %v242 = vmax.f32 %v186, 0.0
  %v243 = vmax.f32 %v187, 0.0
  %v244 = vmax.f32 %v188, 0.0
  %v245 = vmax.f32 %v189, 0.0
  %v246 = vmax.f32 %v190, 0.0
  %v247 = vmul.f32 %v183, %v199
  %v248 = vmul.f32 %v184, %v200
  %v249 = vmul.f32 %v185, %v201
  %v250 = vmul.f32 %v186, %v202
  %v251 = vmul.f32 %v187, %v203
  %v252 = vmul.f32 %v188, %v204
  %v253 = vmul.f32 %v189, %v205
  %v254 = vmul.f32 %v190, %v206
  %v255 = vsub.f32 %v239, %v247
  %v256 = vsub.f32 %v240, %v248
  %v257 = vsub.f32 %v241, %v249
  %v258 = vsub.f32 %v242, %v250
  %v259 = vsub.f32 %v243, %v251
  %v260 = vsub.f32 %v244, %v252
  %v261 = vsub.f32 %v245, %v253
  %v262 = vsub.f32 %v246, %v254
  %v263 = vadd.f32 %v224, 1.0
  %v264 = vlog2.pop %v263
  %v265 = vmul.f32 %v264, 0.6931472
  %v266 = vmul.f32 -0.5, %v224
  %v267 = vadd.f32 %v266, 1.0
  %v268 = vmul.f32 %v267, %v224
  %v269 = vand.u32 2147483647, %v224
  %vm270 = vcmp.lt.f32.partialorder %v269, 0.0004427343
  %v271 = vsel %vm270, %v268, %v265
  %v272 = vadd.f32 %v226, 1.0
  %v273 = vlog2.pop %v272
  %v274 = vmul.f32 %v273, 0.6931472
  %v275 = vmul.f32 -0.5, %v226
  %v276 = vadd.f32 %v275, 1.0
  %v277 = vmul.f32 %v276, %v226
  %v278 = vand.u32 2147483647, %v226
  %vm279 = vcmp.lt.f32.partialorder %v278, 0.0004427343
  %v280 = vsel %vm279, %v277, %v274
  %v281 = vadd.f32 %v228, 1.0
  %v282 = vlog2.pop %v281
  %v283 = vmul.f32 %v282, 0.6931472
  %v284 = vmul.f32 -0.5, %v228
  %v285 = vadd.f32 %v284, 1.0
  %v286 = vmul.f32 %v285, %v228
  %v287 = vand.u32 2147483647, %v228
  %vm288 = vcmp.lt.f32.partialorder %v287, 0.0004427343
  %v289 = vsel %vm288, %v286, %v283
  %v290 = vadd.f32 %v230, 1.0
  %v291 = vlog2.pop %v290
  %v292 = vmul.f32 %v291, 0.6931472
  %v293 = vmul.f32 -0.5, %v230
  %v294 = vadd.f32 %v293, 1.0
  %v295 = vmul.f32 %v294, %v230
  %v296 = vand.u32 2147483647, %v230
  %vm297 = vcmp.lt.f32.partialorder %v296, 0.0004427343
  %v298 = vsel %vm297, %v295, %v292
  %v299 = vadd.f32 %v232, 1.0
  %v300 = vlog2.pop %v299
  %v301 = vmul.f32 %v300, 0.6931472
  %v302 = vmul.f32 -0.5, %v232
  %v303 = vadd.f32 %v302, 1.0
  %v304 = vmul.f32 %v303, %v232
  %v305 = vand.u32 2147483647, %v232
  %vm306 = vcmp.lt.f32.partialorder %v305, 0.0004427343
  %v307 = vsel %vm306, %v304, %v301
  %v308 = vadd.f32 %v234, 1.0
  %v309 = vlog2.pop %v308
  %v310 = vmul.f32 %v309, 0.6931472
  %v311 = vmul.f32 -0.5, %v234
  %v312 = vadd.f32 %v311, 1.0
  %v313 = vmul.f32 %v312, %v234
  %v314 = vand.u32 2147483647, %v234
  %vm315 = vcmp.lt.f32.partialorder %v314, 0.0004427343
  %v316 = vsel %vm315, %v313, %v310
  %v317 = vadd.f32 %v236, 1.0
  %v318 = vlog2.pop %v317
  %v319 = vmul.f32 %v318, 0.6931472
  %v320 = vmul.f32 -0.5, %v236
  %v321 = vadd.f32 %v320, 1.0
  %v322 = vmul.f32 %v321, %v236
  %v323 = vand.u32 2147483647, %v236
  %vm324 = vcmp.lt.f32.partialorder %v323, 0.0004427343
  %v325 = vsel %vm324, %v322, %v319
  %v326 = vadd.f32 %v238, 1.0
  %v327 = vlog2.pop %v326
  %v328 = vmul.f32 %v327, 0.6931472
  %v329 = vmul.f32 -0.5, %v238
  %v330 = vadd.f32 %v329, 1.0
  %v331 = vmul.f32 %v330, %v238
  %v332 = vand.u32 2147483647, %v238
  %vm333 = vcmp.lt.f32.partialorder %v332, 0.0004427343
  %v334 = vsel %vm333, %v331, %v328
  %v335 = vadd.f32 %v255, %v271
  %v336 = vadd.f32 %v256, %v280
  %v337 = vadd.f32 %v257, %v289
  %v338 = vadd.f32 %v258, %v298
  %v339 = vadd.f32 %v259, %v307
  %v340 = vadd.f32 %v260, %v316
  %v341 = vadd.f32 %v261, %v325
  %v342 = vadd.f32 %v262, %v334
  %v343 = vmul.f32 %v183, 0.5
  %v344 = vmul.f32 %v184, 0.5
  %v345 = vmul.f32 %v185, 0.5
  %v346 = vmul.f32 %v186, 0.5
  %v347 = vmul.f32 %v187, 0.5
  %v348 = vmul.f32 %v188, 0.5
  %v349 = vmul.f32 %v189, 0.5
  %v350 = vmul.f32 %v190, 0.5
  %v351 = vtanh.pop %v343
  %v352 = vtanh.pop %v344
  %v353 = vtanh.pop %v345
  %v354 = vtanh.pop %v346
  %v355 = vtanh.pop %v347
  %v356 = vtanh.pop %v348
  %v357 = vtanh.pop %v349
  %v358 = vtanh.pop %v350
  %v359 = vmul.f32 %v351, 0.5
  %v360 = vmul.f32 %v352, 0.5
  %v361 = vmul.f32 %v353, 0.5
  %v362 = vmul.f32 %v354, 0.5
  %v363 = vmul.f32 %v355, 0.5
  %v364 = vmul.f32 %v356, 0.5
  %v365 = vmul.f32 %v357, 0.5
  %v366 = vmul.f32 %v358, 0.5
  %v367 = vadd.f32 %v359, 0.5
  %v368 = vadd.f32 %v360, 0.5
  %v369 = vadd.f32 %v361, 0.5
  %v370 = vadd.f32 %v362, 0.5
  %v371 = vadd.f32 %v363, 0.5
  %v372 = vadd.f32 %v364, 0.5
  %v373 = vadd.f32 %v365, 0.5
  %v374 = vadd.f32 %v366, 0.5
  %v375 = vadd.f32 %v335, %v336
  %v376 = vadd.f32 %v375, %v337
  %v377 = vadd.f32 %v376, %v338
  %v378 = vadd.f32 %v377, %v339
  %v379 = vadd.f32 %v378, %v340
  %v380 = vadd.f32 %v379, %v341
  %v381 = vadd.f32 %v380, %v342
  %v382 = vadd.f32 %v381, 0.0
  %v383 = vmul.f32 %v367, %v199
  %v384 = vmul.f32 %v368, %v200
  %v385 = vmul.f32 %v369, %v201
  %v386 = vmul.f32 %v370, %v202
  %v387 = vmul.f32 %v371, %v203
  %v388 = vmul.f32 %v372, %v204
  %v389 = vmul.f32 %v373, %v205
  %v390 = vmul.f32 %v374, %v206
  %v391 = vadd.f32 %v383, %v384
  %v392 = vadd.f32 %v391, %v385
  %v393 = vadd.f32 %v392, %v386
  %v394 = vadd.f32 %v393, %v387
  %v395 = vadd.f32 %v394, %v388
  %v396 = vadd.f32 %v395, %v389
  %v397 = vadd.f32 %v396, %v390
  %v398 = vadd.f32 %v397, 0.0
  %v399 = vadd.f32 %v367, %v368
  %v400 = vadd.f32 %v399, %v369
  %v401 = vadd.f32 %v400, %v370
  %v402 = vadd.f32 %v401, %v371
  %v403 = vadd.f32 %v402, %v372
  %v404 = vadd.f32 %v403, %v373
  %v405 = vadd.f32 %v404, %v374
  %v406 = vadd.f32 %v405, 0.0
  %s407 = scalar_lea.vmem %s48, 32
  %v408 = vld [vmem:[%s407] sm:$0xf]
  %v409 = vld [vmem:[%s407 + $0x4] sm:$0xf]
  %v410 = vld [vmem:[%s407 + $0x8] sm:$0xf]
  %v411 = vld [vmem:[%s407 + $0xc] sm:$0xf]
  %v412 = vld [vmem:[%s407 + $0x10] sm:$0xf]
  %v413 = vld [vmem:[%s407 + $0x14] sm:$0xf]
  %v414 = vld [vmem:[%s407 + $0x18] sm:$0xf]
  %v415 = vld [vmem:[%s407 + $0x1c] sm:$0xf]
  %v416 = vunpack.c.l.bf16 %v408
  %v417 = vunpack.c.l.bf16 %v409
  %v418 = vunpack.c.l.bf16 %v410
  %v419 = vunpack.c.l.bf16 %v411
  %v420 = vunpack.c.l.bf16 %v412
  %v421 = vunpack.c.l.bf16 %v413
  %v422 = vunpack.c.l.bf16 %v414
  %v423 = vunpack.c.l.bf16 %v415
  %v424 = vld [vmem:[%s98] sm:$0xf]
  %v425 = vld [vmem:[%s98 + $0x4] sm:$0xf]
  %v426 = vld [vmem:[%s98 + $0x8] sm:$0xf]
  %v427 = vld [vmem:[%s98 + $0xc] sm:$0xf]
  %v428 = vld [vmem:[%s98 + $0x10] sm:$0xf]
  %v429 = vld [vmem:[%s98 + $0x14] sm:$0xf]
  %v430 = vld [vmem:[%s98 + $0x18] sm:$0xf]
  %v431 = vld [vmem:[%s98 + $0x1c] sm:$0xf]
  %v432 = vunpack.c.l.bf16 %v424
  %v433 = vunpack.c.l.bf16 %v425
  %v434 = vunpack.c.l.bf16 %v426
  %v435 = vunpack.c.l.bf16 %v427
  %v436 = vunpack.c.l.bf16 %v428
  %v437 = vunpack.c.l.bf16 %v429
  %v438 = vunpack.c.l.bf16 %v430
  %v439 = vunpack.c.l.bf16 %v431
  %v440 = vand.u32 2147483647, %v416
  %v441 = vand.u32 2147483647, %v417
  %v442 = vand.u32 2147483647, %v418
  %v443 = vand.u32 2147483647, %v419
  %v444 = vand.u32 2147483647, %v420
  %v445 = vand.u32 2147483647, %v421
  %v446 = vand.u32 2147483647, %v422
  %v447 = vand.u32 2147483647, %v423
  %v448 = vsub.f32 0.0, %v440
  %v449 = vsub.f32 0.0, %v441
  %v450 = vsub.f32 0.0, %v442
  %v451 = vsub.f32 0.0, %v443
  %v452 = vsub.f32 0.0, %v444
  %v453 = vsub.f32 0.0, %v445
  %v454 = vsub.f32 0.0, %v446
  %v455 = vsub.f32 0.0, %v447
  %v456 = vmul.f32 %v448, 1.442695
  %v457 = vpow.pop %v456
  %v458 = vmul.f32 %v449, 1.442695
  %v459 = vpow.pop %v458
  %v460 = vmul.f32 %v450, 1.442695
  %v461 = vpow.pop %v460
  %v462 = vmul.f32 %v451, 1.442695
  %v463 = vpow.pop %v462
  %v464 = vmul.f32 %v452, 1.442695
  %v465 = vpow.pop %v464
  %v466 = vmul.f32 %v453, 1.442695
  %v467 = vpow.pop %v466
  %v468 = vmul.f32 %v454, 1.442695
  %v469 = vpow.pop %v468
  %v470 = vmul.f32 %v455, 1.442695
  %v471 = vpow.pop %v470
  %v472 = vmax.f32 %v416, 0.0
  %v473 = vmax.f32 %v417, 0.0
  %v474 = vmax.f32 %v418, 0.0
  %v475 = vmax.f32 %v419, 0.0
  %v476 = vmax.f32 %v420, 0.0
  %v477 = vmax.f32 %v421, 0.0
  %v478 = vmax.f32 %v422, 0.0
  %v479 = vmax.f32 %v423, 0.0
  %v480 = vmul.f32 %v416, %v432
  %v481 = vmul.f32 %v417, %v433
  %v482 = vmul.f32 %v418, %v434
  %v483 = vmul.f32 %v419, %v435
  %v484 = vmul.f32 %v420, %v436
  %v485 = vmul.f32 %v421, %v437
  %v486 = vmul.f32 %v422, %v438
  %v487 = vmul.f32 %v423, %v439
  %v488 = vsub.f32 %v472, %v480
  %v489 = vsub.f32 %v473, %v481
  %v490 = vsub.f32 %v474, %v482
  %v491 = vsub.f32 %v475, %v483
  %v492 = vsub.f32 %v476, %v484
  %v493 = vsub.f32 %v477, %v485
  %v494 = vsub.f32 %v478, %v486
  %v495 = vsub.f32 %v479, %v487
  %v496 = vadd.f32 %v457, 1.0
  %v497 = vlog2.pop %v496
  %v498 = vmul.f32 %v497, 0.6931472
  %v499 = vmul.f32 -0.5, %v457
  %v500 = vadd.f32 %v499, 1.0
  %v501 = vmul.f32 %v500, %v457
  %v502 = vand.u32 2147483647, %v457
  %vm503 = vcmp.lt.f32.partialorder %v502, 0.0004427343
  %v504 = vsel %vm503, %v501, %v498
  %v505 = vadd.f32 %v459, 1.0
  %v506 = vlog2.pop %v505
  %v507 = vmul.f32 %v506, 0.6931472
  %v508 = vmul.f32 -0.5, %v459
  %v509 = vadd.f32 %v508, 1.0
  %v510 = vmul.f32 %v509, %v459
  %v511 = vand.u32 2147483647, %v459
  %vm512 = vcmp.lt.f32.partialorder %v511, 0.0004427343
  %v513 = vsel %vm512, %v510, %v507
  %v514 = vadd.f32 %v461, 1.0
  %v515 = vlog2.pop %v514
  %v516 = vmul.f32 %v515, 0.6931472
  %v517 = vmul.f32 -0.5, %v461
  %v518 = vadd.f32 %v517, 1.0
  %v519 = vmul.f32 %v518, %v461
  %v520 = vand.u32 2147483647, %v461
  %vm521 = vcmp.lt.f32.partialorder %v520, 0.0004427343
  %v522 = vsel %vm521, %v519, %v516
  %v523 = vadd.f32 %v463, 1.0
  %v524 = vlog2.pop %v523
  %v525 = vmul.f32 %v524, 0.6931472
  %v526 = vmul.f32 -0.5, %v463
  %v527 = vadd.f32 %v526, 1.0
  %v528 = vmul.f32 %v527, %v463
  %v529 = vand.u32 2147483647, %v463
  %vm530 = vcmp.lt.f32.partialorder %v529, 0.0004427343
  %v531 = vsel %vm530, %v528, %v525
  %v532 = vadd.f32 %v465, 1.0
  %v533 = vlog2.pop %v532
  %v534 = vmul.f32 %v533, 0.6931472
  %v535 = vmul.f32 -0.5, %v465
  %v536 = vadd.f32 %v535, 1.0
  %v537 = vmul.f32 %v536, %v465
  %v538 = vand.u32 2147483647, %v465
  %vm539 = vcmp.lt.f32.partialorder %v538, 0.0004427343
  %v540 = vsel %vm539, %v537, %v534
  %v541 = vadd.f32 %v467, 1.0
  %v542 = vlog2.pop %v541
  %v543 = vmul.f32 %v542, 0.6931472
  %v544 = vmul.f32 -0.5, %v467
  %v545 = vadd.f32 %v544, 1.0
  %v546 = vmul.f32 %v545, %v467
  %v547 = vand.u32 2147483647, %v467
  %vm548 = vcmp.lt.f32.partialorder %v547, 0.0004427343
  %v549 = vsel %vm548, %v546, %v543
  %v550 = vadd.f32 %v469, 1.0
  %v551 = vlog2.pop %v550
  %v552 = vmul.f32 %v551, 0.6931472
  %v553 = vmul.f32 -0.5, %v469
  %v554 = vadd.f32 %v553, 1.0
  %v555 = vmul.f32 %v554, %v469
  %v556 = vand.u32 2147483647, %v469
  %vm557 = vcmp.lt.f32.partialorder %v556, 0.0004427343
  %v558 = vsel %vm557, %v555, %v552
  %v559 = vadd.f32 %v471, 1.0
  %v560 = vlog2.pop %v559
  %v561 = vmul.f32 %v560, 0.6931472
  %v562 = vmul.f32 -0.5, %v471
  %v563 = vadd.f32 %v562, 1.0
  %v564 = vmul.f32 %v563, %v471
  %v565 = vand.u32 2147483647, %v471
  %vm566 = vcmp.lt.f32.partialorder %v565, 0.0004427343
  %v567 = vsel %vm566, %v564, %v561
  %v568 = vadd.f32 %v488, %v504
  %v569 = vadd.f32 %v489, %v513
  %v570 = vadd.f32 %v490, %v522
  %v571 = vadd.f32 %v491, %v531
  %v572 = vadd.f32 %v492, %v540
  %v573 = vadd.f32 %v493, %v549
  %v574 = vadd.f32 %v494, %v558
  %v575 = vadd.f32 %v495, %v567
  %v576 = vmul.f32 %v416, 0.5
  %v577 = vmul.f32 %v417, 0.5
  %v578 = vmul.f32 %v418, 0.5
  %v579 = vmul.f32 %v419, 0.5
  %v580 = vmul.f32 %v420, 0.5
  %v581 = vmul.f32 %v421, 0.5
  %v582 = vmul.f32 %v422, 0.5
  %v583 = vmul.f32 %v423, 0.5
  %v584 = vtanh.pop %v576
  %v585 = vtanh.pop %v577
  %v586 = vtanh.pop %v578
  %v587 = vtanh.pop %v579
  %v588 = vtanh.pop %v580
  %v589 = vtanh.pop %v581
  %v590 = vtanh.pop %v582
  %v591 = vtanh.pop %v583
  %v592 = vmul.f32 %v584, 0.5
  %v593 = vmul.f32 %v585, 0.5
  %v594 = vmul.f32 %v586, 0.5
  %v595 = vmul.f32 %v587, 0.5
  %v596 = vmul.f32 %v588, 0.5
  %v597 = vmul.f32 %v589, 0.5
  %v598 = vmul.f32 %v590, 0.5
  %v599 = vmul.f32 %v591, 0.5
  %v600 = vadd.f32 %v592, 0.5
  %v601 = vadd.f32 %v593, 0.5
  %v602 = vadd.f32 %v594, 0.5
  %v603 = vadd.f32 %v595, 0.5
  %v604 = vadd.f32 %v596, 0.5
  %v605 = vadd.f32 %v597, 0.5
  %v606 = vadd.f32 %v598, 0.5
  %v607 = vadd.f32 %v599, 0.5
  %v608 = vadd.f32 %v568, %v569
  %v609 = vadd.f32 %v608, %v570
  %v610 = vadd.f32 %v609, %v571
  %v611 = vadd.f32 %v610, %v572
  %v612 = vadd.f32 %v611, %v573
  %v613 = vadd.f32 %v612, %v574
  %v614 = vadd.f32 %v613, %v575
  %v615 = vadd.f32 %v382, %v614
  %v616 = vmul.f32 %v600, %v432
  %v617 = vmul.f32 %v601, %v433
  %v618 = vmul.f32 %v602, %v434
  %v619 = vmul.f32 %v603, %v435
  %v620 = vmul.f32 %v604, %v436
  %v621 = vmul.f32 %v605, %v437
  %v622 = vmul.f32 %v606, %v438
  %v623 = vmul.f32 %v607, %v439
  %v624 = vadd.f32 %v616, %v617
  %v625 = vadd.f32 %v624, %v618
  %v626 = vadd.f32 %v625, %v619
  %v627 = vadd.f32 %v626, %v620
  %v628 = vadd.f32 %v627, %v621
  %v629 = vadd.f32 %v628, %v622
  %v630 = vadd.f32 %v629, %v623
  %v631 = vadd.f32 %v398, %v630
  %v632 = vadd.f32 %v600, %v601
  %v633 = vadd.f32 %v632, %v602
  %v634 = vadd.f32 %v633, %v603
  %v635 = vadd.f32 %v634, %v604
  %v636 = vadd.f32 %v635, %v605
  %v637 = vadd.f32 %v636, %v606
  %v638 = vadd.f32 %v637, %v607
  %v639 = vadd.f32 %v406, %v638
  %s640 = scalar_lea.vmem %s48, 64
  %v641 = vld [vmem:[%s640] sm:$0xf]
  %v642 = vld [vmem:[%s640 + $0x4] sm:$0xf]
  %v643 = vld [vmem:[%s640 + $0x8] sm:$0xf]
  %v644 = vld [vmem:[%s640 + $0xc] sm:$0xf]
  %v645 = vld [vmem:[%s640 + $0x10] sm:$0xf]
  %v646 = vld [vmem:[%s640 + $0x14] sm:$0xf]
  %v647 = vld [vmem:[%s640 + $0x18] sm:$0xf]
  %v648 = vld [vmem:[%s640 + $0x1c] sm:$0xf]
  %v649 = vunpack.c.l.bf16 %v641
  %v650 = vunpack.c.l.bf16 %v642
  %v651 = vunpack.c.l.bf16 %v643
  %v652 = vunpack.c.l.bf16 %v644
  %v653 = vunpack.c.l.bf16 %v645
  %v654 = vunpack.c.l.bf16 %v646
  %v655 = vunpack.c.l.bf16 %v647
  %v656 = vunpack.c.l.bf16 %v648
  %v657 = vld [vmem:[%s123] sm:$0xf]
  %v658 = vld [vmem:[%s123 + $0x4] sm:$0xf]
  %v659 = vld [vmem:[%s123 + $0x8] sm:$0xf]
  %v660 = vld [vmem:[%s123 + $0xc] sm:$0xf]
  %v661 = vld [vmem:[%s123 + $0x10] sm:$0xf]
  %v662 = vld [vmem:[%s123 + $0x14] sm:$0xf]
  %v663 = vld [vmem:[%s123 + $0x18] sm:$0xf]
  %v664 = vld [vmem:[%s123 + $0x1c] sm:$0xf]
  %v665 = vunpack.c.l.bf16 %v657
  %v666 = vunpack.c.l.bf16 %v658
  %v667 = vunpack.c.l.bf16 %v659
  %v668 = vunpack.c.l.bf16 %v660
  %v669 = vunpack.c.l.bf16 %v661
  %v670 = vunpack.c.l.bf16 %v662
  %v671 = vunpack.c.l.bf16 %v663
  %v672 = vunpack.c.l.bf16 %v664
  %v673 = vand.u32 2147483647, %v649
  %v674 = vand.u32 2147483647, %v650
  %v675 = vand.u32 2147483647, %v651
  %v676 = vand.u32 2147483647, %v652
  %v677 = vand.u32 2147483647, %v653
  %v678 = vand.u32 2147483647, %v654
  %v679 = vand.u32 2147483647, %v655
  %v680 = vand.u32 2147483647, %v656
  %v681 = vsub.f32 0.0, %v673
  %v682 = vsub.f32 0.0, %v674
  %v683 = vsub.f32 0.0, %v675
  %v684 = vsub.f32 0.0, %v676
  %v685 = vsub.f32 0.0, %v677
  %v686 = vsub.f32 0.0, %v678
  %v687 = vsub.f32 0.0, %v679
  %v688 = vsub.f32 0.0, %v680
  %v689 = vmul.f32 %v681, 1.442695
  %v690 = vpow.pop %v689
  %v691 = vmul.f32 %v682, 1.442695
  %v692 = vpow.pop %v691
  %v693 = vmul.f32 %v683, 1.442695
  %v694 = vpow.pop %v693
  %v695 = vmul.f32 %v684, 1.442695
  %v696 = vpow.pop %v695
  %v697 = vmul.f32 %v685, 1.442695
  %v698 = vpow.pop %v697
  %v699 = vmul.f32 %v686, 1.442695
  %v700 = vpow.pop %v699
  %v701 = vmul.f32 %v687, 1.442695
  %v702 = vpow.pop %v701
  %v703 = vmul.f32 %v688, 1.442695
  %v704 = vpow.pop %v703
  %v705 = vmax.f32 %v649, 0.0
  %v706 = vmax.f32 %v650, 0.0
  %v707 = vmax.f32 %v651, 0.0
  %v708 = vmax.f32 %v652, 0.0
  %v709 = vmax.f32 %v653, 0.0
  %v710 = vmax.f32 %v654, 0.0
  %v711 = vmax.f32 %v655, 0.0
  %v712 = vmax.f32 %v656, 0.0
  %v713 = vmul.f32 %v649, %v665
  %v714 = vmul.f32 %v650, %v666
  %v715 = vmul.f32 %v651, %v667
  %v716 = vmul.f32 %v652, %v668
  %v717 = vmul.f32 %v653, %v669
  %v718 = vmul.f32 %v654, %v670
  %v719 = vmul.f32 %v655, %v671
  %v720 = vmul.f32 %v656, %v672
  %v721 = vsub.f32 %v705, %v713
  %v722 = vsub.f32 %v706, %v714
  %v723 = vsub.f32 %v707, %v715
  %v724 = vsub.f32 %v708, %v716
  %v725 = vsub.f32 %v709, %v717
  %v726 = vsub.f32 %v710, %v718
  %v727 = vsub.f32 %v711, %v719
  %v728 = vsub.f32 %v712, %v720
  %v729 = vadd.f32 %v690, 1.0
  %v730 = vlog2.pop %v729
  %v731 = vmul.f32 %v730, 0.6931472
  %v732 = vmul.f32 -0.5, %v690
  %v733 = vadd.f32 %v732, 1.0
  %v734 = vmul.f32 %v733, %v690
  %v735 = vand.u32 2147483647, %v690
  %vm736 = vcmp.lt.f32.partialorder %v735, 0.0004427343
  %v737 = vsel %vm736, %v734, %v731
  %v738 = vadd.f32 %v692, 1.0
  %v739 = vlog2.pop %v738
  %v740 = vmul.f32 %v739, 0.6931472
  %v741 = vmul.f32 -0.5, %v692
  %v742 = vadd.f32 %v741, 1.0
  %v743 = vmul.f32 %v742, %v692
  %v744 = vand.u32 2147483647, %v692
  %vm745 = vcmp.lt.f32.partialorder %v744, 0.0004427343
  %v746 = vsel %vm745, %v743, %v740
  %v747 = vadd.f32 %v694, 1.0
  %v748 = vlog2.pop %v747
  %v749 = vmul.f32 %v748, 0.6931472
  %v750 = vmul.f32 -0.5, %v694
  %v751 = vadd.f32 %v750, 1.0
  %v752 = vmul.f32 %v751, %v694
  %v753 = vand.u32 2147483647, %v694
  %vm754 = vcmp.lt.f32.partialorder %v753, 0.0004427343
  %v755 = vsel %vm754, %v752, %v749
  %v756 = vadd.f32 %v696, 1.0
  %v757 = vlog2.pop %v756
  %v758 = vmul.f32 %v757, 0.6931472
  %v759 = vmul.f32 -0.5, %v696
  %v760 = vadd.f32 %v759, 1.0
  %v761 = vmul.f32 %v760, %v696
  %v762 = vand.u32 2147483647, %v696
  %vm763 = vcmp.lt.f32.partialorder %v762, 0.0004427343
  %v764 = vsel %vm763, %v761, %v758
  %v765 = vadd.f32 %v698, 1.0
  %v766 = vlog2.pop %v765
  %v767 = vmul.f32 %v766, 0.6931472
  %v768 = vmul.f32 -0.5, %v698
  %v769 = vadd.f32 %v768, 1.0
  %v770 = vmul.f32 %v769, %v698
  %v771 = vand.u32 2147483647, %v698
  %vm772 = vcmp.lt.f32.partialorder %v771, 0.0004427343
  %v773 = vsel %vm772, %v770, %v767
  %v774 = vadd.f32 %v700, 1.0
  %v775 = vlog2.pop %v774
  %v776 = vmul.f32 %v775, 0.6931472
  %v777 = vmul.f32 -0.5, %v700
  %v778 = vadd.f32 %v777, 1.0
  %v779 = vmul.f32 %v778, %v700
  %v780 = vand.u32 2147483647, %v700
  %vm781 = vcmp.lt.f32.partialorder %v780, 0.0004427343
  %v782 = vsel %vm781, %v779, %v776
  %v783 = vadd.f32 %v702, 1.0
  %v784 = vlog2.pop %v783
  %v785 = vmul.f32 %v784, 0.6931472
  %v786 = vmul.f32 -0.5, %v702
  %v787 = vadd.f32 %v786, 1.0
  %v788 = vmul.f32 %v787, %v702
  %v789 = vand.u32 2147483647, %v702
  %vm790 = vcmp.lt.f32.partialorder %v789, 0.0004427343
  %v791 = vsel %vm790, %v788, %v785
  %v792 = vadd.f32 %v704, 1.0
  %v793 = vlog2.pop %v792
  %v794 = vmul.f32 %v793, 0.6931472
  %v795 = vmul.f32 -0.5, %v704
  %v796 = vadd.f32 %v795, 1.0
  %v797 = vmul.f32 %v796, %v704
  %v798 = vand.u32 2147483647, %v704
  %vm799 = vcmp.lt.f32.partialorder %v798, 0.0004427343
  %v800 = vsel %vm799, %v797, %v794
  %v801 = vadd.f32 %v721, %v737
  %v802 = vadd.f32 %v722, %v746
  %v803 = vadd.f32 %v723, %v755
  %v804 = vadd.f32 %v724, %v764
  %v805 = vadd.f32 %v725, %v773
  %v806 = vadd.f32 %v726, %v782
  %v807 = vadd.f32 %v727, %v791
  %v808 = vadd.f32 %v728, %v800
  %v809 = vmul.f32 %v649, 0.5
  %v810 = vmul.f32 %v650, 0.5
  %v811 = vmul.f32 %v651, 0.5
  %v812 = vmul.f32 %v652, 0.5
  %v813 = vmul.f32 %v653, 0.5
  %v814 = vmul.f32 %v654, 0.5
  %v815 = vmul.f32 %v655, 0.5
  %v816 = vmul.f32 %v656, 0.5
  %v817 = vtanh.pop %v809
  %v818 = vtanh.pop %v810
  %v819 = vtanh.pop %v811
  %v820 = vtanh.pop %v812
  %v821 = vtanh.pop %v813
  %v822 = vtanh.pop %v814
  %v823 = vtanh.pop %v815
  %v824 = vtanh.pop %v816
  %v825 = vmul.f32 %v817, 0.5
  %v826 = vmul.f32 %v818, 0.5
  %v827 = vmul.f32 %v819, 0.5
  %v828 = vmul.f32 %v820, 0.5
  %v829 = vmul.f32 %v821, 0.5
  %v830 = vmul.f32 %v822, 0.5
  %v831 = vmul.f32 %v823, 0.5
  %v832 = vmul.f32 %v824, 0.5
  %v833 = vadd.f32 %v825, 0.5
  %v834 = vadd.f32 %v826, 0.5
  %v835 = vadd.f32 %v827, 0.5
  %v836 = vadd.f32 %v828, 0.5
  %v837 = vadd.f32 %v829, 0.5
  %v838 = vadd.f32 %v830, 0.5
  %v839 = vadd.f32 %v831, 0.5
  %v840 = vadd.f32 %v832, 0.5
  %v841 = vadd.f32 %v801, %v802
  %v842 = vadd.f32 %v841, %v803
  %v843 = vadd.f32 %v842, %v804
  %v844 = vadd.f32 %v843, %v805
  %v845 = vadd.f32 %v844, %v806
  %v846 = vadd.f32 %v845, %v807
  %v847 = vadd.f32 %v846, %v808
  %v848 = vadd.f32 %v615, %v847
  %v849 = vmul.f32 %v833, %v665
  %v850 = vmul.f32 %v834, %v666
  %v851 = vmul.f32 %v835, %v667
  %v852 = vmul.f32 %v836, %v668
  %v853 = vmul.f32 %v837, %v669
  %v854 = vmul.f32 %v838, %v670
  %v855 = vmul.f32 %v839, %v671
  %v856 = vmul.f32 %v840, %v672
  %v857 = vadd.f32 %v849, %v850
  %v858 = vadd.f32 %v857, %v851
  %v859 = vadd.f32 %v858, %v852
  %v860 = vadd.f32 %v859, %v853
  %v861 = vadd.f32 %v860, %v854
  %v862 = vadd.f32 %v861, %v855
  %v863 = vadd.f32 %v862, %v856
  %v864 = vadd.f32 %v631, %v863
  %v865 = vadd.f32 %v833, %v834
  %v866 = vadd.f32 %v865, %v835
  %v867 = vadd.f32 %v866, %v836
  %v868 = vadd.f32 %v867, %v837
  %v869 = vadd.f32 %v868, %v838
  %v870 = vadd.f32 %v869, %v839
  %v871 = vadd.f32 %v870, %v840
  %v872 = vadd.f32 %v639, %v871
  %s873 = scalar_lea.vmem %s48, 96
  %v874 = vld [vmem:[%s873] sm:$0xf]
  %v875 = vld [vmem:[%s873 + $0x4] sm:$0xf]
  %v876 = vld [vmem:[%s873 + $0x8] sm:$0xf]
  %v877 = vld [vmem:[%s873 + $0xc] sm:$0xf]
  %v878 = vld [vmem:[%s873 + $0x10] sm:$0xf]
  %v879 = vld [vmem:[%s873 + $0x14] sm:$0xf]
  %v880 = vld [vmem:[%s873 + $0x18] sm:$0xf]
  %v881 = vld [vmem:[%s873 + $0x1c] sm:$0xf]
  %v882 = vunpack.c.l.bf16 %v874
  %v883 = vunpack.c.l.bf16 %v875
  %v884 = vunpack.c.l.bf16 %v876
  %v885 = vunpack.c.l.bf16 %v877
  %v886 = vunpack.c.l.bf16 %v878
  %v887 = vunpack.c.l.bf16 %v879
  %v888 = vunpack.c.l.bf16 %v880
  %v889 = vunpack.c.l.bf16 %v881
  %v890 = vld [vmem:[%s148] sm:$0xf]
  %v891 = vld [vmem:[%s148 + $0x4] sm:$0xf]
  %v892 = vld [vmem:[%s148 + $0x8] sm:$0xf]
  %v893 = vld [vmem:[%s148 + $0xc] sm:$0xf]
  %v894 = vld [vmem:[%s148 + $0x10] sm:$0xf]
  %v895 = vld [vmem:[%s148 + $0x14] sm:$0xf]
  %v896 = vld [vmem:[%s148 + $0x18] sm:$0xf]
  %v897 = vld [vmem:[%s148 + $0x1c] sm:$0xf]
  %v898 = vunpack.c.l.bf16 %v890
  %v899 = vunpack.c.l.bf16 %v891
  %v900 = vunpack.c.l.bf16 %v892
  %v901 = vunpack.c.l.bf16 %v893
  %v902 = vunpack.c.l.bf16 %v894
  %v903 = vunpack.c.l.bf16 %v895
  %v904 = vunpack.c.l.bf16 %v896
  %v905 = vunpack.c.l.bf16 %v897
  %v906 = vand.u32 2147483647, %v882
  %v907 = vand.u32 2147483647, %v883
  %v908 = vand.u32 2147483647, %v884
  %v909 = vand.u32 2147483647, %v885
  %v910 = vand.u32 2147483647, %v886
  %v911 = vand.u32 2147483647, %v887
  %v912 = vand.u32 2147483647, %v888
  %v913 = vand.u32 2147483647, %v889
  %v914 = vsub.f32 0.0, %v906
  %v915 = vsub.f32 0.0, %v907
  %v916 = vsub.f32 0.0, %v908
  %v917 = vsub.f32 0.0, %v909
  %v918 = vsub.f32 0.0, %v910
  %v919 = vsub.f32 0.0, %v911
  %v920 = vsub.f32 0.0, %v912
  %v921 = vsub.f32 0.0, %v913
  %v922 = vmul.f32 %v914, 1.442695
  %v923 = vpow.pop %v922
  %v924 = vmul.f32 %v915, 1.442695
  %v925 = vpow.pop %v924
  %v926 = vmul.f32 %v916, 1.442695
  %v927 = vpow.pop %v926
  %v928 = vmul.f32 %v917, 1.442695
  %v929 = vpow.pop %v928
  %v930 = vmul.f32 %v918, 1.442695
  %v931 = vpow.pop %v930
  %v932 = vmul.f32 %v919, 1.442695
  %v933 = vpow.pop %v932
  %v934 = vmul.f32 %v920, 1.442695
  %v935 = vpow.pop %v934
  %v936 = vmul.f32 %v921, 1.442695
  %v937 = vpow.pop %v936
  %v938 = vmax.f32 %v882, 0.0
  %v939 = vmax.f32 %v883, 0.0
  %v940 = vmax.f32 %v884, 0.0
  %v941 = vmax.f32 %v885, 0.0
  %v942 = vmax.f32 %v886, 0.0
  %v943 = vmax.f32 %v887, 0.0
  %v944 = vmax.f32 %v888, 0.0
  %v945 = vmax.f32 %v889, 0.0
  %v946 = vmul.f32 %v882, %v898
  %v947 = vmul.f32 %v883, %v899
  %v948 = vmul.f32 %v884, %v900
  %v949 = vmul.f32 %v885, %v901
  %v950 = vmul.f32 %v886, %v902
  %v951 = vmul.f32 %v887, %v903
  %v952 = vmul.f32 %v888, %v904
  %v953 = vmul.f32 %v889, %v905
  %v954 = vsub.f32 %v938, %v946
  %v955 = vsub.f32 %v939, %v947
  %v956 = vsub.f32 %v940, %v948
  %v957 = vsub.f32 %v941, %v949
  %v958 = vsub.f32 %v942, %v950
  %v959 = vsub.f32 %v943, %v951
  %v960 = vsub.f32 %v944, %v952
  %v961 = vsub.f32 %v945, %v953
  %v962 = vadd.f32 %v923, 1.0
  %v963 = vlog2.pop %v962
  %v964 = vmul.f32 %v963, 0.6931472
  %v965 = vmul.f32 -0.5, %v923
  %v966 = vadd.f32 %v965, 1.0
  %v967 = vmul.f32 %v966, %v923
  %v968 = vand.u32 2147483647, %v923
  %vm969 = vcmp.lt.f32.partialorder %v968, 0.0004427343
  %v970 = vsel %vm969, %v967, %v964
  %v971 = vadd.f32 %v925, 1.0
  %v972 = vlog2.pop %v971
  %v973 = vmul.f32 %v972, 0.6931472
  %v974 = vmul.f32 -0.5, %v925
  %v975 = vadd.f32 %v974, 1.0
  %v976 = vmul.f32 %v975, %v925
  %v977 = vand.u32 2147483647, %v925
  %vm978 = vcmp.lt.f32.partialorder %v977, 0.0004427343
  %v979 = vsel %vm978, %v976, %v973
  %v980 = vadd.f32 %v927, 1.0
  %v981 = vlog2.pop %v980
  %v982 = vmul.f32 %v981, 0.6931472
  %v983 = vmul.f32 -0.5, %v927
  %v984 = vadd.f32 %v983, 1.0
  %v985 = vmul.f32 %v984, %v927
  %v986 = vand.u32 2147483647, %v927
  %vm987 = vcmp.lt.f32.partialorder %v986, 0.0004427343
  %v988 = vsel %vm987, %v985, %v982
  %v989 = vadd.f32 %v929, 1.0
  %v990 = vlog2.pop %v989
  %v991 = vmul.f32 %v990, 0.6931472
  %v992 = vmul.f32 -0.5, %v929
  %v993 = vadd.f32 %v992, 1.0
  %v994 = vmul.f32 %v993, %v929
  %v995 = vand.u32 2147483647, %v929
  %vm996 = vcmp.lt.f32.partialorder %v995, 0.0004427343
  %v997 = vsel %vm996, %v994, %v991
  %v998 = vadd.f32 %v931, 1.0
  %v999 = vlog2.pop %v998
  %v1000 = vmul.f32 %v999, 0.6931472
  %v1001 = vmul.f32 -0.5, %v931
  %v1002 = vadd.f32 %v1001, 1.0
  %v1003 = vmul.f32 %v1002, %v931
  %v1004 = vand.u32 2147483647, %v931
  %vm1005 = vcmp.lt.f32.partialorder %v1004, 0.0004427343
  %v1006 = vsel %vm1005, %v1003, %v1000
  %v1007 = vadd.f32 %v933, 1.0
  %v1008 = vlog2.pop %v1007
  %v1009 = vmul.f32 %v1008, 0.6931472
  %v1010 = vmul.f32 -0.5, %v933
  %v1011 = vadd.f32 %v1010, 1.0
  %v1012 = vmul.f32 %v1011, %v933
  %v1013 = vand.u32 2147483647, %v933
  %vm1014 = vcmp.lt.f32.partialorder %v1013, 0.0004427343
  %v1015 = vsel %vm1014, %v1012, %v1009
  %v1016 = vadd.f32 %v935, 1.0
  %v1017 = vlog2.pop %v1016
  %v1018 = vmul.f32 %v1017, 0.6931472
  %v1019 = vmul.f32 -0.5, %v935
  %v1020 = vadd.f32 %v1019, 1.0
  %v1021 = vmul.f32 %v1020, %v935
  %v1022 = vand.u32 2147483647, %v935
  %vm1023 = vcmp.lt.f32.partialorder %v1022, 0.0004427343
  %v1024 = vsel %vm1023, %v1021, %v1018
  %v1025 = vadd.f32 %v937, 1.0
  %v1026 = vlog2.pop %v1025
  %v1027 = vmul.f32 %v1026, 0.6931472
  %v1028 = vmul.f32 -0.5, %v937
  %v1029 = vadd.f32 %v1028, 1.0
  %v1030 = vmul.f32 %v1029, %v937
  %v1031 = vand.u32 2147483647, %v937
  %vm1032 = vcmp.lt.f32.partialorder %v1031, 0.0004427343
  %v1033 = vsel %vm1032, %v1030, %v1027
  %v1034 = vadd.f32 %v954, %v970
  %v1035 = vadd.f32 %v955, %v979
  %v1036 = vadd.f32 %v956, %v988
  %v1037 = vadd.f32 %v957, %v997
  %v1038 = vadd.f32 %v958, %v1006
  %v1039 = vadd.f32 %v959, %v1015
  %v1040 = vadd.f32 %v960, %v1024
  %v1041 = vadd.f32 %v961, %v1033
  %v1042 = vmul.f32 %v882, 0.5
  %v1043 = vmul.f32 %v883, 0.5
  %v1044 = vmul.f32 %v884, 0.5
  %v1045 = vmul.f32 %v885, 0.5
  %v1046 = vmul.f32 %v886, 0.5
  %v1047 = vmul.f32 %v887, 0.5
  %v1048 = vmul.f32 %v888, 0.5
  %v1049 = vmul.f32 %v889, 0.5
  %v1050 = vtanh.pop %v1042
  %v1051 = vtanh.pop %v1043
  %v1052 = vtanh.pop %v1044
  %v1053 = vtanh.pop %v1045
  %v1054 = vtanh.pop %v1046
  %v1055 = vtanh.pop %v1047
  %v1056 = vtanh.pop %v1048
  %v1057 = vtanh.pop %v1049
  %v1058 = vmul.f32 %v1050, 0.5
  %v1059 = vmul.f32 %v1051, 0.5
  %v1060 = vmul.f32 %v1052, 0.5
  %v1061 = vmul.f32 %v1053, 0.5
  %v1062 = vmul.f32 %v1054, 0.5
  %v1063 = vmul.f32 %v1055, 0.5
  %v1064 = vmul.f32 %v1056, 0.5
  %v1065 = vmul.f32 %v1057, 0.5
  %v1066 = vadd.f32 %v1058, 0.5
  %v1067 = vadd.f32 %v1059, 0.5
  %v1068 = vadd.f32 %v1060, 0.5
  %v1069 = vadd.f32 %v1061, 0.5
  %v1070 = vadd.f32 %v1062, 0.5
  %v1071 = vadd.f32 %v1063, 0.5
  %v1072 = vadd.f32 %v1064, 0.5
  %v1073 = vadd.f32 %v1065, 0.5
  %v1074 = vadd.f32 %v1034, %v1035
  %v1075 = vadd.f32 %v1074, %v1036
  %v1076 = vadd.f32 %v1075, %v1037
  %v1077 = vadd.f32 %v1076, %v1038
  %v1078 = vadd.f32 %v1077, %v1039
  %v1079 = vadd.f32 %v1078, %v1040
  %v1080 = vadd.f32 %v1079, %v1041
  %v1081 = vadd.f32 %v848, %v1080
  %v1082 = vmul.f32 %v1066, %v898
  %v1083 = vmul.f32 %v1067, %v899
  %v1084 = vmul.f32 %v1068, %v900
  %v1085 = vmul.f32 %v1069, %v901
  %v1086 = vmul.f32 %v1070, %v902
  %v1087 = vmul.f32 %v1071, %v903
  %v1088 = vmul.f32 %v1072, %v904
  %v1089 = vmul.f32 %v1073, %v905
  %v1090 = vadd.f32 %v1082, %v1083
  %v1091 = vadd.f32 %v1090, %v1084
  %v1092 = vadd.f32 %v1091, %v1085
  %v1093 = vadd.f32 %v1092, %v1086
  %v1094 = vadd.f32 %v1093, %v1087
  %v1095 = vadd.f32 %v1094, %v1088
  %v1096 = vadd.f32 %v1095, %v1089
  %v1097 = vadd.f32 %v864, %v1096
  %v1098 = vadd.f32 %v1066, %v1067
  %v1099 = vadd.f32 %v1098, %v1068
  %v1100 = vadd.f32 %v1099, %v1069
  %v1101 = vadd.f32 %v1100, %v1070
  %v1102 = vadd.f32 %v1101, %v1071
  %v1103 = vadd.f32 %v1102, %v1072
  %v1104 = vadd.f32 %v1103, %v1073
  %v1105 = vadd.f32 %v872, %v1104
  %v1106 = vld [vmem:[%s2] sm:$0xff]
  %v1107 = vadd.f32 %v1106, %v1081
  %1108 = vst [vmem:[%s2] sm:$0xff] %v1107
  %v1109 = vld [vmem:[%s3] sm:$0xff]
  %v1110 = vadd.f32 %v1109, %v1097
  %1111 = vst [vmem:[%s3] sm:$0xff] %v1110
  %v1112 = vld [vmem:[%s4] sm:$0xff]
  %v1113 = vadd.f32 %v1112, %v1105
  %1114 = vst [vmem:[%s4] sm:$0xff] %v1113
  %s1115 = sadd.s32 0, 32
  %s1116 = smul.addr %s1115, 4
  %s1117 = scalar_lea.vmem %s48, %s1116
  %v1118 = vld [vmem:[%s1117] sm:$0xf]
  %v1119 = vld [vmem:[%s1117 + $0x4] sm:$0xf]
  %v1120 = vld [vmem:[%s1117 + $0x8] sm:$0xf]
  %v1121 = vld [vmem:[%s1117 + $0xc] sm:$0xf]
  %v1122 = vld [vmem:[%s1117 + $0x10] sm:$0xf]
  %v1123 = vld [vmem:[%s1117 + $0x14] sm:$0xf]
  %v1124 = vld [vmem:[%s1117 + $0x18] sm:$0xf]
  %v1125 = vld [vmem:[%s1117 + $0x1c] sm:$0xf]
  %v1126 = vunpack.c.l.bf16 %v1118
  %v1127 = vunpack.c.l.bf16 %v1119
  %v1128 = vunpack.c.l.bf16 %v1120
  %v1129 = vunpack.c.l.bf16 %v1121
  %v1130 = vunpack.c.l.bf16 %v1122
  %v1131 = vunpack.c.l.bf16 %v1123
  %v1132 = vunpack.c.l.bf16 %v1124
  %v1133 = vunpack.c.l.bf16 %v1125
  %v1134 = vld [vmem:[%s56] sm:$0xf]
  %v1135 = vld [vmem:[%s56 + $0x4] sm:$0xf]
  %v1136 = vld [vmem:[%s56 + $0x8] sm:$0xf]
  %v1137 = vld [vmem:[%s56 + $0xc] sm:$0xf]
  %v1138 = vld [vmem:[%s56 + $0x10] sm:$0xf]
  %v1139 = vld [vmem:[%s56 + $0x14] sm:$0xf]
  %v1140 = vld [vmem:[%s56 + $0x18] sm:$0xf]
  %v1141 = vld [vmem:[%s56 + $0x1c] sm:$0xf]
  %v1142 = vunpack.c.l.bf16 %v1134
  %v1143 = vunpack.c.l.bf16 %v1135
  %v1144 = vunpack.c.l.bf16 %v1136
  %v1145 = vunpack.c.l.bf16 %v1137
  %v1146 = vunpack.c.l.bf16 %v1138
  %v1147 = vunpack.c.l.bf16 %v1139
  %v1148 = vunpack.c.l.bf16 %v1140
  %v1149 = vunpack.c.l.bf16 %v1141
  %v1150 = vand.u32 2147483647, %v1126
  %v1151 = vand.u32 2147483647, %v1127
  %v1152 = vand.u32 2147483647, %v1128
  %v1153 = vand.u32 2147483647, %v1129
  %v1154 = vand.u32 2147483647, %v1130
  %v1155 = vand.u32 2147483647, %v1131
  %v1156 = vand.u32 2147483647, %v1132
  %v1157 = vand.u32 2147483647, %v1133
  %v1158 = vsub.f32 0.0, %v1150
  %v1159 = vsub.f32 0.0, %v1151
  %v1160 = vsub.f32 0.0, %v1152
  %v1161 = vsub.f32 0.0, %v1153
  %v1162 = vsub.f32 0.0, %v1154
  %v1163 = vsub.f32 0.0, %v1155
  %v1164 = vsub.f32 0.0, %v1156
  %v1165 = vsub.f32 0.0, %v1157
  %v1166 = vmul.f32 %v1158, 1.442695
  %v1167 = vpow.pop %v1166
  %v1168 = vmul.f32 %v1159, 1.442695
  %v1169 = vpow.pop %v1168
  %v1170 = vmul.f32 %v1160, 1.442695
  %v1171 = vpow.pop %v1170
  %v1172 = vmul.f32 %v1161, 1.442695
  %v1173 = vpow.pop %v1172
  %v1174 = vmul.f32 %v1162, 1.442695
  %v1175 = vpow.pop %v1174
  %v1176 = vmul.f32 %v1163, 1.442695
  %v1177 = vpow.pop %v1176
  %v1178 = vmul.f32 %v1164, 1.442695
  %v1179 = vpow.pop %v1178
  %v1180 = vmul.f32 %v1165, 1.442695
  %v1181 = vpow.pop %v1180
  %v1182 = vmax.f32 %v1126, 0.0
  %v1183 = vmax.f32 %v1127, 0.0
  %v1184 = vmax.f32 %v1128, 0.0
  %v1185 = vmax.f32 %v1129, 0.0
  %v1186 = vmax.f32 %v1130, 0.0
  %v1187 = vmax.f32 %v1131, 0.0
  %v1188 = vmax.f32 %v1132, 0.0
  %v1189 = vmax.f32 %v1133, 0.0
  %v1190 = vmul.f32 %v1126, %v1142
  %v1191 = vmul.f32 %v1127, %v1143
  %v1192 = vmul.f32 %v1128, %v1144
  %v1193 = vmul.f32 %v1129, %v1145
  %v1194 = vmul.f32 %v1130, %v1146
  %v1195 = vmul.f32 %v1131, %v1147
  %v1196 = vmul.f32 %v1132, %v1148
  %v1197 = vmul.f32 %v1133, %v1149
  %v1198 = vsub.f32 %v1182, %v1190
  %v1199 = vsub.f32 %v1183, %v1191
  %v1200 = vsub.f32 %v1184, %v1192
  %v1201 = vsub.f32 %v1185, %v1193
  %v1202 = vsub.f32 %v1186, %v1194
  %v1203 = vsub.f32 %v1187, %v1195
  %v1204 = vsub.f32 %v1188, %v1196
  %v1205 = vsub.f32 %v1189, %v1197
  %v1206 = vadd.f32 %v1167, 1.0
  %v1207 = vlog2.pop %v1206
  %v1208 = vmul.f32 %v1207, 0.6931472
  %v1209 = vmul.f32 -0.5, %v1167
  %v1210 = vadd.f32 %v1209, 1.0
  %v1211 = vmul.f32 %v1210, %v1167
  %v1212 = vand.u32 2147483647, %v1167
  %vm1213 = vcmp.lt.f32.partialorder %v1212, 0.0004427343
  %v1214 = vsel %vm1213, %v1211, %v1208
  %v1215 = vadd.f32 %v1169, 1.0
  %v1216 = vlog2.pop %v1215
  %v1217 = vmul.f32 %v1216, 0.6931472
  %v1218 = vmul.f32 -0.5, %v1169
  %v1219 = vadd.f32 %v1218, 1.0
  %v1220 = vmul.f32 %v1219, %v1169
  %v1221 = vand.u32 2147483647, %v1169
  %vm1222 = vcmp.lt.f32.partialorder %v1221, 0.0004427343
  %v1223 = vsel %vm1222, %v1220, %v1217
  %v1224 = vadd.f32 %v1171, 1.0
  %v1225 = vlog2.pop %v1224
  %v1226 = vmul.f32 %v1225, 0.6931472
  %v1227 = vmul.f32 -0.5, %v1171
  %v1228 = vadd.f32 %v1227, 1.0
  %v1229 = vmul.f32 %v1228, %v1171
  %v1230 = vand.u32 2147483647, %v1171
  %vm1231 = vcmp.lt.f32.partialorder %v1230, 0.0004427343
  %v1232 = vsel %vm1231, %v1229, %v1226
  %v1233 = vadd.f32 %v1173, 1.0
  %v1234 = vlog2.pop %v1233
  %v1235 = vmul.f32 %v1234, 0.6931472
  %v1236 = vmul.f32 -0.5, %v1173
  %v1237 = vadd.f32 %v1236, 1.0
  %v1238 = vmul.f32 %v1237, %v1173
  %v1239 = vand.u32 2147483647, %v1173
  %vm1240 = vcmp.lt.f32.partialorder %v1239, 0.0004427343
  %v1241 = vsel %vm1240, %v1238, %v1235
  %v1242 = vadd.f32 %v1175, 1.0
  %v1243 = vlog2.pop %v1242
  %v1244 = vmul.f32 %v1243, 0.6931472
  %v1245 = vmul.f32 -0.5, %v1175
  %v1246 = vadd.f32 %v1245, 1.0
  %v1247 = vmul.f32 %v1246, %v1175
  %v1248 = vand.u32 2147483647, %v1175
  %vm1249 = vcmp.lt.f32.partialorder %v1248, 0.0004427343
  %v1250 = vsel %vm1249, %v1247, %v1244
  %v1251 = vadd.f32 %v1177, 1.0
  %v1252 = vlog2.pop %v1251
  %v1253 = vmul.f32 %v1252, 0.6931472
  %v1254 = vmul.f32 -0.5, %v1177
  %v1255 = vadd.f32 %v1254, 1.0
  %v1256 = vmul.f32 %v1255, %v1177
  %v1257 = vand.u32 2147483647, %v1177
  %vm1258 = vcmp.lt.f32.partialorder %v1257, 0.0004427343
  %v1259 = vsel %vm1258, %v1256, %v1253
  %v1260 = vadd.f32 %v1179, 1.0
  %v1261 = vlog2.pop %v1260
  %v1262 = vmul.f32 %v1261, 0.6931472
  %v1263 = vmul.f32 -0.5, %v1179
  %v1264 = vadd.f32 %v1263, 1.0
  %v1265 = vmul.f32 %v1264, %v1179
  %v1266 = vand.u32 2147483647, %v1179
  %vm1267 = vcmp.lt.f32.partialorder %v1266, 0.0004427343
  %v1268 = vsel %vm1267, %v1265, %v1262
  %v1269 = vadd.f32 %v1181, 1.0
  %v1270 = vlog2.pop %v1269
  %v1271 = vmul.f32 %v1270, 0.6931472
  %v1272 = vmul.f32 -0.5, %v1181
  %v1273 = vadd.f32 %v1272, 1.0
  %v1274 = vmul.f32 %v1273, %v1181
  %v1275 = vand.u32 2147483647, %v1181
  %vm1276 = vcmp.lt.f32.partialorder %v1275, 0.0004427343
  %v1277 = vsel %vm1276, %v1274, %v1271
  %v1278 = vadd.f32 %v1198, %v1214
  %v1279 = vadd.f32 %v1199, %v1223
  %v1280 = vadd.f32 %v1200, %v1232
  %v1281 = vadd.f32 %v1201, %v1241
  %v1282 = vadd.f32 %v1202, %v1250
  %v1283 = vadd.f32 %v1203, %v1259
  %v1284 = vadd.f32 %v1204, %v1268
  %v1285 = vadd.f32 %v1205, %v1277
  %v1286 = vmul.f32 %v1126, 0.5
  %v1287 = vmul.f32 %v1127, 0.5
  %v1288 = vmul.f32 %v1128, 0.5
  %v1289 = vmul.f32 %v1129, 0.5
  %v1290 = vmul.f32 %v1130, 0.5
  %v1291 = vmul.f32 %v1131, 0.5
  %v1292 = vmul.f32 %v1132, 0.5
  %v1293 = vmul.f32 %v1133, 0.5
  %v1294 = vtanh.pop %v1286
  %v1295 = vtanh.pop %v1287
  %v1296 = vtanh.pop %v1288
  %v1297 = vtanh.pop %v1289
  %v1298 = vtanh.pop %v1290
  %v1299 = vtanh.pop %v1291
  %v1300 = vtanh.pop %v1292
  %v1301 = vtanh.pop %v1293
  %v1302 = vmul.f32 %v1294, 0.5
  %v1303 = vmul.f32 %v1295, 0.5
  %v1304 = vmul.f32 %v1296, 0.5
  %v1305 = vmul.f32 %v1297, 0.5
  %v1306 = vmul.f32 %v1298, 0.5
  %v1307 = vmul.f32 %v1299, 0.5
  %v1308 = vmul.f32 %v1300, 0.5
  %v1309 = vmul.f32 %v1301, 0.5
  %v1310 = vadd.f32 %v1302, 0.5
  %v1311 = vadd.f32 %v1303, 0.5
  %v1312 = vadd.f32 %v1304, 0.5
  %v1313 = vadd.f32 %v1305, 0.5
  %v1314 = vadd.f32 %v1306, 0.5
  %v1315 = vadd.f32 %v1307, 0.5
  %v1316 = vadd.f32 %v1308, 0.5
  %v1317 = vadd.f32 %v1309, 0.5
  %v1318 = vadd.f32 %v1278, %v1279
  %v1319 = vadd.f32 %v1318, %v1280
  %v1320 = vadd.f32 %v1319, %v1281
  %v1321 = vadd.f32 %v1320, %v1282
  %v1322 = vadd.f32 %v1321, %v1283
  %v1323 = vadd.f32 %v1322, %v1284
  %v1324 = vadd.f32 %v1323, %v1285
  %v1325 = vadd.f32 %v1324, 0.0
  %v1326 = vmul.f32 %v1310, %v1142
  %v1327 = vmul.f32 %v1311, %v1143
  %v1328 = vmul.f32 %v1312, %v1144
  %v1329 = vmul.f32 %v1313, %v1145
  %v1330 = vmul.f32 %v1314, %v1146
  %v1331 = vmul.f32 %v1315, %v1147
  %v1332 = vmul.f32 %v1316, %v1148
  %v1333 = vmul.f32 %v1317, %v1149
  %v1334 = vadd.f32 %v1326, %v1327
  %v1335 = vadd.f32 %v1334, %v1328
  %v1336 = vadd.f32 %v1335, %v1329
  %v1337 = vadd.f32 %v1336, %v1330
  %v1338 = vadd.f32 %v1337, %v1331
  %v1339 = vadd.f32 %v1338, %v1332
  %v1340 = vadd.f32 %v1339, %v1333
  %v1341 = vadd.f32 %v1340, 0.0
  %v1342 = vadd.f32 %v1310, %v1311
  %v1343 = vadd.f32 %v1342, %v1312
  %v1344 = vadd.f32 %v1343, %v1313
  %v1345 = vadd.f32 %v1344, %v1314
  %v1346 = vadd.f32 %v1345, %v1315
  %v1347 = vadd.f32 %v1346, %v1316
  %v1348 = vadd.f32 %v1347, %v1317
  %v1349 = vadd.f32 %v1348, 0.0
  %s1350 = sadd.s32 8, 32
  %s1351 = smul.addr %s1350, 4
  %s1352 = scalar_lea.vmem %s48, %s1351
  %v1353 = vld [vmem:[%s1352] sm:$0xf]
  %v1354 = vld [vmem:[%s1352 + $0x4] sm:$0xf]
  %v1355 = vld [vmem:[%s1352 + $0x8] sm:$0xf]
  %v1356 = vld [vmem:[%s1352 + $0xc] sm:$0xf]
  %v1357 = vld [vmem:[%s1352 + $0x10] sm:$0xf]
  %v1358 = vld [vmem:[%s1352 + $0x14] sm:$0xf]
  %v1359 = vld [vmem:[%s1352 + $0x18] sm:$0xf]
  %v1360 = vld [vmem:[%s1352 + $0x1c] sm:$0xf]
  %v1361 = vunpack.c.l.bf16 %v1353
  %v1362 = vunpack.c.l.bf16 %v1354
  %v1363 = vunpack.c.l.bf16 %v1355
  %v1364 = vunpack.c.l.bf16 %v1356
  %v1365 = vunpack.c.l.bf16 %v1357
  %v1366 = vunpack.c.l.bf16 %v1358
  %v1367 = vunpack.c.l.bf16 %v1359
  %v1368 = vunpack.c.l.bf16 %v1360
  %v1369 = vld [vmem:[%s98] sm:$0xf]
  %v1370 = vld [vmem:[%s98 + $0x4] sm:$0xf]
  %v1371 = vld [vmem:[%s98 + $0x8] sm:$0xf]
  %v1372 = vld [vmem:[%s98 + $0xc] sm:$0xf]
  %v1373 = vld [vmem:[%s98 + $0x10] sm:$0xf]
  %v1374 = vld [vmem:[%s98 + $0x14] sm:$0xf]
  %v1375 = vld [vmem:[%s98 + $0x18] sm:$0xf]
  %v1376 = vld [vmem:[%s98 + $0x1c] sm:$0xf]
  %v1377 = vunpack.c.l.bf16 %v1369
  %v1378 = vunpack.c.l.bf16 %v1370
  %v1379 = vunpack.c.l.bf16 %v1371
  %v1380 = vunpack.c.l.bf16 %v1372
  %v1381 = vunpack.c.l.bf16 %v1373
  %v1382 = vunpack.c.l.bf16 %v1374
  %v1383 = vunpack.c.l.bf16 %v1375
  %v1384 = vunpack.c.l.bf16 %v1376
  %v1385 = vand.u32 2147483647, %v1361
  %v1386 = vand.u32 2147483647, %v1362
  %v1387 = vand.u32 2147483647, %v1363
  %v1388 = vand.u32 2147483647, %v1364
  %v1389 = vand.u32 2147483647, %v1365
  %v1390 = vand.u32 2147483647, %v1366
  %v1391 = vand.u32 2147483647, %v1367
  %v1392 = vand.u32 2147483647, %v1368
  %v1393 = vsub.f32 0.0, %v1385
  %v1394 = vsub.f32 0.0, %v1386
  %v1395 = vsub.f32 0.0, %v1387
  %v1396 = vsub.f32 0.0, %v1388
  %v1397 = vsub.f32 0.0, %v1389
  %v1398 = vsub.f32 0.0, %v1390
  %v1399 = vsub.f32 0.0, %v1391
  %v1400 = vsub.f32 0.0, %v1392
  %v1401 = vmul.f32 %v1393, 1.442695
  %v1402 = vpow.pop %v1401
  %v1403 = vmul.f32 %v1394, 1.442695
  %v1404 = vpow.pop %v1403
  %v1405 = vmul.f32 %v1395, 1.442695
  %v1406 = vpow.pop %v1405
  %v1407 = vmul.f32 %v1396, 1.442695
  %v1408 = vpow.pop %v1407
  %v1409 = vmul.f32 %v1397, 1.442695
  %v1410 = vpow.pop %v1409
  %v1411 = vmul.f32 %v1398, 1.442695
  %v1412 = vpow.pop %v1411
  %v1413 = vmul.f32 %v1399, 1.442695
  %v1414 = vpow.pop %v1413
  %v1415 = vmul.f32 %v1400, 1.442695
  %v1416 = vpow.pop %v1415
  %v1417 = vmax.f32 %v1361, 0.0
  %v1418 = vmax.f32 %v1362, 0.0
  %v1419 = vmax.f32 %v1363, 0.0
  %v1420 = vmax.f32 %v1364, 0.0
  %v1421 = vmax.f32 %v1365, 0.0
  %v1422 = vmax.f32 %v1366, 0.0
  %v1423 = vmax.f32 %v1367, 0.0
  %v1424 = vmax.f32 %v1368, 0.0
  %v1425 = vmul.f32 %v1361, %v1377
  %v1426 = vmul.f32 %v1362, %v1378
  %v1427 = vmul.f32 %v1363, %v1379
  %v1428 = vmul.f32 %v1364, %v1380
  %v1429 = vmul.f32 %v1365, %v1381
  %v1430 = vmul.f32 %v1366, %v1382
  %v1431 = vmul.f32 %v1367, %v1383
  %v1432 = vmul.f32 %v1368, %v1384
  %v1433 = vsub.f32 %v1417, %v1425
  %v1434 = vsub.f32 %v1418, %v1426
  %v1435 = vsub.f32 %v1419, %v1427
  %v1436 = vsub.f32 %v1420, %v1428
  %v1437 = vsub.f32 %v1421, %v1429
  %v1438 = vsub.f32 %v1422, %v1430
  %v1439 = vsub.f32 %v1423, %v1431
  %v1440 = vsub.f32 %v1424, %v1432
  %v1441 = vadd.f32 %v1402, 1.0
  %v1442 = vlog2.pop %v1441
  %v1443 = vmul.f32 %v1442, 0.6931472
  %v1444 = vmul.f32 -0.5, %v1402
  %v1445 = vadd.f32 %v1444, 1.0
  %v1446 = vmul.f32 %v1445, %v1402
  %v1447 = vand.u32 2147483647, %v1402
  %vm1448 = vcmp.lt.f32.partialorder %v1447, 0.0004427343
  %v1449 = vsel %vm1448, %v1446, %v1443
  %v1450 = vadd.f32 %v1404, 1.0
  %v1451 = vlog2.pop %v1450
  %v1452 = vmul.f32 %v1451, 0.6931472
  %v1453 = vmul.f32 -0.5, %v1404
  %v1454 = vadd.f32 %v1453, 1.0
  %v1455 = vmul.f32 %v1454, %v1404
  %v1456 = vand.u32 2147483647, %v1404
  %vm1457 = vcmp.lt.f32.partialorder %v1456, 0.0004427343
  %v1458 = vsel %vm1457, %v1455, %v1452
  %v1459 = vadd.f32 %v1406, 1.0
  %v1460 = vlog2.pop %v1459
  %v1461 = vmul.f32 %v1460, 0.6931472
  %v1462 = vmul.f32 -0.5, %v1406
  %v1463 = vadd.f32 %v1462, 1.0
  %v1464 = vmul.f32 %v1463, %v1406
  %v1465 = vand.u32 2147483647, %v1406
  %vm1466 = vcmp.lt.f32.partialorder %v1465, 0.0004427343
  %v1467 = vsel %vm1466, %v1464, %v1461
  %v1468 = vadd.f32 %v1408, 1.0
  %v1469 = vlog2.pop %v1468
  %v1470 = vmul.f32 %v1469, 0.6931472
  %v1471 = vmul.f32 -0.5, %v1408
  %v1472 = vadd.f32 %v1471, 1.0
  %v1473 = vmul.f32 %v1472, %v1408
  %v1474 = vand.u32 2147483647, %v1408
  %vm1475 = vcmp.lt.f32.partialorder %v1474, 0.0004427343
  %v1476 = vsel %vm1475, %v1473, %v1470
  %v1477 = vadd.f32 %v1410, 1.0
  %v1478 = vlog2.pop %v1477
  %v1479 = vmul.f32 %v1478, 0.6931472
  %v1480 = vmul.f32 -0.5, %v1410
  %v1481 = vadd.f32 %v1480, 1.0
  %v1482 = vmul.f32 %v1481, %v1410
  %v1483 = vand.u32 2147483647, %v1410
  %vm1484 = vcmp.lt.f32.partialorder %v1483, 0.0004427343
  %v1485 = vsel %vm1484, %v1482, %v1479
  %v1486 = vadd.f32 %v1412, 1.0
  %v1487 = vlog2.pop %v1486
  %v1488 = vmul.f32 %v1487, 0.6931472
  %v1489 = vmul.f32 -0.5, %v1412
  %v1490 = vadd.f32 %v1489, 1.0
  %v1491 = vmul.f32 %v1490, %v1412
  %v1492 = vand.u32 2147483647, %v1412
  %vm1493 = vcmp.lt.f32.partialorder %v1492, 0.0004427343
  %v1494 = vsel %vm1493, %v1491, %v1488
  %v1495 = vadd.f32 %v1414, 1.0
  %v1496 = vlog2.pop %v1495
  %v1497 = vmul.f32 %v1496, 0.6931472
  %v1498 = vmul.f32 -0.5, %v1414
  %v1499 = vadd.f32 %v1498, 1.0
  %v1500 = vmul.f32 %v1499, %v1414
  %v1501 = vand.u32 2147483647, %v1414
  %vm1502 = vcmp.lt.f32.partialorder %v1501, 0.0004427343
  %v1503 = vsel %vm1502, %v1500, %v1497
  %v1504 = vadd.f32 %v1416, 1.0
  %v1505 = vlog2.pop %v1504
  %v1506 = vmul.f32 %v1505, 0.6931472
  %v1507 = vmul.f32 -0.5, %v1416
  %v1508 = vadd.f32 %v1507, 1.0
  %v1509 = vmul.f32 %v1508, %v1416
  %v1510 = vand.u32 2147483647, %v1416
  %vm1511 = vcmp.lt.f32.partialorder %v1510, 0.0004427343
  %v1512 = vsel %vm1511, %v1509, %v1506
  %v1513 = vadd.f32 %v1433, %v1449
  %v1514 = vadd.f32 %v1434, %v1458
  %v1515 = vadd.f32 %v1435, %v1467
  %v1516 = vadd.f32 %v1436, %v1476
  %v1517 = vadd.f32 %v1437, %v1485
  %v1518 = vadd.f32 %v1438, %v1494
  %v1519 = vadd.f32 %v1439, %v1503
  %v1520 = vadd.f32 %v1440, %v1512
  %v1521 = vmul.f32 %v1361, 0.5
  %v1522 = vmul.f32 %v1362, 0.5
  %v1523 = vmul.f32 %v1363, 0.5
  %v1524 = vmul.f32 %v1364, 0.5
  %v1525 = vmul.f32 %v1365, 0.5
  %v1526 = vmul.f32 %v1366, 0.5
  %v1527 = vmul.f32 %v1367, 0.5
  %v1528 = vmul.f32 %v1368, 0.5
  %v1529 = vtanh.pop %v1521
  %v1530 = vtanh.pop %v1522
  %v1531 = vtanh.pop %v1523
  %v1532 = vtanh.pop %v1524
  %v1533 = vtanh.pop %v1525
  %v1534 = vtanh.pop %v1526
  %v1535 = vtanh.pop %v1527
  %v1536 = vtanh.pop %v1528
  %v1537 = vmul.f32 %v1529, 0.5
  %v1538 = vmul.f32 %v1530, 0.5
  %v1539 = vmul.f32 %v1531, 0.5
  %v1540 = vmul.f32 %v1532, 0.5
  %v1541 = vmul.f32 %v1533, 0.5
  %v1542 = vmul.f32 %v1534, 0.5
  %v1543 = vmul.f32 %v1535, 0.5
  %v1544 = vmul.f32 %v1536, 0.5
  %v1545 = vadd.f32 %v1537, 0.5
  %v1546 = vadd.f32 %v1538, 0.5
  %v1547 = vadd.f32 %v1539, 0.5
  %v1548 = vadd.f32 %v1540, 0.5
  %v1549 = vadd.f32 %v1541, 0.5
  %v1550 = vadd.f32 %v1542, 0.5
  %v1551 = vadd.f32 %v1543, 0.5
  %v1552 = vadd.f32 %v1544, 0.5
  %v1553 = vadd.f32 %v1513, %v1514
  %v1554 = vadd.f32 %v1553, %v1515
  %v1555 = vadd.f32 %v1554, %v1516
  %v1556 = vadd.f32 %v1555, %v1517
  %v1557 = vadd.f32 %v1556, %v1518
  %v1558 = vadd.f32 %v1557, %v1519
  %v1559 = vadd.f32 %v1558, %v1520
  %v1560 = vadd.f32 %v1325, %v1559
  %v1561 = vmul.f32 %v1545, %v1377
  %v1562 = vmul.f32 %v1546, %v1378
  %v1563 = vmul.f32 %v1547, %v1379
  %v1564 = vmul.f32 %v1548, %v1380
  %v1565 = vmul.f32 %v1549, %v1381
  %v1566 = vmul.f32 %v1550, %v1382
  %v1567 = vmul.f32 %v1551, %v1383
  %v1568 = vmul.f32 %v1552, %v1384
  %v1569 = vadd.f32 %v1561, %v1562
  %v1570 = vadd.f32 %v1569, %v1563
  %v1571 = vadd.f32 %v1570, %v1564
  %v1572 = vadd.f32 %v1571, %v1565
  %v1573 = vadd.f32 %v1572, %v1566
  %v1574 = vadd.f32 %v1573, %v1567
  %v1575 = vadd.f32 %v1574, %v1568
  %v1576 = vadd.f32 %v1341, %v1575
  %v1577 = vadd.f32 %v1545, %v1546
  %v1578 = vadd.f32 %v1577, %v1547
  %v1579 = vadd.f32 %v1578, %v1548
  %v1580 = vadd.f32 %v1579, %v1549
  %v1581 = vadd.f32 %v1580, %v1550
  %v1582 = vadd.f32 %v1581, %v1551
  %v1583 = vadd.f32 %v1582, %v1552
  %v1584 = vadd.f32 %v1349, %v1583
  %s1585 = sadd.s32 16, 32
  %s1586 = smul.addr %s1585, 4
  %s1587 = scalar_lea.vmem %s48, %s1586
  %v1588 = vld [vmem:[%s1587] sm:$0xf]
  %v1589 = vld [vmem:[%s1587 + $0x4] sm:$0xf]
  %v1590 = vld [vmem:[%s1587 + $0x8] sm:$0xf]
  %v1591 = vld [vmem:[%s1587 + $0xc] sm:$0xf]
  %v1592 = vld [vmem:[%s1587 + $0x10] sm:$0xf]
  %v1593 = vld [vmem:[%s1587 + $0x14] sm:$0xf]
  %v1594 = vld [vmem:[%s1587 + $0x18] sm:$0xf]
  %v1595 = vld [vmem:[%s1587 + $0x1c] sm:$0xf]
  %v1596 = vunpack.c.l.bf16 %v1588
  %v1597 = vunpack.c.l.bf16 %v1589
  %v1598 = vunpack.c.l.bf16 %v1590
  %v1599 = vunpack.c.l.bf16 %v1591
  %v1600 = vunpack.c.l.bf16 %v1592
  %v1601 = vunpack.c.l.bf16 %v1593
  %v1602 = vunpack.c.l.bf16 %v1594
  %v1603 = vunpack.c.l.bf16 %v1595
  %v1604 = vld [vmem:[%s123] sm:$0xf]
  %v1605 = vld [vmem:[%s123 + $0x4] sm:$0xf]
  %v1606 = vld [vmem:[%s123 + $0x8] sm:$0xf]
  %v1607 = vld [vmem:[%s123 + $0xc] sm:$0xf]
  %v1608 = vld [vmem:[%s123 + $0x10] sm:$0xf]
  %v1609 = vld [vmem:[%s123 + $0x14] sm:$0xf]
  %v1610 = vld [vmem:[%s123 + $0x18] sm:$0xf]
  %v1611 = vld [vmem:[%s123 + $0x1c] sm:$0xf]
  %v1612 = vunpack.c.l.bf16 %v1604
  %v1613 = vunpack.c.l.bf16 %v1605
  %v1614 = vunpack.c.l.bf16 %v1606
  %v1615 = vunpack.c.l.bf16 %v1607
  %v1616 = vunpack.c.l.bf16 %v1608
  %v1617 = vunpack.c.l.bf16 %v1609
  %v1618 = vunpack.c.l.bf16 %v1610
  %v1619 = vunpack.c.l.bf16 %v1611
  %v1620 = vand.u32 2147483647, %v1596
  %v1621 = vand.u32 2147483647, %v1597
  %v1622 = vand.u32 2147483647, %v1598
  %v1623 = vand.u32 2147483647, %v1599
  %v1624 = vand.u32 2147483647, %v1600
  %v1625 = vand.u32 2147483647, %v1601
  %v1626 = vand.u32 2147483647, %v1602
  %v1627 = vand.u32 2147483647, %v1603
  %v1628 = vsub.f32 0.0, %v1620
  %v1629 = vsub.f32 0.0, %v1621
  %v1630 = vsub.f32 0.0, %v1622
  %v1631 = vsub.f32 0.0, %v1623
  %v1632 = vsub.f32 0.0, %v1624
  %v1633 = vsub.f32 0.0, %v1625
  %v1634 = vsub.f32 0.0, %v1626
  %v1635 = vsub.f32 0.0, %v1627
  %v1636 = vmul.f32 %v1628, 1.442695
  %v1637 = vpow.pop %v1636
  %v1638 = vmul.f32 %v1629, 1.442695
  %v1639 = vpow.pop %v1638
  %v1640 = vmul.f32 %v1630, 1.442695
  %v1641 = vpow.pop %v1640
  %v1642 = vmul.f32 %v1631, 1.442695
  %v1643 = vpow.pop %v1642
  %v1644 = vmul.f32 %v1632, 1.442695
  %v1645 = vpow.pop %v1644
  %v1646 = vmul.f32 %v1633, 1.442695
  %v1647 = vpow.pop %v1646
  %v1648 = vmul.f32 %v1634, 1.442695
  %v1649 = vpow.pop %v1648
  %v1650 = vmul.f32 %v1635, 1.442695
  %v1651 = vpow.pop %v1650
  %v1652 = vmax.f32 %v1596, 0.0
  %v1653 = vmax.f32 %v1597, 0.0
  %v1654 = vmax.f32 %v1598, 0.0
  %v1655 = vmax.f32 %v1599, 0.0
  %v1656 = vmax.f32 %v1600, 0.0
  %v1657 = vmax.f32 %v1601, 0.0
  %v1658 = vmax.f32 %v1602, 0.0
  %v1659 = vmax.f32 %v1603, 0.0
  %v1660 = vmul.f32 %v1596, %v1612
  %v1661 = vmul.f32 %v1597, %v1613
  %v1662 = vmul.f32 %v1598, %v1614
  %v1663 = vmul.f32 %v1599, %v1615
  %v1664 = vmul.f32 %v1600, %v1616
  %v1665 = vmul.f32 %v1601, %v1617
  %v1666 = vmul.f32 %v1602, %v1618
  %v1667 = vmul.f32 %v1603, %v1619
  %v1668 = vsub.f32 %v1652, %v1660
  %v1669 = vsub.f32 %v1653, %v1661
  %v1670 = vsub.f32 %v1654, %v1662
  %v1671 = vsub.f32 %v1655, %v1663
  %v1672 = vsub.f32 %v1656, %v1664
  %v1673 = vsub.f32 %v1657, %v1665
  %v1674 = vsub.f32 %v1658, %v1666
  %v1675 = vsub.f32 %v1659, %v1667
  %v1676 = vadd.f32 %v1637, 1.0
  %v1677 = vlog2.pop %v1676
  %v1678 = vmul.f32 %v1677, 0.6931472
  %v1679 = vmul.f32 -0.5, %v1637
  %v1680 = vadd.f32 %v1679, 1.0
  %v1681 = vmul.f32 %v1680, %v1637
  %v1682 = vand.u32 2147483647, %v1637
  %vm1683 = vcmp.lt.f32.partialorder %v1682, 0.0004427343
  %v1684 = vsel %vm1683, %v1681, %v1678
  %v1685 = vadd.f32 %v1639, 1.0
  %v1686 = vlog2.pop %v1685
  %v1687 = vmul.f32 %v1686, 0.6931472
  %v1688 = vmul.f32 -0.5, %v1639
  %v1689 = vadd.f32 %v1688, 1.0
  %v1690 = vmul.f32 %v1689, %v1639
  %v1691 = vand.u32 2147483647, %v1639
  %vm1692 = vcmp.lt.f32.partialorder %v1691, 0.0004427343
  %v1693 = vsel %vm1692, %v1690, %v1687
  %v1694 = vadd.f32 %v1641, 1.0
  %v1695 = vlog2.pop %v1694
  %v1696 = vmul.f32 %v1695, 0.6931472
  %v1697 = vmul.f32 -0.5, %v1641
  %v1698 = vadd.f32 %v1697, 1.0
  %v1699 = vmul.f32 %v1698, %v1641
  %v1700 = vand.u32 2147483647, %v1641
  %vm1701 = vcmp.lt.f32.partialorder %v1700, 0.0004427343
  %v1702 = vsel %vm1701, %v1699, %v1696
  %v1703 = vadd.f32 %v1643, 1.0
  %v1704 = vlog2.pop %v1703
  %v1705 = vmul.f32 %v1704, 0.6931472
  %v1706 = vmul.f32 -0.5, %v1643
  %v1707 = vadd.f32 %v1706, 1.0
  %v1708 = vmul.f32 %v1707, %v1643
  %v1709 = vand.u32 2147483647, %v1643
  %vm1710 = vcmp.lt.f32.partialorder %v1709, 0.0004427343
  %v1711 = vsel %vm1710, %v1708, %v1705
  %v1712 = vadd.f32 %v1645, 1.0
  %v1713 = vlog2.pop %v1712
  %v1714 = vmul.f32 %v1713, 0.6931472
  %v1715 = vmul.f32 -0.5, %v1645
  %v1716 = vadd.f32 %v1715, 1.0
  %v1717 = vmul.f32 %v1716, %v1645
  %v1718 = vand.u32 2147483647, %v1645
  %vm1719 = vcmp.lt.f32.partialorder %v1718, 0.0004427343
  %v1720 = vsel %vm1719, %v1717, %v1714
  %v1721 = vadd.f32 %v1647, 1.0
  %v1722 = vlog2.pop %v1721
  %v1723 = vmul.f32 %v1722, 0.6931472
  %v1724 = vmul.f32 -0.5, %v1647
  %v1725 = vadd.f32 %v1724, 1.0
  %v1726 = vmul.f32 %v1725, %v1647
  %v1727 = vand.u32 2147483647, %v1647
  %vm1728 = vcmp.lt.f32.partialorder %v1727, 0.0004427343
  %v1729 = vsel %vm1728, %v1726, %v1723
  %v1730 = vadd.f32 %v1649, 1.0
  %v1731 = vlog2.pop %v1730
  %v1732 = vmul.f32 %v1731, 0.6931472
  %v1733 = vmul.f32 -0.5, %v1649
  %v1734 = vadd.f32 %v1733, 1.0
  %v1735 = vmul.f32 %v1734, %v1649
  %v1736 = vand.u32 2147483647, %v1649
  %vm1737 = vcmp.lt.f32.partialorder %v1736, 0.0004427343
  %v1738 = vsel %vm1737, %v1735, %v1732
  %v1739 = vadd.f32 %v1651, 1.0
  %v1740 = vlog2.pop %v1739
  %v1741 = vmul.f32 %v1740, 0.6931472
  %v1742 = vmul.f32 -0.5, %v1651
  %v1743 = vadd.f32 %v1742, 1.0
  %v1744 = vmul.f32 %v1743, %v1651
  %v1745 = vand.u32 2147483647, %v1651
  %vm1746 = vcmp.lt.f32.partialorder %v1745, 0.0004427343
  %v1747 = vsel %vm1746, %v1744, %v1741
  %v1748 = vadd.f32 %v1668, %v1684
  %v1749 = vadd.f32 %v1669, %v1693
  %v1750 = vadd.f32 %v1670, %v1702
  %v1751 = vadd.f32 %v1671, %v1711
  %v1752 = vadd.f32 %v1672, %v1720
  %v1753 = vadd.f32 %v1673, %v1729
  %v1754 = vadd.f32 %v1674, %v1738
  %v1755 = vadd.f32 %v1675, %v1747
  %v1756 = vmul.f32 %v1596, 0.5
  %v1757 = vmul.f32 %v1597, 0.5
  %v1758 = vmul.f32 %v1598, 0.5
  %v1759 = vmul.f32 %v1599, 0.5
  %v1760 = vmul.f32 %v1600, 0.5
  %v1761 = vmul.f32 %v1601, 0.5
  %v1762 = vmul.f32 %v1602, 0.5
  %v1763 = vmul.f32 %v1603, 0.5
  %v1764 = vtanh.pop %v1756
  %v1765 = vtanh.pop %v1757
  %v1766 = vtanh.pop %v1758
  %v1767 = vtanh.pop %v1759
  %v1768 = vtanh.pop %v1760
  %v1769 = vtanh.pop %v1761
  %v1770 = vtanh.pop %v1762
  %v1771 = vtanh.pop %v1763
  %v1772 = vmul.f32 %v1764, 0.5
  %v1773 = vmul.f32 %v1765, 0.5
  %v1774 = vmul.f32 %v1766, 0.5
  %v1775 = vmul.f32 %v1767, 0.5
  %v1776 = vmul.f32 %v1768, 0.5
  %v1777 = vmul.f32 %v1769, 0.5
  %v1778 = vmul.f32 %v1770, 0.5
  %v1779 = vmul.f32 %v1771, 0.5
  %v1780 = vadd.f32 %v1772, 0.5
  %v1781 = vadd.f32 %v1773, 0.5
  %v1782 = vadd.f32 %v1774, 0.5
  %v1783 = vadd.f32 %v1775, 0.5
  %v1784 = vadd.f32 %v1776, 0.5
  %v1785 = vadd.f32 %v1777, 0.5
  %v1786 = vadd.f32 %v1778, 0.5
  %v1787 = vadd.f32 %v1779, 0.5
  %v1788 = vadd.f32 %v1748, %v1749
  %v1789 = vadd.f32 %v1788, %v1750
  %v1790 = vadd.f32 %v1789, %v1751
  %v1791 = vadd.f32 %v1790, %v1752
  %v1792 = vadd.f32 %v1791, %v1753
  %v1793 = vadd.f32 %v1792, %v1754
  %v1794 = vadd.f32 %v1793, %v1755
  %v1795 = vadd.f32 %v1560, %v1794
  %v1796 = vmul.f32 %v1780, %v1612
  %v1797 = vmul.f32 %v1781, %v1613
  %v1798 = vmul.f32 %v1782, %v1614
  %v1799 = vmul.f32 %v1783, %v1615
  %v1800 = vmul.f32 %v1784, %v1616
  %v1801 = vmul.f32 %v1785, %v1617
  %v1802 = vmul.f32 %v1786, %v1618
  %v1803 = vmul.f32 %v1787, %v1619
  %v1804 = vadd.f32 %v1796, %v1797
  %v1805 = vadd.f32 %v1804, %v1798
  %v1806 = vadd.f32 %v1805, %v1799
  %v1807 = vadd.f32 %v1806, %v1800
  %v1808 = vadd.f32 %v1807, %v1801
  %v1809 = vadd.f32 %v1808, %v1802
  %v1810 = vadd.f32 %v1809, %v1803
  %v1811 = vadd.f32 %v1576, %v1810
  %v1812 = vadd.f32 %v1780, %v1781
  %v1813 = vadd.f32 %v1812, %v1782
  %v1814 = vadd.f32 %v1813, %v1783
  %v1815 = vadd.f32 %v1814, %v1784
  %v1816 = vadd.f32 %v1815, %v1785
  %v1817 = vadd.f32 %v1816, %v1786
  %v1818 = vadd.f32 %v1817, %v1787
  %v1819 = vadd.f32 %v1584, %v1818
  %s1820 = sadd.s32 24, 32
  %s1821 = smul.addr %s1820, 4
  %s1822 = scalar_lea.vmem %s48, %s1821
  %v1823 = vld [vmem:[%s1822] sm:$0xf]
  %v1824 = vld [vmem:[%s1822 + $0x4] sm:$0xf]
  %v1825 = vld [vmem:[%s1822 + $0x8] sm:$0xf]
  %v1826 = vld [vmem:[%s1822 + $0xc] sm:$0xf]
  %v1827 = vld [vmem:[%s1822 + $0x10] sm:$0xf]
  %v1828 = vld [vmem:[%s1822 + $0x14] sm:$0xf]
  %v1829 = vld [vmem:[%s1822 + $0x18] sm:$0xf]
  %v1830 = vld [vmem:[%s1822 + $0x1c] sm:$0xf]
  %v1831 = vunpack.c.l.bf16 %v1823
  %v1832 = vunpack.c.l.bf16 %v1824
  %v1833 = vunpack.c.l.bf16 %v1825
  %v1834 = vunpack.c.l.bf16 %v1826
  %v1835 = vunpack.c.l.bf16 %v1827
  %v1836 = vunpack.c.l.bf16 %v1828
  %v1837 = vunpack.c.l.bf16 %v1829
  %v1838 = vunpack.c.l.bf16 %v1830
  %v1839 = vld [vmem:[%s148] sm:$0xf]
  %v1840 = vld [vmem:[%s148 + $0x4] sm:$0xf]
  %v1841 = vld [vmem:[%s148 + $0x8] sm:$0xf]
  %v1842 = vld [vmem:[%s148 + $0xc] sm:$0xf]
  %v1843 = vld [vmem:[%s148 + $0x10] sm:$0xf]
  %v1844 = vld [vmem:[%s148 + $0x14] sm:$0xf]
  %v1845 = vld [vmem:[%s148 + $0x18] sm:$0xf]
  %v1846 = vld [vmem:[%s148 + $0x1c] sm:$0xf]
  %v1847 = vunpack.c.l.bf16 %v1839
  %v1848 = vunpack.c.l.bf16 %v1840
  %v1849 = vunpack.c.l.bf16 %v1841
  %v1850 = vunpack.c.l.bf16 %v1842
  %v1851 = vunpack.c.l.bf16 %v1843
  %v1852 = vunpack.c.l.bf16 %v1844
  %v1853 = vunpack.c.l.bf16 %v1845
  %v1854 = vunpack.c.l.bf16 %v1846
  %v1855 = vand.u32 2147483647, %v1831
  %v1856 = vand.u32 2147483647, %v1832
  %v1857 = vand.u32 2147483647, %v1833
  %v1858 = vand.u32 2147483647, %v1834
  %v1859 = vand.u32 2147483647, %v1835
  %v1860 = vand.u32 2147483647, %v1836
  %v1861 = vand.u32 2147483647, %v1837
  %v1862 = vand.u32 2147483647, %v1838
  %v1863 = vsub.f32 0.0, %v1855
  %v1864 = vsub.f32 0.0, %v1856
  %v1865 = vsub.f32 0.0, %v1857
  %v1866 = vsub.f32 0.0, %v1858
  %v1867 = vsub.f32 0.0, %v1859
  %v1868 = vsub.f32 0.0, %v1860
  %v1869 = vsub.f32 0.0, %v1861
  %v1870 = vsub.f32 0.0, %v1862
  %v1871 = vmul.f32 %v1863, 1.442695
  %v1872 = vpow.pop %v1871
  %v1873 = vmul.f32 %v1864, 1.442695
  %v1874 = vpow.pop %v1873
  %v1875 = vmul.f32 %v1865, 1.442695
  %v1876 = vpow.pop %v1875
  %v1877 = vmul.f32 %v1866, 1.442695
  %v1878 = vpow.pop %v1877
  %v1879 = vmul.f32 %v1867, 1.442695
  %v1880 = vpow.pop %v1879
  %v1881 = vmul.f32 %v1868, 1.442695
  %v1882 = vpow.pop %v1881
  %v1883 = vmul.f32 %v1869, 1.442695
  %v1884 = vpow.pop %v1883
  %v1885 = vmul.f32 %v1870, 1.442695
  %v1886 = vpow.pop %v1885
  %v1887 = vmax.f32 %v1831, 0.0
  %v1888 = vmax.f32 %v1832, 0.0
  %v1889 = vmax.f32 %v1833, 0.0
  %v1890 = vmax.f32 %v1834, 0.0
  %v1891 = vmax.f32 %v1835, 0.0
  %v1892 = vmax.f32 %v1836, 0.0
  %v1893 = vmax.f32 %v1837, 0.0
  %v1894 = vmax.f32 %v1838, 0.0
  %v1895 = vmul.f32 %v1831, %v1847
  %v1896 = vmul.f32 %v1832, %v1848
  %v1897 = vmul.f32 %v1833, %v1849
  %v1898 = vmul.f32 %v1834, %v1850
  %v1899 = vmul.f32 %v1835, %v1851
  %v1900 = vmul.f32 %v1836, %v1852
  %v1901 = vmul.f32 %v1837, %v1853
  %v1902 = vmul.f32 %v1838, %v1854
  %v1903 = vsub.f32 %v1887, %v1895
  %v1904 = vsub.f32 %v1888, %v1896
  %v1905 = vsub.f32 %v1889, %v1897
  %v1906 = vsub.f32 %v1890, %v1898
  %v1907 = vsub.f32 %v1891, %v1899
  %v1908 = vsub.f32 %v1892, %v1900
  %v1909 = vsub.f32 %v1893, %v1901
  %v1910 = vsub.f32 %v1894, %v1902
  %v1911 = vadd.f32 %v1872, 1.0
  %v1912 = vlog2.pop %v1911
  %v1913 = vmul.f32 %v1912, 0.6931472
  %v1914 = vmul.f32 -0.5, %v1872
  %v1915 = vadd.f32 %v1914, 1.0
  %v1916 = vmul.f32 %v1915, %v1872
  %v1917 = vand.u32 2147483647, %v1872
  %vm1918 = vcmp.lt.f32.partialorder %v1917, 0.0004427343
  %v1919 = vsel %vm1918, %v1916, %v1913
  %v1920 = vadd.f32 %v1874, 1.0
  %v1921 = vlog2.pop %v1920
  %v1922 = vmul.f32 %v1921, 0.6931472
  %v1923 = vmul.f32 -0.5, %v1874
  %v1924 = vadd.f32 %v1923, 1.0
  %v1925 = vmul.f32 %v1924, %v1874
  %v1926 = vand.u32 2147483647, %v1874
  %vm1927 = vcmp.lt.f32.partialorder %v1926, 0.0004427343
  %v1928 = vsel %vm1927, %v1925, %v1922
  %v1929 = vadd.f32 %v1876, 1.0
  %v1930 = vlog2.pop %v1929
  %v1931 = vmul.f32 %v1930, 0.6931472
  %v1932 = vmul.f32 -0.5, %v1876
  %v1933 = vadd.f32 %v1932, 1.0
  %v1934 = vmul.f32 %v1933, %v1876
  %v1935 = vand.u32 2147483647, %v1876
  %vm1936 = vcmp.lt.f32.partialorder %v1935, 0.0004427343
  %v1937 = vsel %vm1936, %v1934, %v1931
  %v1938 = vadd.f32 %v1878, 1.0
  %v1939 = vlog2.pop %v1938
  %v1940 = vmul.f32 %v1939, 0.6931472
  %v1941 = vmul.f32 -0.5, %v1878
  %v1942 = vadd.f32 %v1941, 1.0
  %v1943 = vmul.f32 %v1942, %v1878
  %v1944 = vand.u32 2147483647, %v1878
  %vm1945 = vcmp.lt.f32.partialorder %v1944, 0.0004427343
  %v1946 = vsel %vm1945, %v1943, %v1940
  %v1947 = vadd.f32 %v1880, 1.0
  %v1948 = vlog2.pop %v1947
  %v1949 = vmul.f32 %v1948, 0.6931472
  %v1950 = vmul.f32 -0.5, %v1880
  %v1951 = vadd.f32 %v1950, 1.0
  %v1952 = vmul.f32 %v1951, %v1880
  %v1953 = vand.u32 2147483647, %v1880
  %vm1954 = vcmp.lt.f32.partialorder %v1953, 0.0004427343
  %v1955 = vsel %vm1954, %v1952, %v1949
  %v1956 = vadd.f32 %v1882, 1.0
  %v1957 = vlog2.pop %v1956
  %v1958 = vmul.f32 %v1957, 0.6931472
  %v1959 = vmul.f32 -0.5, %v1882
  %v1960 = vadd.f32 %v1959, 1.0
  %v1961 = vmul.f32 %v1960, %v1882
  %v1962 = vand.u32 2147483647, %v1882
  %vm1963 = vcmp.lt.f32.partialorder %v1962, 0.0004427343
  %v1964 = vsel %vm1963, %v1961, %v1958
  %v1965 = vadd.f32 %v1884, 1.0
  %v1966 = vlog2.pop %v1965
  %v1967 = vmul.f32 %v1966, 0.6931472
  %v1968 = vmul.f32 -0.5, %v1884
  %v1969 = vadd.f32 %v1968, 1.0
  %v1970 = vmul.f32 %v1969, %v1884
  %v1971 = vand.u32 2147483647, %v1884
  %vm1972 = vcmp.lt.f32.partialorder %v1971, 0.0004427343
  %v1973 = vsel %vm1972, %v1970, %v1967
  %v1974 = vadd.f32 %v1886, 1.0
  %v1975 = vlog2.pop %v1974
  %v1976 = vmul.f32 %v1975, 0.6931472
  %v1977 = vmul.f32 -0.5, %v1886
  %v1978 = vadd.f32 %v1977, 1.0
  %v1979 = vmul.f32 %v1978, %v1886
  %v1980 = vand.u32 2147483647, %v1886
  %vm1981 = vcmp.lt.f32.partialorder %v1980, 0.0004427343
  %v1982 = vsel %vm1981, %v1979, %v1976
  %v1983 = vadd.f32 %v1903, %v1919
  %v1984 = vadd.f32 %v1904, %v1928
  %v1985 = vadd.f32 %v1905, %v1937
  %v1986 = vadd.f32 %v1906, %v1946
  %v1987 = vadd.f32 %v1907, %v1955
  %v1988 = vadd.f32 %v1908, %v1964
  %v1989 = vadd.f32 %v1909, %v1973
  %v1990 = vadd.f32 %v1910, %v1982
  %v1991 = vmul.f32 %v1831, 0.5
  %v1992 = vmul.f32 %v1832, 0.5
  %v1993 = vmul.f32 %v1833, 0.5
  %v1994 = vmul.f32 %v1834, 0.5
  %v1995 = vmul.f32 %v1835, 0.5
  %v1996 = vmul.f32 %v1836, 0.5
  %v1997 = vmul.f32 %v1837, 0.5
  %v1998 = vmul.f32 %v1838, 0.5
  %v1999 = vtanh.pop %v1991
  %v2000 = vtanh.pop %v1992
  %v2001 = vtanh.pop %v1993
  %v2002 = vtanh.pop %v1994
  %v2003 = vtanh.pop %v1995
  %v2004 = vtanh.pop %v1996
  %v2005 = vtanh.pop %v1997
  %v2006 = vtanh.pop %v1998
  %v2007 = vmul.f32 %v1999, 0.5
  %v2008 = vmul.f32 %v2000, 0.5
  %v2009 = vmul.f32 %v2001, 0.5
  %v2010 = vmul.f32 %v2002, 0.5
  %v2011 = vmul.f32 %v2003, 0.5
  %v2012 = vmul.f32 %v2004, 0.5
  %v2013 = vmul.f32 %v2005, 0.5
  %v2014 = vmul.f32 %v2006, 0.5
  %v2015 = vadd.f32 %v2007, 0.5
  %v2016 = vadd.f32 %v2008, 0.5
  %v2017 = vadd.f32 %v2009, 0.5
  %v2018 = vadd.f32 %v2010, 0.5
  %v2019 = vadd.f32 %v2011, 0.5
  %v2020 = vadd.f32 %v2012, 0.5
  %v2021 = vadd.f32 %v2013, 0.5
  %v2022 = vadd.f32 %v2014, 0.5
  %v2023 = vadd.f32 %v1983, %v1984
  %v2024 = vadd.f32 %v2023, %v1985
  %v2025 = vadd.f32 %v2024, %v1986
  %v2026 = vadd.f32 %v2025, %v1987
  %v2027 = vadd.f32 %v2026, %v1988
  %v2028 = vadd.f32 %v2027, %v1989
  %v2029 = vadd.f32 %v2028, %v1990
  %v2030 = vadd.f32 %v1795, %v2029
  %v2031 = vmul.f32 %v2015, %v1847
  %v2032 = vmul.f32 %v2016, %v1848
  %v2033 = vmul.f32 %v2017, %v1849
  %v2034 = vmul.f32 %v2018, %v1850
  %v2035 = vmul.f32 %v2019, %v1851
  %v2036 = vmul.f32 %v2020, %v1852
  %v2037 = vmul.f32 %v2021, %v1853
  %v2038 = vmul.f32 %v2022, %v1854
  %v2039 = vadd.f32 %v2031, %v2032
  %v2040 = vadd.f32 %v2039, %v2033
  %v2041 = vadd.f32 %v2040, %v2034
  %v2042 = vadd.f32 %v2041, %v2035
  %v2043 = vadd.f32 %v2042, %v2036
  %v2044 = vadd.f32 %v2043, %v2037
  %v2045 = vadd.f32 %v2044, %v2038
  %v2046 = vadd.f32 %v1811, %v2045
  %v2047 = vadd.f32 %v2015, %v2016
  %v2048 = vadd.f32 %v2047, %v2017
  %v2049 = vadd.f32 %v2048, %v2018
  %v2050 = vadd.f32 %v2049, %v2019
  %v2051 = vadd.f32 %v2050, %v2020
  %v2052 = vadd.f32 %v2051, %v2021
  %v2053 = vadd.f32 %v2052, %v2022
  %v2054 = vadd.f32 %v1819, %v2053
  %s2055 = scalar_lea.vmem %s2, 8
  %v2056 = vld [vmem:[%s2055] sm:$0xff]
  %v2057 = vadd.f32 %v2056, %v2030
  %2058 = vst [vmem:[%s2055] sm:$0xff] %v2057
  %s2059 = scalar_lea.vmem %s3, 8
  %v2060 = vld [vmem:[%s2059] sm:$0xff]
  %v2061 = vadd.f32 %v2060, %v2046
  %2062 = vst [vmem:[%s2059] sm:$0xff] %v2061
  %s2063 = scalar_lea.vmem %s4, 8
  %v2064 = vld [vmem:[%s2063] sm:$0xff]
  %v2065 = vadd.f32 %v2064, %v2054
  %2066 = vst [vmem:[%s2063] sm:$0xff] %v2065
  %s2067 = sadd.s32 0, 64
  %s2068 = smul.addr %s2067, 4
  %s2069 = scalar_lea.vmem %s48, %s2068
  %v2070 = vld [vmem:[%s2069] sm:$0xf]
  %v2071 = vld [vmem:[%s2069 + $0x4] sm:$0xf]
  %v2072 = vld [vmem:[%s2069 + $0x8] sm:$0xf]
  %v2073 = vld [vmem:[%s2069 + $0xc] sm:$0xf]
  %v2074 = vld [vmem:[%s2069 + $0x10] sm:$0xf]
  %v2075 = vld [vmem:[%s2069 + $0x14] sm:$0xf]
  %v2076 = vld [vmem:[%s2069 + $0x18] sm:$0xf]
  %v2077 = vld [vmem:[%s2069 + $0x1c] sm:$0xf]
  %v2078 = vunpack.c.l.bf16 %v2070
  %v2079 = vunpack.c.l.bf16 %v2071
  %v2080 = vunpack.c.l.bf16 %v2072
  %v2081 = vunpack.c.l.bf16 %v2073
  %v2082 = vunpack.c.l.bf16 %v2074
  %v2083 = vunpack.c.l.bf16 %v2075
  %v2084 = vunpack.c.l.bf16 %v2076
  %v2085 = vunpack.c.l.bf16 %v2077
  %v2086 = vld [vmem:[%s56] sm:$0xf]
  %v2087 = vld [vmem:[%s56 + $0x4] sm:$0xf]
  %v2088 = vld [vmem:[%s56 + $0x8] sm:$0xf]
  %v2089 = vld [vmem:[%s56 + $0xc] sm:$0xf]
  %v2090 = vld [vmem:[%s56 + $0x10] sm:$0xf]
  %v2091 = vld [vmem:[%s56 + $0x14] sm:$0xf]
  %v2092 = vld [vmem:[%s56 + $0x18] sm:$0xf]
  %v2093 = vld [vmem:[%s56 + $0x1c] sm:$0xf]
  %v2094 = vunpack.c.l.bf16 %v2086
  %v2095 = vunpack.c.l.bf16 %v2087
  %v2096 = vunpack.c.l.bf16 %v2088
  %v2097 = vunpack.c.l.bf16 %v2089
  %v2098 = vunpack.c.l.bf16 %v2090
  %v2099 = vunpack.c.l.bf16 %v2091
  %v2100 = vunpack.c.l.bf16 %v2092
  %v2101 = vunpack.c.l.bf16 %v2093
  %v2102 = vand.u32 2147483647, %v2078
  %v2103 = vand.u32 2147483647, %v2079
  %v2104 = vand.u32 2147483647, %v2080
  %v2105 = vand.u32 2147483647, %v2081
  %v2106 = vand.u32 2147483647, %v2082
  %v2107 = vand.u32 2147483647, %v2083
  %v2108 = vand.u32 2147483647, %v2084
  %v2109 = vand.u32 2147483647, %v2085
  %v2110 = vsub.f32 0.0, %v2102
  %v2111 = vsub.f32 0.0, %v2103
  %v2112 = vsub.f32 0.0, %v2104
  %v2113 = vsub.f32 0.0, %v2105
  %v2114 = vsub.f32 0.0, %v2106
  %v2115 = vsub.f32 0.0, %v2107
  %v2116 = vsub.f32 0.0, %v2108
  %v2117 = vsub.f32 0.0, %v2109
  %v2118 = vmul.f32 %v2110, 1.442695
  %v2119 = vpow.pop %v2118
  %v2120 = vmul.f32 %v2111, 1.442695
  %v2121 = vpow.pop %v2120
  %v2122 = vmul.f32 %v2112, 1.442695
  %v2123 = vpow.pop %v2122
  %v2124 = vmul.f32 %v2113, 1.442695
  %v2125 = vpow.pop %v2124
  %v2126 = vmul.f32 %v2114, 1.442695
  %v2127 = vpow.pop %v2126
  %v2128 = vmul.f32 %v2115, 1.442695
  %v2129 = vpow.pop %v2128
  %v2130 = vmul.f32 %v2116, 1.442695
  %v2131 = vpow.pop %v2130
  %v2132 = vmul.f32 %v2117, 1.442695
  %v2133 = vpow.pop %v2132
  %v2134 = vmax.f32 %v2078, 0.0
  %v2135 = vmax.f32 %v2079, 0.0
  %v2136 = vmax.f32 %v2080, 0.0
  %v2137 = vmax.f32 %v2081, 0.0
  %v2138 = vmax.f32 %v2082, 0.0
  %v2139 = vmax.f32 %v2083, 0.0
  %v2140 = vmax.f32 %v2084, 0.0
  %v2141 = vmax.f32 %v2085, 0.0
  %v2142 = vmul.f32 %v2078, %v2094
  %v2143 = vmul.f32 %v2079, %v2095
  %v2144 = vmul.f32 %v2080, %v2096
  %v2145 = vmul.f32 %v2081, %v2097
  %v2146 = vmul.f32 %v2082, %v2098
  %v2147 = vmul.f32 %v2083, %v2099
  %v2148 = vmul.f32 %v2084, %v2100
  %v2149 = vmul.f32 %v2085, %v2101
  %v2150 = vsub.f32 %v2134, %v2142
  %v2151 = vsub.f32 %v2135, %v2143
  %v2152 = vsub.f32 %v2136, %v2144
  %v2153 = vsub.f32 %v2137, %v2145
  %v2154 = vsub.f32 %v2138, %v2146
  %v2155 = vsub.f32 %v2139, %v2147
  %v2156 = vsub.f32 %v2140, %v2148
  %v2157 = vsub.f32 %v2141, %v2149
  %v2158 = vadd.f32 %v2119, 1.0
  %v2159 = vlog2.pop %v2158
  %v2160 = vmul.f32 %v2159, 0.6931472
  %v2161 = vmul.f32 -0.5, %v2119
  %v2162 = vadd.f32 %v2161, 1.0
  %v2163 = vmul.f32 %v2162, %v2119
  %v2164 = vand.u32 2147483647, %v2119
  %vm2165 = vcmp.lt.f32.partialorder %v2164, 0.0004427343
  %v2166 = vsel %vm2165, %v2163, %v2160
  %v2167 = vadd.f32 %v2121, 1.0
  %v2168 = vlog2.pop %v2167
  %v2169 = vmul.f32 %v2168, 0.6931472
  %v2170 = vmul.f32 -0.5, %v2121
  %v2171 = vadd.f32 %v2170, 1.0
  %v2172 = vmul.f32 %v2171, %v2121
  %v2173 = vand.u32 2147483647, %v2121
  %vm2174 = vcmp.lt.f32.partialorder %v2173, 0.0004427343
  %v2175 = vsel %vm2174, %v2172, %v2169
  %v2176 = vadd.f32 %v2123, 1.0
  %v2177 = vlog2.pop %v2176
  %v2178 = vmul.f32 %v2177, 0.6931472
  %v2179 = vmul.f32 -0.5, %v2123
  %v2180 = vadd.f32 %v2179, 1.0
  %v2181 = vmul.f32 %v2180, %v2123
  %v2182 = vand.u32 2147483647, %v2123
  %vm2183 = vcmp.lt.f32.partialorder %v2182, 0.0004427343
  %v2184 = vsel %vm2183, %v2181, %v2178
  %v2185 = vadd.f32 %v2125, 1.0
  %v2186 = vlog2.pop %v2185
  %v2187 = vmul.f32 %v2186, 0.6931472
  %v2188 = vmul.f32 -0.5, %v2125
  %v2189 = vadd.f32 %v2188, 1.0
  %v2190 = vmul.f32 %v2189, %v2125
  %v2191 = vand.u32 2147483647, %v2125
  %vm2192 = vcmp.lt.f32.partialorder %v2191, 0.0004427343
  %v2193 = vsel %vm2192, %v2190, %v2187
  %v2194 = vadd.f32 %v2127, 1.0
  %v2195 = vlog2.pop %v2194
  %v2196 = vmul.f32 %v2195, 0.6931472
  %v2197 = vmul.f32 -0.5, %v2127
  %v2198 = vadd.f32 %v2197, 1.0
  %v2199 = vmul.f32 %v2198, %v2127
  %v2200 = vand.u32 2147483647, %v2127
  %vm2201 = vcmp.lt.f32.partialorder %v2200, 0.0004427343
  %v2202 = vsel %vm2201, %v2199, %v2196
  %v2203 = vadd.f32 %v2129, 1.0
  %v2204 = vlog2.pop %v2203
  %v2205 = vmul.f32 %v2204, 0.6931472
  %v2206 = vmul.f32 -0.5, %v2129
  %v2207 = vadd.f32 %v2206, 1.0
  %v2208 = vmul.f32 %v2207, %v2129
  %v2209 = vand.u32 2147483647, %v2129
  %vm2210 = vcmp.lt.f32.partialorder %v2209, 0.0004427343
  %v2211 = vsel %vm2210, %v2208, %v2205
  %v2212 = vadd.f32 %v2131, 1.0
  %v2213 = vlog2.pop %v2212
  %v2214 = vmul.f32 %v2213, 0.6931472
  %v2215 = vmul.f32 -0.5, %v2131
  %v2216 = vadd.f32 %v2215, 1.0
  %v2217 = vmul.f32 %v2216, %v2131
  %v2218 = vand.u32 2147483647, %v2131
  %vm2219 = vcmp.lt.f32.partialorder %v2218, 0.0004427343
  %v2220 = vsel %vm2219, %v2217, %v2214
  %v2221 = vadd.f32 %v2133, 1.0
  %v2222 = vlog2.pop %v2221
  %v2223 = vmul.f32 %v2222, 0.6931472
  %v2224 = vmul.f32 -0.5, %v2133
  %v2225 = vadd.f32 %v2224, 1.0
  %v2226 = vmul.f32 %v2225, %v2133
  %v2227 = vand.u32 2147483647, %v2133
  %vm2228 = vcmp.lt.f32.partialorder %v2227, 0.0004427343
  %v2229 = vsel %vm2228, %v2226, %v2223
  %v2230 = vadd.f32 %v2150, %v2166
  %v2231 = vadd.f32 %v2151, %v2175
  %v2232 = vadd.f32 %v2152, %v2184
  %v2233 = vadd.f32 %v2153, %v2193
  %v2234 = vadd.f32 %v2154, %v2202
  %v2235 = vadd.f32 %v2155, %v2211
  %v2236 = vadd.f32 %v2156, %v2220
  %v2237 = vadd.f32 %v2157, %v2229
  %v2238 = vmul.f32 %v2078, 0.5
  %v2239 = vmul.f32 %v2079, 0.5
  %v2240 = vmul.f32 %v2080, 0.5
  %v2241 = vmul.f32 %v2081, 0.5
  %v2242 = vmul.f32 %v2082, 0.5
  %v2243 = vmul.f32 %v2083, 0.5
  %v2244 = vmul.f32 %v2084, 0.5
  %v2245 = vmul.f32 %v2085, 0.5
  %v2246 = vtanh.pop %v2238
  %v2247 = vtanh.pop %v2239
  %v2248 = vtanh.pop %v2240
  %v2249 = vtanh.pop %v2241
  %v2250 = vtanh.pop %v2242
  %v2251 = vtanh.pop %v2243
  %v2252 = vtanh.pop %v2244
  %v2253 = vtanh.pop %v2245
  %v2254 = vmul.f32 %v2246, 0.5
  %v2255 = vmul.f32 %v2247, 0.5
  %v2256 = vmul.f32 %v2248, 0.5
  %v2257 = vmul.f32 %v2249, 0.5
  %v2258 = vmul.f32 %v2250, 0.5
  %v2259 = vmul.f32 %v2251, 0.5
  %v2260 = vmul.f32 %v2252, 0.5
  %v2261 = vmul.f32 %v2253, 0.5
  %v2262 = vadd.f32 %v2254, 0.5
  %v2263 = vadd.f32 %v2255, 0.5
  %v2264 = vadd.f32 %v2256, 0.5
  %v2265 = vadd.f32 %v2257, 0.5
  %v2266 = vadd.f32 %v2258, 0.5
  %v2267 = vadd.f32 %v2259, 0.5
  %v2268 = vadd.f32 %v2260, 0.5
  %v2269 = vadd.f32 %v2261, 0.5
  %v2270 = vadd.f32 %v2230, %v2231
  %v2271 = vadd.f32 %v2270, %v2232
  %v2272 = vadd.f32 %v2271, %v2233
  %v2273 = vadd.f32 %v2272, %v2234
  %v2274 = vadd.f32 %v2273, %v2235
  %v2275 = vadd.f32 %v2274, %v2236
  %v2276 = vadd.f32 %v2275, %v2237
  %v2277 = vadd.f32 %v2276, 0.0
  %v2278 = vmul.f32 %v2262, %v2094
  %v2279 = vmul.f32 %v2263, %v2095
  %v2280 = vmul.f32 %v2264, %v2096
  %v2281 = vmul.f32 %v2265, %v2097
  %v2282 = vmul.f32 %v2266, %v2098
  %v2283 = vmul.f32 %v2267, %v2099
  %v2284 = vmul.f32 %v2268, %v2100
  %v2285 = vmul.f32 %v2269, %v2101
  %v2286 = vadd.f32 %v2278, %v2279
  %v2287 = vadd.f32 %v2286, %v2280
  %v2288 = vadd.f32 %v2287, %v2281
  %v2289 = vadd.f32 %v2288, %v2282
  %v2290 = vadd.f32 %v2289, %v2283
  %v2291 = vadd.f32 %v2290, %v2284
  %v2292 = vadd.f32 %v2291, %v2285
  %v2293 = vadd.f32 %v2292, 0.0
  %v2294 = vadd.f32 %v2262, %v2263
  %v2295 = vadd.f32 %v2294, %v2264
  %v2296 = vadd.f32 %v2295, %v2265
  %v2297 = vadd.f32 %v2296, %v2266
  %v2298 = vadd.f32 %v2297, %v2267
  %v2299 = vadd.f32 %v2298, %v2268
  %v2300 = vadd.f32 %v2299, %v2269
  %v2301 = vadd.f32 %v2300, 0.0
  %s2302 = sadd.s32 8, 64
  %s2303 = smul.addr %s2302, 4
  %s2304 = scalar_lea.vmem %s48, %s2303
  %v2305 = vld [vmem:[%s2304] sm:$0xf]
  %v2306 = vld [vmem:[%s2304 + $0x4] sm:$0xf]
  %v2307 = vld [vmem:[%s2304 + $0x8] sm:$0xf]
  %v2308 = vld [vmem:[%s2304 + $0xc] sm:$0xf]
  %v2309 = vld [vmem:[%s2304 + $0x10] sm:$0xf]
  %v2310 = vld [vmem:[%s2304 + $0x14] sm:$0xf]
  %v2311 = vld [vmem:[%s2304 + $0x18] sm:$0xf]
  %v2312 = vld [vmem:[%s2304 + $0x1c] sm:$0xf]
  %v2313 = vunpack.c.l.bf16 %v2305
  %v2314 = vunpack.c.l.bf16 %v2306
  %v2315 = vunpack.c.l.bf16 %v2307
  %v2316 = vunpack.c.l.bf16 %v2308
  %v2317 = vunpack.c.l.bf16 %v2309
  %v2318 = vunpack.c.l.bf16 %v2310
  %v2319 = vunpack.c.l.bf16 %v2311
  %v2320 = vunpack.c.l.bf16 %v2312
  %v2321 = vld [vmem:[%s98] sm:$0xf]
  %v2322 = vld [vmem:[%s98 + $0x4] sm:$0xf]
  %v2323 = vld [vmem:[%s98 + $0x8] sm:$0xf]
  %v2324 = vld [vmem:[%s98 + $0xc] sm:$0xf]
  %v2325 = vld [vmem:[%s98 + $0x10] sm:$0xf]
  %v2326 = vld [vmem:[%s98 + $0x14] sm:$0xf]
  %v2327 = vld [vmem:[%s98 + $0x18] sm:$0xf]
  %v2328 = vld [vmem:[%s98 + $0x1c] sm:$0xf]
  %v2329 = vunpack.c.l.bf16 %v2321
  %v2330 = vunpack.c.l.bf16 %v2322
  %v2331 = vunpack.c.l.bf16 %v2323
  %v2332 = vunpack.c.l.bf16 %v2324
  %v2333 = vunpack.c.l.bf16 %v2325
  %v2334 = vunpack.c.l.bf16 %v2326
  %v2335 = vunpack.c.l.bf16 %v2327
  %v2336 = vunpack.c.l.bf16 %v2328
  %v2337 = vand.u32 2147483647, %v2313
  %v2338 = vand.u32 2147483647, %v2314
  %v2339 = vand.u32 2147483647, %v2315
  %v2340 = vand.u32 2147483647, %v2316
  %v2341 = vand.u32 2147483647, %v2317
  %v2342 = vand.u32 2147483647, %v2318
  %v2343 = vand.u32 2147483647, %v2319
  %v2344 = vand.u32 2147483647, %v2320
  %v2345 = vsub.f32 0.0, %v2337
  %v2346 = vsub.f32 0.0, %v2338
  %v2347 = vsub.f32 0.0, %v2339
  %v2348 = vsub.f32 0.0, %v2340
  %v2349 = vsub.f32 0.0, %v2341
  %v2350 = vsub.f32 0.0, %v2342
  %v2351 = vsub.f32 0.0, %v2343
  %v2352 = vsub.f32 0.0, %v2344
  %v2353 = vmul.f32 %v2345, 1.442695
  %v2354 = vpow.pop %v2353
  %v2355 = vmul.f32 %v2346, 1.442695
  %v2356 = vpow.pop %v2355
  %v2357 = vmul.f32 %v2347, 1.442695
  %v2358 = vpow.pop %v2357
  %v2359 = vmul.f32 %v2348, 1.442695
  %v2360 = vpow.pop %v2359
  %v2361 = vmul.f32 %v2349, 1.442695
  %v2362 = vpow.pop %v2361
  %v2363 = vmul.f32 %v2350, 1.442695
  %v2364 = vpow.pop %v2363
  %v2365 = vmul.f32 %v2351, 1.442695
  %v2366 = vpow.pop %v2365
  %v2367 = vmul.f32 %v2352, 1.442695
  %v2368 = vpow.pop %v2367
  %v2369 = vmax.f32 %v2313, 0.0
  %v2370 = vmax.f32 %v2314, 0.0
  %v2371 = vmax.f32 %v2315, 0.0
  %v2372 = vmax.f32 %v2316, 0.0
  %v2373 = vmax.f32 %v2317, 0.0
  %v2374 = vmax.f32 %v2318, 0.0
  %v2375 = vmax.f32 %v2319, 0.0
  %v2376 = vmax.f32 %v2320, 0.0
  %v2377 = vmul.f32 %v2313, %v2329
  %v2378 = vmul.f32 %v2314, %v2330
  %v2379 = vmul.f32 %v2315, %v2331
  %v2380 = vmul.f32 %v2316, %v2332
  %v2381 = vmul.f32 %v2317, %v2333
  %v2382 = vmul.f32 %v2318, %v2334
  %v2383 = vmul.f32 %v2319, %v2335
  %v2384 = vmul.f32 %v2320, %v2336
  %v2385 = vsub.f32 %v2369, %v2377
  %v2386 = vsub.f32 %v2370, %v2378
  %v2387 = vsub.f32 %v2371, %v2379
  %v2388 = vsub.f32 %v2372, %v2380
  %v2389 = vsub.f32 %v2373, %v2381
  %v2390 = vsub.f32 %v2374, %v2382
  %v2391 = vsub.f32 %v2375, %v2383
  %v2392 = vsub.f32 %v2376, %v2384
  %v2393 = vadd.f32 %v2354, 1.0
  %v2394 = vlog2.pop %v2393
  %v2395 = vmul.f32 %v2394, 0.6931472
  %v2396 = vmul.f32 -0.5, %v2354
  %v2397 = vadd.f32 %v2396, 1.0
  %v2398 = vmul.f32 %v2397, %v2354
  %v2399 = vand.u32 2147483647, %v2354
  %vm2400 = vcmp.lt.f32.partialorder %v2399, 0.0004427343
  %v2401 = vsel %vm2400, %v2398, %v2395
  %v2402 = vadd.f32 %v2356, 1.0
  %v2403 = vlog2.pop %v2402
  %v2404 = vmul.f32 %v2403, 0.6931472
  %v2405 = vmul.f32 -0.5, %v2356
  %v2406 = vadd.f32 %v2405, 1.0
  %v2407 = vmul.f32 %v2406, %v2356
  %v2408 = vand.u32 2147483647, %v2356
  %vm2409 = vcmp.lt.f32.partialorder %v2408, 0.0004427343
  %v2410 = vsel %vm2409, %v2407, %v2404
  %v2411 = vadd.f32 %v2358, 1.0
  %v2412 = vlog2.pop %v2411
  %v2413 = vmul.f32 %v2412, 0.6931472
  %v2414 = vmul.f32 -0.5, %v2358
  %v2415 = vadd.f32 %v2414, 1.0
  %v2416 = vmul.f32 %v2415, %v2358
  %v2417 = vand.u32 2147483647, %v2358
  %vm2418 = vcmp.lt.f32.partialorder %v2417, 0.0004427343
  %v2419 = vsel %vm2418, %v2416, %v2413
  %v2420 = vadd.f32 %v2360, 1.0
  %v2421 = vlog2.pop %v2420
  %v2422 = vmul.f32 %v2421, 0.6931472
  %v2423 = vmul.f32 -0.5, %v2360
  %v2424 = vadd.f32 %v2423, 1.0
  %v2425 = vmul.f32 %v2424, %v2360
  %v2426 = vand.u32 2147483647, %v2360
  %vm2427 = vcmp.lt.f32.partialorder %v2426, 0.0004427343
  %v2428 = vsel %vm2427, %v2425, %v2422
  %v2429 = vadd.f32 %v2362, 1.0
  %v2430 = vlog2.pop %v2429
  %v2431 = vmul.f32 %v2430, 0.6931472
  %v2432 = vmul.f32 -0.5, %v2362
  %v2433 = vadd.f32 %v2432, 1.0
  %v2434 = vmul.f32 %v2433, %v2362
  %v2435 = vand.u32 2147483647, %v2362
  %vm2436 = vcmp.lt.f32.partialorder %v2435, 0.0004427343
  %v2437 = vsel %vm2436, %v2434, %v2431
  %v2438 = vadd.f32 %v2364, 1.0
  %v2439 = vlog2.pop %v2438
  %v2440 = vmul.f32 %v2439, 0.6931472
  %v2441 = vmul.f32 -0.5, %v2364
  %v2442 = vadd.f32 %v2441, 1.0
  %v2443 = vmul.f32 %v2442, %v2364
  %v2444 = vand.u32 2147483647, %v2364
  %vm2445 = vcmp.lt.f32.partialorder %v2444, 0.0004427343
  %v2446 = vsel %vm2445, %v2443, %v2440
  %v2447 = vadd.f32 %v2366, 1.0
  %v2448 = vlog2.pop %v2447
  %v2449 = vmul.f32 %v2448, 0.6931472
  %v2450 = vmul.f32 -0.5, %v2366
  %v2451 = vadd.f32 %v2450, 1.0
  %v2452 = vmul.f32 %v2451, %v2366
  %v2453 = vand.u32 2147483647, %v2366
  %vm2454 = vcmp.lt.f32.partialorder %v2453, 0.0004427343
  %v2455 = vsel %vm2454, %v2452, %v2449
  %v2456 = vadd.f32 %v2368, 1.0
  %v2457 = vlog2.pop %v2456
  %v2458 = vmul.f32 %v2457, 0.6931472
  %v2459 = vmul.f32 -0.5, %v2368
  %v2460 = vadd.f32 %v2459, 1.0
  %v2461 = vmul.f32 %v2460, %v2368
  %v2462 = vand.u32 2147483647, %v2368
  %vm2463 = vcmp.lt.f32.partialorder %v2462, 0.0004427343
  %v2464 = vsel %vm2463, %v2461, %v2458
  %v2465 = vadd.f32 %v2385, %v2401
  %v2466 = vadd.f32 %v2386, %v2410
  %v2467 = vadd.f32 %v2387, %v2419
  %v2468 = vadd.f32 %v2388, %v2428
  %v2469 = vadd.f32 %v2389, %v2437
  %v2470 = vadd.f32 %v2390, %v2446
  %v2471 = vadd.f32 %v2391, %v2455
  %v2472 = vadd.f32 %v2392, %v2464
  %v2473 = vmul.f32 %v2313, 0.5
  %v2474 = vmul.f32 %v2314, 0.5
  %v2475 = vmul.f32 %v2315, 0.5
  %v2476 = vmul.f32 %v2316, 0.5
  %v2477 = vmul.f32 %v2317, 0.5
  %v2478 = vmul.f32 %v2318, 0.5
  %v2479 = vmul.f32 %v2319, 0.5
  %v2480 = vmul.f32 %v2320, 0.5
  %v2481 = vtanh.pop %v2473
  %v2482 = vtanh.pop %v2474
  %v2483 = vtanh.pop %v2475
  %v2484 = vtanh.pop %v2476
  %v2485 = vtanh.pop %v2477
  %v2486 = vtanh.pop %v2478
  %v2487 = vtanh.pop %v2479
  %v2488 = vtanh.pop %v2480
  %v2489 = vmul.f32 %v2481, 0.5
  %v2490 = vmul.f32 %v2482, 0.5
  %v2491 = vmul.f32 %v2483, 0.5
  %v2492 = vmul.f32 %v2484, 0.5
  %v2493 = vmul.f32 %v2485, 0.5
  %v2494 = vmul.f32 %v2486, 0.5
  %v2495 = vmul.f32 %v2487, 0.5
  %v2496 = vmul.f32 %v2488, 0.5
  %v2497 = vadd.f32 %v2489, 0.5
  %v2498 = vadd.f32 %v2490, 0.5
  %v2499 = vadd.f32 %v2491, 0.5
  %v2500 = vadd.f32 %v2492, 0.5
  %v2501 = vadd.f32 %v2493, 0.5
  %v2502 = vadd.f32 %v2494, 0.5
  %v2503 = vadd.f32 %v2495, 0.5
  %v2504 = vadd.f32 %v2496, 0.5
  %v2505 = vadd.f32 %v2465, %v2466
  %v2506 = vadd.f32 %v2505, %v2467
  %v2507 = vadd.f32 %v2506, %v2468
  %v2508 = vadd.f32 %v2507, %v2469
  %v2509 = vadd.f32 %v2508, %v2470
  %v2510 = vadd.f32 %v2509, %v2471
  %v2511 = vadd.f32 %v2510, %v2472
  %v2512 = vadd.f32 %v2277, %v2511
  %v2513 = vmul.f32 %v2497, %v2329
  %v2514 = vmul.f32 %v2498, %v2330
  %v2515 = vmul.f32 %v2499, %v2331
  %v2516 = vmul.f32 %v2500, %v2332
  %v2517 = vmul.f32 %v2501, %v2333
  %v2518 = vmul.f32 %v2502, %v2334
  %v2519 = vmul.f32 %v2503, %v2335
  %v2520 = vmul.f32 %v2504, %v2336
  %v2521 = vadd.f32 %v2513, %v2514
  %v2522 = vadd.f32 %v2521, %v2515
  %v2523 = vadd.f32 %v2522, %v2516
  %v2524 = vadd.f32 %v2523, %v2517
  %v2525 = vadd.f32 %v2524, %v2518
  %v2526 = vadd.f32 %v2525, %v2519
  %v2527 = vadd.f32 %v2526, %v2520
  %v2528 = vadd.f32 %v2293, %v2527
  %v2529 = vadd.f32 %v2497, %v2498
  %v2530 = vadd.f32 %v2529, %v2499
  %v2531 = vadd.f32 %v2530, %v2500
  %v2532 = vadd.f32 %v2531, %v2501
  %v2533 = vadd.f32 %v2532, %v2502
  %v2534 = vadd.f32 %v2533, %v2503
  %v2535 = vadd.f32 %v2534, %v2504
  %v2536 = vadd.f32 %v2301, %v2535
  %s2537 = sadd.s32 16, 64
  %s2538 = smul.addr %s2537, 4
  %s2539 = scalar_lea.vmem %s48, %s2538
  %v2540 = vld [vmem:[%s2539] sm:$0xf]
  %v2541 = vld [vmem:[%s2539 + $0x4] sm:$0xf]
  %v2542 = vld [vmem:[%s2539 + $0x8] sm:$0xf]
  %v2543 = vld [vmem:[%s2539 + $0xc] sm:$0xf]
  %v2544 = vld [vmem:[%s2539 + $0x10] sm:$0xf]
  %v2545 = vld [vmem:[%s2539 + $0x14] sm:$0xf]
  %v2546 = vld [vmem:[%s2539 + $0x18] sm:$0xf]
  %v2547 = vld [vmem:[%s2539 + $0x1c] sm:$0xf]
  %v2548 = vunpack.c.l.bf16 %v2540
  %v2549 = vunpack.c.l.bf16 %v2541
  %v2550 = vunpack.c.l.bf16 %v2542
  %v2551 = vunpack.c.l.bf16 %v2543
  %v2552 = vunpack.c.l.bf16 %v2544
  %v2553 = vunpack.c.l.bf16 %v2545
  %v2554 = vunpack.c.l.bf16 %v2546
  %v2555 = vunpack.c.l.bf16 %v2547
  %v2556 = vld [vmem:[%s123] sm:$0xf]
  %v2557 = vld [vmem:[%s123 + $0x4] sm:$0xf]
  %v2558 = vld [vmem:[%s123 + $0x8] sm:$0xf]
  %v2559 = vld [vmem:[%s123 + $0xc] sm:$0xf]
  %v2560 = vld [vmem:[%s123 + $0x10] sm:$0xf]
  %v2561 = vld [vmem:[%s123 + $0x14] sm:$0xf]
  %v2562 = vld [vmem:[%s123 + $0x18] sm:$0xf]
  %v2563 = vld [vmem:[%s123 + $0x1c] sm:$0xf]
  %v2564 = vunpack.c.l.bf16 %v2556
  %v2565 = vunpack.c.l.bf16 %v2557
  %v2566 = vunpack.c.l.bf16 %v2558
  %v2567 = vunpack.c.l.bf16 %v2559
  %v2568 = vunpack.c.l.bf16 %v2560
  %v2569 = vunpack.c.l.bf16 %v2561
  %v2570 = vunpack.c.l.bf16 %v2562
  %v2571 = vunpack.c.l.bf16 %v2563
  %v2572 = vand.u32 2147483647, %v2548
  %v2573 = vand.u32 2147483647, %v2549
  %v2574 = vand.u32 2147483647, %v2550
  %v2575 = vand.u32 2147483647, %v2551
  %v2576 = vand.u32 2147483647, %v2552
  %v2577 = vand.u32 2147483647, %v2553
  %v2578 = vand.u32 2147483647, %v2554
  %v2579 = vand.u32 2147483647, %v2555
  %v2580 = vsub.f32 0.0, %v2572
  %v2581 = vsub.f32 0.0, %v2573
  %v2582 = vsub.f32 0.0, %v2574
  %v2583 = vsub.f32 0.0, %v2575
  %v2584 = vsub.f32 0.0, %v2576
  %v2585 = vsub.f32 0.0, %v2577
  %v2586 = vsub.f32 0.0, %v2578
  %v2587 = vsub.f32 0.0, %v2579
  %v2588 = vmul.f32 %v2580, 1.442695
  %v2589 = vpow.pop %v2588
  %v2590 = vmul.f32 %v2581, 1.442695
  %v2591 = vpow.pop %v2590
  %v2592 = vmul.f32 %v2582, 1.442695
  %v2593 = vpow.pop %v2592
  %v2594 = vmul.f32 %v2583, 1.442695
  %v2595 = vpow.pop %v2594
  %v2596 = vmul.f32 %v2584, 1.442695
  %v2597 = vpow.pop %v2596
  %v2598 = vmul.f32 %v2585, 1.442695
  %v2599 = vpow.pop %v2598
  %v2600 = vmul.f32 %v2586, 1.442695
  %v2601 = vpow.pop %v2600
  %v2602 = vmul.f32 %v2587, 1.442695
  %v2603 = vpow.pop %v2602
  %v2604 = vmax.f32 %v2548, 0.0
  %v2605 = vmax.f32 %v2549, 0.0
  %v2606 = vmax.f32 %v2550, 0.0
  %v2607 = vmax.f32 %v2551, 0.0
  %v2608 = vmax.f32 %v2552, 0.0
  %v2609 = vmax.f32 %v2553, 0.0
  %v2610 = vmax.f32 %v2554, 0.0
  %v2611 = vmax.f32 %v2555, 0.0
  %v2612 = vmul.f32 %v2548, %v2564
  %v2613 = vmul.f32 %v2549, %v2565
  %v2614 = vmul.f32 %v2550, %v2566
  %v2615 = vmul.f32 %v2551, %v2567
  %v2616 = vmul.f32 %v2552, %v2568
  %v2617 = vmul.f32 %v2553, %v2569
  %v2618 = vmul.f32 %v2554, %v2570
  %v2619 = vmul.f32 %v2555, %v2571
  %v2620 = vsub.f32 %v2604, %v2612
  %v2621 = vsub.f32 %v2605, %v2613
  %v2622 = vsub.f32 %v2606, %v2614
  %v2623 = vsub.f32 %v2607, %v2615
  %v2624 = vsub.f32 %v2608, %v2616
  %v2625 = vsub.f32 %v2609, %v2617
  %v2626 = vsub.f32 %v2610, %v2618
  %v2627 = vsub.f32 %v2611, %v2619
  %v2628 = vadd.f32 %v2589, 1.0
  %v2629 = vlog2.pop %v2628
  %v2630 = vmul.f32 %v2629, 0.6931472
  %v2631 = vmul.f32 -0.5, %v2589
  %v2632 = vadd.f32 %v2631, 1.0
  %v2633 = vmul.f32 %v2632, %v2589
  %v2634 = vand.u32 2147483647, %v2589
  %vm2635 = vcmp.lt.f32.partialorder %v2634, 0.0004427343
  %v2636 = vsel %vm2635, %v2633, %v2630
  %v2637 = vadd.f32 %v2591, 1.0
  %v2638 = vlog2.pop %v2637
  %v2639 = vmul.f32 %v2638, 0.6931472
  %v2640 = vmul.f32 -0.5, %v2591
  %v2641 = vadd.f32 %v2640, 1.0
  %v2642 = vmul.f32 %v2641, %v2591
  %v2643 = vand.u32 2147483647, %v2591
  %vm2644 = vcmp.lt.f32.partialorder %v2643, 0.0004427343
  %v2645 = vsel %vm2644, %v2642, %v2639
  %v2646 = vadd.f32 %v2593, 1.0
  %v2647 = vlog2.pop %v2646
  %v2648 = vmul.f32 %v2647, 0.6931472
  %v2649 = vmul.f32 -0.5, %v2593
  %v2650 = vadd.f32 %v2649, 1.0
  %v2651 = vmul.f32 %v2650, %v2593
  %v2652 = vand.u32 2147483647, %v2593
  %vm2653 = vcmp.lt.f32.partialorder %v2652, 0.0004427343
  %v2654 = vsel %vm2653, %v2651, %v2648
  %v2655 = vadd.f32 %v2595, 1.0
  %v2656 = vlog2.pop %v2655
  %v2657 = vmul.f32 %v2656, 0.6931472
  %v2658 = vmul.f32 -0.5, %v2595
  %v2659 = vadd.f32 %v2658, 1.0
  %v2660 = vmul.f32 %v2659, %v2595
  %v2661 = vand.u32 2147483647, %v2595
  %vm2662 = vcmp.lt.f32.partialorder %v2661, 0.0004427343
  %v2663 = vsel %vm2662, %v2660, %v2657
  %v2664 = vadd.f32 %v2597, 1.0
  %v2665 = vlog2.pop %v2664
  %v2666 = vmul.f32 %v2665, 0.6931472
  %v2667 = vmul.f32 -0.5, %v2597
  %v2668 = vadd.f32 %v2667, 1.0
  %v2669 = vmul.f32 %v2668, %v2597
  %v2670 = vand.u32 2147483647, %v2597
  %vm2671 = vcmp.lt.f32.partialorder %v2670, 0.0004427343
  %v2672 = vsel %vm2671, %v2669, %v2666
  %v2673 = vadd.f32 %v2599, 1.0
  %v2674 = vlog2.pop %v2673
  %v2675 = vmul.f32 %v2674, 0.6931472
  %v2676 = vmul.f32 -0.5, %v2599
  %v2677 = vadd.f32 %v2676, 1.0
  %v2678 = vmul.f32 %v2677, %v2599
  %v2679 = vand.u32 2147483647, %v2599
  %vm2680 = vcmp.lt.f32.partialorder %v2679, 0.0004427343
  %v2681 = vsel %vm2680, %v2678, %v2675
  %v2682 = vadd.f32 %v2601, 1.0
  %v2683 = vlog2.pop %v2682
  %v2684 = vmul.f32 %v2683, 0.6931472
  %v2685 = vmul.f32 -0.5, %v2601
  %v2686 = vadd.f32 %v2685, 1.0
  %v2687 = vmul.f32 %v2686, %v2601
  %v2688 = vand.u32 2147483647, %v2601
  %vm2689 = vcmp.lt.f32.partialorder %v2688, 0.0004427343
  %v2690 = vsel %vm2689, %v2687, %v2684
  %v2691 = vadd.f32 %v2603, 1.0
  %v2692 = vlog2.pop %v2691
  %v2693 = vmul.f32 %v2692, 0.6931472
  %v2694 = vmul.f32 -0.5, %v2603
  %v2695 = vadd.f32 %v2694, 1.0
  %v2696 = vmul.f32 %v2695, %v2603
  %v2697 = vand.u32 2147483647, %v2603
  %vm2698 = vcmp.lt.f32.partialorder %v2697, 0.0004427343
  %v2699 = vsel %vm2698, %v2696, %v2693
  %v2700 = vadd.f32 %v2620, %v2636
  %v2701 = vadd.f32 %v2621, %v2645
  %v2702 = vadd.f32 %v2622, %v2654
  %v2703 = vadd.f32 %v2623, %v2663
  %v2704 = vadd.f32 %v2624, %v2672
  %v2705 = vadd.f32 %v2625, %v2681
  %v2706 = vadd.f32 %v2626, %v2690
  %v2707 = vadd.f32 %v2627, %v2699
  %v2708 = vmul.f32 %v2548, 0.5
  %v2709 = vmul.f32 %v2549, 0.5
  %v2710 = vmul.f32 %v2550, 0.5
  %v2711 = vmul.f32 %v2551, 0.5
  %v2712 = vmul.f32 %v2552, 0.5
  %v2713 = vmul.f32 %v2553, 0.5
  %v2714 = vmul.f32 %v2554, 0.5
  %v2715 = vmul.f32 %v2555, 0.5
  %v2716 = vtanh.pop %v2708
  %v2717 = vtanh.pop %v2709
  %v2718 = vtanh.pop %v2710
  %v2719 = vtanh.pop %v2711
  %v2720 = vtanh.pop %v2712
  %v2721 = vtanh.pop %v2713
  %v2722 = vtanh.pop %v2714
  %v2723 = vtanh.pop %v2715
  %v2724 = vmul.f32 %v2716, 0.5
  %v2725 = vmul.f32 %v2717, 0.5
  %v2726 = vmul.f32 %v2718, 0.5
  %v2727 = vmul.f32 %v2719, 0.5
  %v2728 = vmul.f32 %v2720, 0.5
  %v2729 = vmul.f32 %v2721, 0.5
  %v2730 = vmul.f32 %v2722, 0.5
  %v2731 = vmul.f32 %v2723, 0.5
  %v2732 = vadd.f32 %v2724, 0.5
  %v2733 = vadd.f32 %v2725, 0.5
  %v2734 = vadd.f32 %v2726, 0.5
  %v2735 = vadd.f32 %v2727, 0.5
  %v2736 = vadd.f32 %v2728, 0.5
  %v2737 = vadd.f32 %v2729, 0.5
  %v2738 = vadd.f32 %v2730, 0.5
  %v2739 = vadd.f32 %v2731, 0.5
  %v2740 = vadd.f32 %v2700, %v2701
  %v2741 = vadd.f32 %v2740, %v2702
  %v2742 = vadd.f32 %v2741, %v2703
  %v2743 = vadd.f32 %v2742, %v2704
  %v2744 = vadd.f32 %v2743, %v2705
  %v2745 = vadd.f32 %v2744, %v2706
  %v2746 = vadd.f32 %v2745, %v2707
  %v2747 = vadd.f32 %v2512, %v2746
  %v2748 = vmul.f32 %v2732, %v2564
  %v2749 = vmul.f32 %v2733, %v2565
  %v2750 = vmul.f32 %v2734, %v2566
  %v2751 = vmul.f32 %v2735, %v2567
  %v2752 = vmul.f32 %v2736, %v2568
  %v2753 = vmul.f32 %v2737, %v2569
  %v2754 = vmul.f32 %v2738, %v2570
  %v2755 = vmul.f32 %v2739, %v2571
  %v2756 = vadd.f32 %v2748, %v2749
  %v2757 = vadd.f32 %v2756, %v2750
  %v2758 = vadd.f32 %v2757, %v2751
  %v2759 = vadd.f32 %v2758, %v2752
  %v2760 = vadd.f32 %v2759, %v2753
  %v2761 = vadd.f32 %v2760, %v2754
  %v2762 = vadd.f32 %v2761, %v2755
  %v2763 = vadd.f32 %v2528, %v2762
  %v2764 = vadd.f32 %v2732, %v2733
  %v2765 = vadd.f32 %v2764, %v2734
  %v2766 = vadd.f32 %v2765, %v2735
  %v2767 = vadd.f32 %v2766, %v2736
  %v2768 = vadd.f32 %v2767, %v2737
  %v2769 = vadd.f32 %v2768, %v2738
  %v2770 = vadd.f32 %v2769, %v2739
  %v2771 = vadd.f32 %v2536, %v2770
  %s2772 = sadd.s32 24, 64
  %s2773 = smul.addr %s2772, 4
  %s2774 = scalar_lea.vmem %s48, %s2773
  %v2775 = vld [vmem:[%s2774] sm:$0xf]
  %v2776 = vld [vmem:[%s2774 + $0x4] sm:$0xf]
  %v2777 = vld [vmem:[%s2774 + $0x8] sm:$0xf]
  %v2778 = vld [vmem:[%s2774 + $0xc] sm:$0xf]
  %v2779 = vld [vmem:[%s2774 + $0x10] sm:$0xf]
  %v2780 = vld [vmem:[%s2774 + $0x14] sm:$0xf]
  %v2781 = vld [vmem:[%s2774 + $0x18] sm:$0xf]
  %v2782 = vld [vmem:[%s2774 + $0x1c] sm:$0xf]
  %v2783 = vunpack.c.l.bf16 %v2775
  %v2784 = vunpack.c.l.bf16 %v2776
  %v2785 = vunpack.c.l.bf16 %v2777
  %v2786 = vunpack.c.l.bf16 %v2778
  %v2787 = vunpack.c.l.bf16 %v2779
  %v2788 = vunpack.c.l.bf16 %v2780
  %v2789 = vunpack.c.l.bf16 %v2781
  %v2790 = vunpack.c.l.bf16 %v2782
  %v2791 = vld [vmem:[%s148] sm:$0xf]
  %v2792 = vld [vmem:[%s148 + $0x4] sm:$0xf]
  %v2793 = vld [vmem:[%s148 + $0x8] sm:$0xf]
  %v2794 = vld [vmem:[%s148 + $0xc] sm:$0xf]
  %v2795 = vld [vmem:[%s148 + $0x10] sm:$0xf]
  %v2796 = vld [vmem:[%s148 + $0x14] sm:$0xf]
  %v2797 = vld [vmem:[%s148 + $0x18] sm:$0xf]
  %v2798 = vld [vmem:[%s148 + $0x1c] sm:$0xf]
  %v2799 = vunpack.c.l.bf16 %v2791
  %v2800 = vunpack.c.l.bf16 %v2792
  %v2801 = vunpack.c.l.bf16 %v2793
  %v2802 = vunpack.c.l.bf16 %v2794
  %v2803 = vunpack.c.l.bf16 %v2795
  %v2804 = vunpack.c.l.bf16 %v2796
  %v2805 = vunpack.c.l.bf16 %v2797
  %v2806 = vunpack.c.l.bf16 %v2798
  %v2807 = vand.u32 2147483647, %v2783
  %v2808 = vand.u32 2147483647, %v2784
  %v2809 = vand.u32 2147483647, %v2785
  %v2810 = vand.u32 2147483647, %v2786
  %v2811 = vand.u32 2147483647, %v2787
  %v2812 = vand.u32 2147483647, %v2788
  %v2813 = vand.u32 2147483647, %v2789
  %v2814 = vand.u32 2147483647, %v2790
  %v2815 = vsub.f32 0.0, %v2807
  %v2816 = vsub.f32 0.0, %v2808
  %v2817 = vsub.f32 0.0, %v2809
  %v2818 = vsub.f32 0.0, %v2810
  %v2819 = vsub.f32 0.0, %v2811
  %v2820 = vsub.f32 0.0, %v2812
  %v2821 = vsub.f32 0.0, %v2813
  %v2822 = vsub.f32 0.0, %v2814
  %v2823 = vmul.f32 %v2815, 1.442695
  %v2824 = vpow.pop %v2823
  %v2825 = vmul.f32 %v2816, 1.442695
  %v2826 = vpow.pop %v2825
  %v2827 = vmul.f32 %v2817, 1.442695
  %v2828 = vpow.pop %v2827
  %v2829 = vmul.f32 %v2818, 1.442695
  %v2830 = vpow.pop %v2829
  %v2831 = vmul.f32 %v2819, 1.442695
  %v2832 = vpow.pop %v2831
  %v2833 = vmul.f32 %v2820, 1.442695
  %v2834 = vpow.pop %v2833
  %v2835 = vmul.f32 %v2821, 1.442695
  %v2836 = vpow.pop %v2835
  %v2837 = vmul.f32 %v2822, 1.442695
  %v2838 = vpow.pop %v2837
  %v2839 = vmax.f32 %v2783, 0.0
  %v2840 = vmax.f32 %v2784, 0.0
  %v2841 = vmax.f32 %v2785, 0.0
  %v2842 = vmax.f32 %v2786, 0.0
  %v2843 = vmax.f32 %v2787, 0.0
  %v2844 = vmax.f32 %v2788, 0.0
  %v2845 = vmax.f32 %v2789, 0.0
  %v2846 = vmax.f32 %v2790, 0.0
  %v2847 = vmul.f32 %v2783, %v2799
  %v2848 = vmul.f32 %v2784, %v2800
  %v2849 = vmul.f32 %v2785, %v2801
  %v2850 = vmul.f32 %v2786, %v2802
  %v2851 = vmul.f32 %v2787, %v2803
  %v2852 = vmul.f32 %v2788, %v2804
  %v2853 = vmul.f32 %v2789, %v2805
  %v2854 = vmul.f32 %v2790, %v2806
  %v2855 = vsub.f32 %v2839, %v2847
  %v2856 = vsub.f32 %v2840, %v2848
  %v2857 = vsub.f32 %v2841, %v2849
  %v2858 = vsub.f32 %v2842, %v2850
  %v2859 = vsub.f32 %v2843, %v2851
  %v2860 = vsub.f32 %v2844, %v2852
  %v2861 = vsub.f32 %v2845, %v2853
  %v2862 = vsub.f32 %v2846, %v2854
  %v2863 = vadd.f32 %v2824, 1.0
  %v2864 = vlog2.pop %v2863
  %v2865 = vmul.f32 %v2864, 0.6931472
  %v2866 = vmul.f32 -0.5, %v2824
  %v2867 = vadd.f32 %v2866, 1.0
  %v2868 = vmul.f32 %v2867, %v2824
  %v2869 = vand.u32 2147483647, %v2824
  %vm2870 = vcmp.lt.f32.partialorder %v2869, 0.0004427343
  %v2871 = vsel %vm2870, %v2868, %v2865
  %v2872 = vadd.f32 %v2826, 1.0
  %v2873 = vlog2.pop %v2872
  %v2874 = vmul.f32 %v2873, 0.6931472
  %v2875 = vmul.f32 -0.5, %v2826
  %v2876 = vadd.f32 %v2875, 1.0
  %v2877 = vmul.f32 %v2876, %v2826
  %v2878 = vand.u32 2147483647, %v2826
  %vm2879 = vcmp.lt.f32.partialorder %v2878, 0.0004427343
  %v2880 = vsel %vm2879, %v2877, %v2874
  %v2881 = vadd.f32 %v2828, 1.0
  %v2882 = vlog2.pop %v2881
  %v2883 = vmul.f32 %v2882, 0.6931472
  %v2884 = vmul.f32 -0.5, %v2828
  %v2885 = vadd.f32 %v2884, 1.0
  %v2886 = vmul.f32 %v2885, %v2828
  %v2887 = vand.u32 2147483647, %v2828
  %vm2888 = vcmp.lt.f32.partialorder %v2887, 0.0004427343
  %v2889 = vsel %vm2888, %v2886, %v2883
  %v2890 = vadd.f32 %v2830, 1.0
  %v2891 = vlog2.pop %v2890
  %v2892 = vmul.f32 %v2891, 0.6931472
  %v2893 = vmul.f32 -0.5, %v2830
  %v2894 = vadd.f32 %v2893, 1.0
  %v2895 = vmul.f32 %v2894, %v2830
  %v2896 = vand.u32 2147483647, %v2830
  %vm2897 = vcmp.lt.f32.partialorder %v2896, 0.0004427343
  %v2898 = vsel %vm2897, %v2895, %v2892
  %v2899 = vadd.f32 %v2832, 1.0
  %v2900 = vlog2.pop %v2899
  %v2901 = vmul.f32 %v2900, 0.6931472
  %v2902 = vmul.f32 -0.5, %v2832
  %v2903 = vadd.f32 %v2902, 1.0
  %v2904 = vmul.f32 %v2903, %v2832
  %v2905 = vand.u32 2147483647, %v2832
  %vm2906 = vcmp.lt.f32.partialorder %v2905, 0.0004427343
  %v2907 = vsel %vm2906, %v2904, %v2901
  %v2908 = vadd.f32 %v2834, 1.0
  %v2909 = vlog2.pop %v2908
  %v2910 = vmul.f32 %v2909, 0.6931472
  %v2911 = vmul.f32 -0.5, %v2834
  %v2912 = vadd.f32 %v2911, 1.0
  %v2913 = vmul.f32 %v2912, %v2834
  %v2914 = vand.u32 2147483647, %v2834
  %vm2915 = vcmp.lt.f32.partialorder %v2914, 0.0004427343
  %v2916 = vsel %vm2915, %v2913, %v2910
  %v2917 = vadd.f32 %v2836, 1.0
  %v2918 = vlog2.pop %v2917
  %v2919 = vmul.f32 %v2918, 0.6931472
  %v2920 = vmul.f32 -0.5, %v2836
  %v2921 = vadd.f32 %v2920, 1.0
  %v2922 = vmul.f32 %v2921, %v2836
  %v2923 = vand.u32 2147483647, %v2836
  %vm2924 = vcmp.lt.f32.partialorder %v2923, 0.0004427343
  %v2925 = vsel %vm2924, %v2922, %v2919
  %v2926 = vadd.f32 %v2838, 1.0
  %v2927 = vlog2.pop %v2926
  %v2928 = vmul.f32 %v2927, 0.6931472
  %v2929 = vmul.f32 -0.5, %v2838
  %v2930 = vadd.f32 %v2929, 1.0
  %v2931 = vmul.f32 %v2930, %v2838
  %v2932 = vand.u32 2147483647, %v2838
  %vm2933 = vcmp.lt.f32.partialorder %v2932, 0.0004427343
  %v2934 = vsel %vm2933, %v2931, %v2928
  %v2935 = vadd.f32 %v2855, %v2871
  %v2936 = vadd.f32 %v2856, %v2880
  %v2937 = vadd.f32 %v2857, %v2889
  %v2938 = vadd.f32 %v2858, %v2898
  %v2939 = vadd.f32 %v2859, %v2907
  %v2940 = vadd.f32 %v2860, %v2916
  %v2941 = vadd.f32 %v2861, %v2925
  %v2942 = vadd.f32 %v2862, %v2934
  %v2943 = vmul.f32 %v2783, 0.5
  %v2944 = vmul.f32 %v2784, 0.5
  %v2945 = vmul.f32 %v2785, 0.5
  %v2946 = vmul.f32 %v2786, 0.5
  %v2947 = vmul.f32 %v2787, 0.5
  %v2948 = vmul.f32 %v2788, 0.5
  %v2949 = vmul.f32 %v2789, 0.5
  %v2950 = vmul.f32 %v2790, 0.5
  %v2951 = vtanh.pop %v2943
  %v2952 = vtanh.pop %v2944
  %v2953 = vtanh.pop %v2945
  %v2954 = vtanh.pop %v2946
  %v2955 = vtanh.pop %v2947
  %v2956 = vtanh.pop %v2948
  %v2957 = vtanh.pop %v2949
  %v2958 = vtanh.pop %v2950
  %v2959 = vmul.f32 %v2951, 0.5
  %v2960 = vmul.f32 %v2952, 0.5
  %v2961 = vmul.f32 %v2953, 0.5
  %v2962 = vmul.f32 %v2954, 0.5
  %v2963 = vmul.f32 %v2955, 0.5
  %v2964 = vmul.f32 %v2956, 0.5
  %v2965 = vmul.f32 %v2957, 0.5
  %v2966 = vmul.f32 %v2958, 0.5
  %v2967 = vadd.f32 %v2959, 0.5
  %v2968 = vadd.f32 %v2960, 0.5
  %v2969 = vadd.f32 %v2961, 0.5
  %v2970 = vadd.f32 %v2962, 0.5
  %v2971 = vadd.f32 %v2963, 0.5
  %v2972 = vadd.f32 %v2964, 0.5
  %v2973 = vadd.f32 %v2965, 0.5
  %v2974 = vadd.f32 %v2966, 0.5
  %v2975 = vadd.f32 %v2935, %v2936
  %v2976 = vadd.f32 %v2975, %v2937
  %v2977 = vadd.f32 %v2976, %v2938
  %v2978 = vadd.f32 %v2977, %v2939
  %v2979 = vadd.f32 %v2978, %v2940
  %v2980 = vadd.f32 %v2979, %v2941
  %v2981 = vadd.f32 %v2980, %v2942
  %v2982 = vadd.f32 %v2747, %v2981
  %v2983 = vmul.f32 %v2967, %v2799
  %v2984 = vmul.f32 %v2968, %v2800
  %v2985 = vmul.f32 %v2969, %v2801
  %v2986 = vmul.f32 %v2970, %v2802
  %v2987 = vmul.f32 %v2971, %v2803
  %v2988 = vmul.f32 %v2972, %v2804
  %v2989 = vmul.f32 %v2973, %v2805
  %v2990 = vmul.f32 %v2974, %v2806
  %v2991 = vadd.f32 %v2983, %v2984
  %v2992 = vadd.f32 %v2991, %v2985
  %v2993 = vadd.f32 %v2992, %v2986
  %v2994 = vadd.f32 %v2993, %v2987
  %v2995 = vadd.f32 %v2994, %v2988
  %v2996 = vadd.f32 %v2995, %v2989
  %v2997 = vadd.f32 %v2996, %v2990
  %v2998 = vadd.f32 %v2763, %v2997
  %v2999 = vadd.f32 %v2967, %v2968
  %v3000 = vadd.f32 %v2999, %v2969
  %v3001 = vadd.f32 %v3000, %v2970
  %v3002 = vadd.f32 %v3001, %v2971
  %v3003 = vadd.f32 %v3002, %v2972
  %v3004 = vadd.f32 %v3003, %v2973
  %v3005 = vadd.f32 %v3004, %v2974
  %v3006 = vadd.f32 %v2771, %v3005
  %s3007 = scalar_lea.vmem %s2, 16
  %v3008 = vld [vmem:[%s3007] sm:$0xff]
  %v3009 = vadd.f32 %v3008, %v2982
  %3010 = vst [vmem:[%s3007] sm:$0xff] %v3009
  %s3011 = scalar_lea.vmem %s3, 16
  %v3012 = vld [vmem:[%s3011] sm:$0xff]
  %v3013 = vadd.f32 %v3012, %v2998
  %3014 = vst [vmem:[%s3011] sm:$0xff] %v3013
  %s3015 = scalar_lea.vmem %s4, 16
  %v3016 = vld [vmem:[%s3015] sm:$0xff]
  %v3017 = vadd.f32 %v3016, %v3006
  %3018 = vst [vmem:[%s3015] sm:$0xff] %v3017
  // Predicated region
  $region14: #{loss_component.1} parent=0 // pred_check
    _
  $region15: #{loss_component.1} parent=0 // pred_check_branch
    %3020 = sbr.rel (0) target = $region17
  $region16: #{loss_component.1} parent=0 // pred_region
    _
  $region17: #{loss_component.1} parent=0 // pred_fallthru
    _
  // Predicated region
  $region18: #{loss_component.1} parent=0 // pred_check
    _
  $region19: #{loss_component.1} parent=0 // pred_check_branch
    %3022 = sbr.rel (0) target = $region21
  $region20: #{loss_component.1} parent=0 // pred_region
    _
  $region21: #{loss_component.1} parent=0 // pred_fallthru
    _
  // Predicated region
  $region22: #{loss_component.1} parent=0 // pred_check
    _
  $region23: #{loss_component.1} parent=0 // pred_check_branch
    %3024 = sbr.rel (0) target = $region25
  $region24: #{loss_component.1} parent=0 // pred_region
    _
  $region25: #{loss_component.1} parent=0 // pred_fallthru
    _
  // Predicated region
  $region26: #{loss_component.1} parent=0 // pred_check
    _
  $region27: #{loss_component.1} parent=0 // pred_check_branch
    %3026 = sbr.rel (0) target = $region29
  $region28: #{loss_component.1} parent=0 // pred_region
    _
  $region29: #{loss_component.1} parent=0 // pred_fallthru
    _
  // Predicated region
  $region30: #{loss_component.1} parent=0 // pred_check
    _
  $region31: #{loss_component.1} parent=0 // pred_check_branch
    %3028 = sbr.rel (0) target = $region33
  $region32: #{loss_component.1} parent=0 // pred_region
    _
  $region33: #{loss_component.1} parent=0 // pred_fallthru
    _
  // Predicated region
  $region34: #{loss_component.1} parent=0 // pred_check
    _
  $region35: #{loss_component.1} parent=0 // pred_check_branch
    %3030 = sbr.rel (0) target = $region37
  $region36: #{loss_component.1} parent=0 // pred_region
    _
  $region37: #{loss_component.1} parent=0 // pred_fallthru
    _
  // Predicated region
  $region38: #{loss_component.1} parent=0 // pred_check
    _
  $region39: #{loss_component.1} parent=0 // pred_check_branch
    %3032 = sbr.rel (0) target = $region41
  $region40: #{loss_component.1} parent=0 // pred_region
    _
  $region41: #{loss_component.1} parent=0 // pred_fallthru
    _
  // Predicated region
  $region42: #{loss_component.1} parent=0 // pred_check
    _
  $region43: #{loss_component.1} parent=0 // pred_check_branch
    %3034 = sbr.rel (0) target = $region45
  $region44: #{loss_component.1} parent=0 // pred_region
    _
  $region45: #{loss_component.1} parent=0 // pred_fallthru
    _

</llo_original>
